<compile_context>
chip_gen: v7x
topology: tpu7x:2x2x1
jax: 0.10.0
libtpu: 0.0.40
codegen_flags: <defaults>
</compile_context>

<pallas_src>
from itertools import product

import jax
import jax.numpy as jnp
from jax.experimental import pallas as pl
from jax.experimental.pallas import tpu as pltpu

ROW_TILE = 512          # rows per grid step (per-step overhead amortized; VMEM cost is tiny)
MXU_DTYPE = jnp.bfloat16  # matmul input dtype (f32 accumulation); jnp.float32 for exact parity


# ----------------------------------------------------------------------------
# Pallas kernels (single folded-contraction dot per row tile, with fused epilogues)
# ----------------------------------------------------------------------------
def _mm_kernel(x_ref, w_ref, o_ref):
    o_ref[...] = jnp.dot(x_ref[...], w_ref[...],
                         preferred_element_type=jnp.float32).astype(o_ref.dtype)


def _mm_add_kernel(x_ref, w_ref, r_ref, o_ref):
    """conv + fused residual add (identity branch when Cin == Cout)."""
    acc = jnp.dot(x_ref[...], w_ref[...], preferred_element_type=jnp.float32)
    o_ref[...] = (acc + r_ref[...].astype(jnp.float32)).astype(o_ref.dtype)


def _mm_proj_add_kernel(x_ref, w_ref, i_ref, wi_ref, o_ref):
    """conv + fused i_branch (1x1 SubMConv3d projection) add, both on the MXU."""
    acc = jnp.dot(x_ref[...], w_ref[...], preferred_element_type=jnp.float32)
    acc = acc + jnp.dot(i_ref[...], wi_ref[...], preferred_element_type=jnp.float32)
    o_ref[...] = acc.astype(o_ref.dtype)


def _bnrelu_mm_kernel(x_ref, scale_ref, shift_ref, w_ref, o_ref):
    """Folded BN(eval)+ReLU prologue (f32 on the VPU) then conv matmul.  Safe here because
    the stride-2 / inverse convs gather real voxels only (no zero padding involved)."""
    xa = jnp.maximum(x_ref[...].astype(jnp.float32) * scale_ref[...] + shift_ref[...], 0.0)
    o_ref[...] = jnp.dot(xa.astype(w_ref.dtype), w_ref[...],
                         preferred_element_type=jnp.float32).astype(o_ref.dtype)


def pallas_matmul(x2d, w2d, *, bn=None, residual=None, proj=None):
    """out[n] = act(x2d[n]) @ w2d (+ residual[n] | + proj_feats[n] @ proj_w).

    x2d: [N, KC] (im2col with the kernel-offset axis folded into the contraction)
    w2d: [KC, Cout]
    bn: optional (scale[KC], shift[KC]) folded BN+ReLU applied in-kernel before the dot.
    residual: optional [N, Cout] added in the epilogue.
    proj: optional (id_feats[N, Ci], id_w[Ci, Cout]) fused i-branch projection + add.
    """
    assert sum(p is not None for p in (bn, residual, proj)) <= 1
    N, KC = x2d.shape
    KCw, Cout = w2d.shape
    assert KCw == KC

    tn = ROW_TILE if N > ROW_TILE else N      # full-extent block when small (no 8-div constraint)
    Np = -(-N // tn) * tn                      # pad rows to a tile multiple (arbitrary N works)
    nt = Np // tn

    def pad_rows(a):
        return a if a.shape[0] == Np else jnp.pad(a, ((0, Np - a.shape[0]), (0, 0)))

    def row_spec(c):
        return pl.BlockSpec((tn, c), lambda i: (i, 0))

    def rep_spec(shape):
        # whole-array block, constant index -> DMA'd into VMEM once, not per grid step
        return pl.BlockSpec(shape, lambda i: tuple(0 for _ in shape))

    args = [pad_rows(x2d)]
    specs = [row_spec(KC)]
    if bn is not None:
        scale, shift = bn
        args += [scale.reshape(1, KC).astype(jnp.float32),
                 shift.reshape(1, KC).astype(jnp.float32)]
        specs += [rep_spec((1, KC)), rep_spec((1, KC))]
        kernel = _bnrelu_mm_kernel
    elif residual is not None:
        kernel = _mm_add_kernel
    elif proj is not None:
        kernel = _mm_proj_add_kernel
    else:
        kernel = _mm_kernel

    args.append(w2d)
    specs.append(rep_spec((KC, Cout)))

    if residual is not None:
        args.append(pad_rows(residual))
        specs.append(row_spec(Cout))
    if proj is not None:
        id_feats, id_w = proj
        Ci = id_feats.shape[-1]
        args += [pad_rows(id_feats), id_w]
        specs += [row_spec(Ci), rep_spec((Ci, Cout))]

    out = pl.pallas_call(
        kernel,
        out_shape=jax.ShapeDtypeStruct((Np, Cout), jnp.float32),
        grid=(nt,),
        in_specs=specs,
        out_specs=row_spec(Cout),
        compiler_params=pltpu.CompilerParams(dimension_semantics=("parallel",)),
    )(*args)
    return out[:N] if Np != N else out


# ----------------------------------------------------------------------------
# Conv wrappers (im2col / scatter glue in JAX, folded matmul hot path in Pallas)
# ----------------------------------------------------------------------------
def _subm_im2col(x, bn):
    """Folded BN(eval)+ReLU (fused by XLA into the gather producer, so no extra HBM pass)
    followed by the 3x3x3 im2col: [B,D,H,W,C] -> [B*D*H*W, 27*C] in MXU_DTYPE.
    BN+ReLU must happen before zero-padding so padded (inactive) voxels contribute zero.
    TODO(synk): build the 27 shifted views in-kernel from a haloed VMEM tile instead of
    materialising the 27x im2col in HBM (largest remaining HBM-traffic reduction)."""
    B, D, H, W, C = x.shape
    if bn is not None:
        scale, shift = bn
        x = jnp.maximum(x * scale + shift, 0.0)
    x = x.astype(MXU_DTYPE)
    xp = jnp.pad(x, ((0, 0), (1, 1), (1, 1), (1, 1), (0, 0)))
    cols = [xp[:, dz:dz + D, dy:dy + H, dx:dx + W, :]
            for dz, dy, dx in product(range(3), repeat=3)]
    return jnp.concatenate(cols, axis=-1).reshape(B * D * H * W, 27 * C)


def down_conv2(x, w, bn):
    """norm_fn + ReLU + SparseConv3d(k=2, s=2, bias=False); BN+ReLU fused in-kernel.
    w: [8, Cin, Cout]."""
    B, D, H, W, Cin = x.shape
    Dc, Hc, Wc = D // 2, H // 2, W // 2
    cols = [x[:, dz::2, dy::2, dx::2, :] for dz, dy, dx in product(range(2), repeat=3)]
    x2d = jnp.concatenate(cols, axis=-1).reshape(B * Dc * Hc * Wc, 8 * Cin).astype(MXU_DTYPE)
    scale, shift = bn
    w2d = w.reshape(8 * Cin, -1).astype(MXU_DTYPE)
    out = pallas_matmul(x2d, w2d, bn=(jnp.tile(scale, 8), jnp.tile(shift, 8)))
    return out.reshape(B, Dc, Hc, Wc, -1)


def inv_conv2(x, w, bn):
    """norm_fn + ReLU + SparseInverseConv3d(k=2, bias=False) restoring the 2x finer grid.
    Single matmul [Nc, Cin] @ [Cin, 8*Cout] with BN+ReLU fused in-kernel.  w: [8, Cin, Cout]."""
    B, Dc, Hc, Wc, Cin = x.shape
    Cout = w.shape[-1]
    Nc = B * Dc * Hc * Wc
    w2d = jnp.transpose(w, (1, 0, 2)).reshape(Cin, 8 * Cout).astype(MXU_DTYPE)
    y = pallas_matmul(x.reshape(Nc, Cin).astype(MXU_DTYPE), w2d, bn=bn)   # [Nc, 8*Cout]
    y = y.reshape(B, Dc, Hc, Wc, 2, 2, 2, Cout)
    # TODO(synk): fuse this interleave into the Pallas out_spec (strided offset scatter) to
    # avoid the extra XLA pass over the upsampled tensor.
    y = jnp.transpose(y, (0, 1, 4, 2, 5, 3, 6, 7))                         # [B,Dc,2,Hc,2,Wc,2,C]
    return y.reshape(B, 2 * Dc, 2 * Hc, 2 * Wc, Cout)


# ----------------------------------------------------------------------------
# ResidualBlock (the `block` used by UBlock in relation_net.py) and UBlock
# ----------------------------------------------------------------------------
def residual_block(x, p):
    """Pre-activation residual block: 2 pallas_calls (BN+ReLU fused at the im2col producer;
    residual / i-branch add fused into conv2's epilogue)."""
    B, D, H, W, Cin = x.shape
    N = B * D * H * W
    Cout = p["conv2"].shape[-1]

    # conv1: BN+ReLU -> SubMConv3d(k=3)
    h = pallas_matmul(_subm_im2col(x, p["bn1"]),
                      p["conv1"].reshape(27 * Cin, -1).astype(MXU_DTYPE))
    Cmid = h.shape[-1]

    # conv2: BN+ReLU -> SubMConv3d(k=3) + residual (identity or fused 1x1 i_branch projection)
    h2 = _subm_im2col(h.reshape(B, D, H, W, Cmid), p["bn2"])
    w2 = p["conv2"].reshape(27 * Cmid, Cout).astype(MXU_DTYPE)
    xf = x.reshape(N, Cin)
    if p["i_w"] is None:
        out = pallas_matmul(h2, w2, residual=xf)
    else:
        wi = p["i_w"].reshape(Cin, Cout).astype(MXU_DTYPE)
        out = pallas_matmul(h2, w2, proj=(xf.astype(MXU_DTYPE), wi))
    return out.reshape(B, D, H, W, Cout)


def ublock_forward(x, params, nPlanes):
    out = x
    for bp in params["blocks"]:
        out = residual_block(out, bp)
    identity = out
    if len(nPlanes) > 1:
        h = down_conv2(out, params["conv_w"], params["conv_bn"])
        h = ublock_forward(h, params["u"], nPlanes[1:])
        h = inv_conv2(h, params["deconv_w"], params["deconv_bn"])
        out = jnp.concatenate([identity, h], axis=-1)   # torch.cat(..., dim=1) on features
        for bp in params["blocks_tail"]:
            out = residual_block(out, bp)
    return out


# ----------------------------------------------------------------------------
# Deterministic parameter init (synthetic; shapes follow the PyTorch __init__)
# ----------------------------------------------------------------------------
def init_bn(key, C, eps=1e-4):
    k1, k2, k3, k4 = jax.random.split(key, 4)
    gamma = 1.0 + 0.1 * jax.random.normal(k1, (C,), jnp.float32)
    beta = 0.1 * jax.random.normal(k2, (C,), jnp.float32)
    mean = 0.1 * jax.random.normal(k3, (C,), jnp.float32)
    var = 1.0 + 0.1 * jax.random.uniform(k4, (C,), jnp.float32)
    scale = gamma / jnp.sqrt(var + eps)
    shift = beta - mean * scale
    return scale, shift


def init_conv(key, K, Cin, Cout):
    fan = K * Cin
    return jax.random.normal(key, (K, Cin, Cout), jnp.float32) / jnp.sqrt(float(fan))


def init_resblock(key, Cin, Cout):
    ks = jax.random.split(key, 5)
    return {
        "bn1": init_bn(ks[0], Cin),
        "conv1": init_conv(ks[1], 27, Cin, Cout),
        "bn2": init_bn(ks[2], Cout),
        "conv2": init_conv(ks[3], 27, Cout, Cout),
        "i_w": None if Cin == Cout else init_conv(ks[4], 1, Cin, Cout),
    }


def init_ublock(key, nPlanes, block_reps):
    keys = jax.random.split(key, 16)
    params = {
        "blocks": [
            init_resblock(keys[i], nPlanes[0], nPlanes[0]) for i in range(block_reps)
        ]
    }
    if len(nPlanes) > 1:
        params["conv_bn"] = init_bn(keys[4], nPlanes[0])
        params["conv_w"] = init_conv(keys[5], 8, nPlanes[0], nPlanes[1])
        params["u"] = init_ublock(keys[6], nPlanes[1:], block_reps)
        params["deconv_bn"] = init_bn(keys[7], nPlanes[1])
        params["deconv_w"] = init_conv(keys[8], 8, nPlanes[1], nPlanes[0])
        params["blocks_tail"] = [
            init_resblock(keys[9 + i], nPlanes[0] * (2 - i), nPlanes[0])
            for i in range(block_reps)
        ]
    return params


# ----------------------------------------------------------------------------
if __name__ == "__main__":
    key = jax.random.PRNGKey(0)
    kx, kp = jax.random.split(key)

    nPlanes = [4, 8]      # 2-level UBlock (recursion depth 2)
    block_reps = 2
    B, D, H, W = 2, 8, 8, 8

    x = jax.random.normal(kx, (B, D, H, W, nPlanes[0]), jnp.float32)
    params = init_ublock(kp, nPlanes, block_reps)

    fwd = jax.jit(lambda xx, pp: ublock_forward(xx, pp, nPlanes))
    out = jax.block_until_ready(fwd(x, params))

    assert out.shape == (B, D, H, W, nPlanes[0]), out.shape
    assert jnp.all(jnp.isfinite(out))
    print("KERNEL_OK")
</pallas_src>

<mosaic_0001>
module attributes {stable_mosaic.version = 11 : i64} {
  func.func @_mm_kernel(%arg0: i32, %arg1: memref<512x108xbf16, #tpu.memory_space<vmem>>, %arg2: memref<108x4xbf16, #tpu.memory_space<vmem>>, %arg3: memref<512x4xf32, #tpu.memory_space<vmem>>) attributes {dimension_semantics = [#tpu.dimension_semantics<parallel>], iteration_bounds = array<i64: 2>, scalar_prefetch = 0 : i64, scratch_operands = 0 : i64, tpu.core_type = #tpu.core_type<tc>, window_params = [{transform_indices = @transform_0, window_bounds = array<i64: 512, 108>}, {pipeline_mode = #tpu.pipeline_mode<synchronous>, transform_indices = @transform_1, window_bounds = array<i64: 108, 4>}, {transform_indices = @transform_2, window_bounds = array<i64: 512, 4>}]} {
    %c0 = arith.constant 0 : index
    %c0_0 = arith.constant 0 : index
    %0 = vector.load %arg1[%c0, %c0_0] : memref<512x108xbf16, #tpu.memory_space<vmem>>, vector<512x108xbf16>
    %c0_1 = arith.constant 0 : index
    %c0_2 = arith.constant 0 : index
    %1 = vector.load %arg2[%c0_1, %c0_2] : memref<108x4xbf16, #tpu.memory_space<vmem>>, vector<108x4xbf16>
    %cst = arith.constant dense<0.000000e+00> : vector<512x4xf32>
    %2 = tpu.matmul %0, %1, %cst {dimension_numbers = #tpu.dot_dimension_numbers<[1], [0], [0], [1], [0, 0, 1, 1], [], []>} : vector<512x108xbf16>, vector<108x4xbf16>, vector<512x4xf32> -> vector<512x4xf32>
    %c0_3 = arith.constant 0 : index
    %c0_4 = arith.constant 0 : index
    %3 = vector.load %arg3[%c0_3, %c0_4] : memref<512x4xf32, #tpu.memory_space<vmem>>, vector<512x4xf32>
    tpu.vector_store %arg3[%c0_3, %c0_4], %2 {strides = array<i32>} : memref<512x4xf32, #tpu.memory_space<vmem>>, vector<512x4xf32>,
    return
  }
  func.func @transform_0(%arg0: i32) -> (i32, i32) {
    %c0_i32 = arith.constant 0 : i32
    %c0_i32_0 = arith.constant 0 : i32
    return %arg0, %c0_i32 : i32, i32
  }
  func.func @transform_1(%arg0: i32) -> (i32, i32) {
    %c0_i32 = arith.constant 0 : i32
    %c0_i32_0 = arith.constant 0 : i32
    %c0_i32_1 = arith.constant 0 : i32
    return %c0_i32, %c0_i32_0 : i32, i32
  }
  func.func @transform_2(%arg0: i32) -> (i32, i32) {
    %c0_i32 = arith.constant 0 : i32
    %c0_i32_0 = arith.constant 0 : i32
    return %arg0, %c0_i32 : i32, i32
  }
}

module attributes {stable_mosaic.version = 11 : i64} {
  func.func @_mm_add_kernel(%arg0: i32, %arg1: memref<512x108xbf16, #tpu.memory_space<vmem>>, %arg2: memref<108x4xbf16, #tpu.memory_space<vmem>>, %arg3: memref<512x4xf32, #tpu.memory_space<vmem>>, %arg4: memref<512x4xf32, #tpu.memory_space<vmem>>) attributes {dimension_semantics = [#tpu.dimension_semantics<parallel>], iteration_bounds = array<i64: 2>, scalar_prefetch = 0 : i64, scratch_operands = 0 : i64, tpu.core_type = #tpu.core_type<tc>, window_params = [{transform_indices = @transform_0, window_bounds = array<i64: 512, 108>}, {pipeline_mode = #tpu.pipeline_mode<synchronous>, transform_indices = @transform_1, window_bounds = array<i64: 108, 4>}, {transform_indices = @transform_2, window_bounds = array<i64: 512, 4>}, {transform_indices = @transform_3, window_bounds = array<i64: 512, 4>}]} {
    %c0 = arith.constant 0 : index
    %c0_0 = arith.constant 0 : index
    %0 = vector.load %arg1[%c0, %c0_0] : memref<512x108xbf16, #tpu.memory_space<vmem>>, vector<512x108xbf16>
    %c0_1 = arith.constant 0 : index
    %c0_2 = arith.constant 0 : index
    %1 = vector.load %arg2[%c0_1, %c0_2] : memref<108x4xbf16, #tpu.memory_space<vmem>>, vector<108x4xbf16>
    %cst = arith.constant dense<0.000000e+00> : vector<512x4xf32>
    %2 = tpu.matmul %0, %1, %cst {dimension_numbers = #tpu.dot_dimension_numbers<[1], [0], [0], [1], [0, 0, 1, 1], [], []>} : vector<512x108xbf16>, vector<108x4xbf16>, vector<512x4xf32> -> vector<512x4xf32>
    %c0_3 = arith.constant 0 : index
    %c0_4 = arith.constant 0 : index
    %3 = vector.load %arg3[%c0_3, %c0_4] : memref<512x4xf32, #tpu.memory_space<vmem>>, vector<512x4xf32>
    %4 = arith.addf %2, %3 : vector<512x4xf32>
    %c0_5 = arith.constant 0 : index
    %c0_6 = arith.constant 0 : index
    %5 = vector.load %arg4[%c0_5, %c0_6] : memref<512x4xf32, #tpu.memory_space<vmem>>, vector<512x4xf32>
    tpu.vector_store %arg4[%c0_5, %c0_6], %4 {strides = array<i32>} : memref<512x4xf32, #tpu.memory_space<vmem>>, vector<512x4xf32>,
    return
  }
  func.func @transform_0(%arg0: i32) -> (i32, i32) {
    %c0_i32 = arith.constant 0 : i32
    %c0_i32_0 = arith.constant 0 : i32
    return %arg0, %c0_i32 : i32, i32
  }
  func.func @transform_1(%arg0: i32) -> (i32, i32) {
    %c0_i32 = arith.constant 0 : i32
    %c0_i32_0 = arith.constant 0 : i32
    %c0_i32_1 = arith.constant 0 : i32
    return %c0_i32, %c0_i32_0 : i32, i32
  }
  func.func @transform_2(%arg0: i32) -> (i32, i32) {
    %c0_i32 = arith.constant 0 : i32
    %c0_i32_0 = arith.constant 0 : i32
    return %arg0, %c0_i32 : i32, i32
  }
  func.func @transform_3(%arg0: i32) -> (i32, i32) {
    %c0_i32 = arith.constant 0 : i32
    %c0_i32_0 = arith.constant 0 : i32
    return %arg0, %c0_i32 : i32, i32
  }
}

module attributes {stable_mosaic.version = 11 : i64} {
  func.func @_bnrelu_mm_kernel(%arg0: i32, %arg1: memref<128x32xbf16, #tpu.memory_space<vmem>>, %arg2: memref<1x32xf32, #tpu.memory_space<vmem>>, %arg3: memref<1x32xf32, #tpu.memory_space<vmem>>, %arg4: memref<32x8xbf16, #tpu.memory_space<vmem>>, %arg5: memref<128x8xf32, #tpu.memory_space<vmem>>) attributes {dimension_semantics = [#tpu.dimension_semantics<parallel>], iteration_bounds = array<i64: 1>, scalar_prefetch = 0 : i64, scratch_operands = 0 : i64, tpu.core_type = #tpu.core_type<tc>, window_params = [{transform_indices = @transform_0, window_bounds = array<i64: 128, 32>}, {pipeline_mode = #tpu.pipeline_mode<synchronous>, transform_indices = @transform_1, window_bounds = array<i64: 1, 32>}, {pipeline_mode = #tpu.pipeline_mode<synchronous>, transform_indices = @transform_2, window_bounds = array<i64: 1, 32>}, {pipeline_mode = #tpu.pipeline_mode<synchronous>, transform_indices = @transform_3, window_bounds = array<i64: 32, 8>}, {transform_indices = @transform_4, window_bounds = array<i64: 128, 8>}]} {
    %c0 = arith.constant 0 : index
    %c0_0 = arith.constant 0 : index
    %0 = vector.load %arg1[%c0, %c0_0] : memref<128x32xbf16, #tpu.memory_space<vmem>>, vector<128x32xbf16>
    %1 = arith.extf %0 : vector<128x32xbf16> to vector<128x32xf32>
    %c0_1 = arith.constant 0 : index
    %c0_2 = arith.constant 0 : index
    %2 = vector.load %arg2[%c0_1, %c0_2] : memref<1x32xf32, #tpu.memory_space<vmem>>, vector<1x32xf32>
    %3 = vector.broadcast %2 : vector<1x32xf32> to vector<128x32xf32>
    %4 = arith.mulf %1, %3 : vector<128x32xf32>
    %c0_3 = arith.constant 0 : index
    %c0_4 = arith.constant 0 : index
    %5 = vector.load %arg3[%c0_3, %c0_4] : memref<1x32xf32, #tpu.memory_space<vmem>>, vector<1x32xf32>
    %6 = vector.broadcast %5 : vector<1x32xf32> to vector<128x32xf32>
    %7 = arith.addf %4, %6 : vector<128x32xf32>
    %cst = arith.constant 0.000000e+00 : f32
    %8 = vector.broadcast %cst : f32 to vector<128x32xf32>
    %9 = arith.maximumf %7, %8 : vector<128x32xf32>
    %10 = arith.truncf %9 : vector<128x32xf32> to vector<128x32xbf16>
    %c0_5 = arith.constant 0 : index
    %c0_6 = arith.constant 0 : index
    %11 = vector.load %arg4[%c0_5, %c0_6] : memref<32x8xbf16, #tpu.memory_space<vmem>>, vector<32x8xbf16>
    %cst_7 = arith.constant dense<0.000000e+00> : vector<128x8xf32>
    %12 = tpu.matmul %10, %11, %cst_7 {dimension_numbers = #tpu.dot_dimension_numbers<[1], [0], [0], [1], [0, 0, 1, 1], [], []>} : vector<128x32xbf16>, vector<32x8xbf16>, vector<128x8xf32> -> vector<128x8xf32>
    %c0_8 = arith.constant 0 : index
    %c0_9 = arith.constant 0 : index
    %13 = vector.load %arg5[%c0_8, %c0_9] : memref<128x8xf32, #tpu.memory_space<vmem>>, vector<128x8xf32>
    tpu.vector_store %arg5[%c0_8, %c0_9], %12 {strides = array<i32>} : memref<128x8xf32, #tpu.memory_space<vmem>>, vector<128x8xf32>,
    return
  }
  func.func @transform_0(%arg0: i32) -> (i32, i32) {
    %c0_i32 = arith.constant 0 : i32
    %c0_i32_0 = arith.constant 0 : i32
    return %arg0, %c0_i32 : i32, i32
  }
  func.func @transform_1(%arg0: i32) -> (i32, i32) {
    %c0_i32 = arith.constant 0 : i32
    %c0_i32_0 = arith.constant 0 : i32
    %c0_i32_1 = arith.constant 0 : i32
    return %c0_i32, %c0_i32_0 : i32, i32
  }
  func.func @transform_2(%arg0: i32) -> (i32, i32) {
    %c0_i32 = arith.constant 0 : i32
    %c0_i32_0 = arith.constant 0 : i32
    %c0_i32_1 = arith.constant 0 : i32
    return %c0_i32, %c0_i32_0 : i32, i32
  }
  func.func @transform_3(%arg0: i32) -> (i32, i32) {
    %c0_i32 = arith.constant 0 : i32
    %c0_i32_0 = arith.constant 0 : i32
    %c0_i32_1 = arith.constant 0 : i32
    return %c0_i32, %c0_i32_0 : i32, i32
  }
  func.func @transform_4(%arg0: i32) -> (i32, i32) {
    %c0_i32 = arith.constant 0 : i32
    %c0_i32_0 = arith.constant 0 : i32
    return %arg0, %c0_i32 : i32, i32
  }
}

module attributes {stable_mosaic.version = 11 : i64} {
  func.func @_mm_kernel(%arg0: i32, %arg1: memref<128x216xbf16, #tpu.memory_space<vmem>>, %arg2: memref<216x8xbf16, #tpu.memory_space<vmem>>, %arg3: memref<128x8xf32, #tpu.memory_space<vmem>>) attributes {dimension_semantics = [#tpu.dimension_semantics<parallel>], iteration_bounds = array<i64: 1>, scalar_prefetch = 0 : i64, scratch_operands = 0 : i64, tpu.core_type = #tpu.core_type<tc>, window_params = [{transform_indices = @transform_0, window_bounds = array<i64: 128, 216>}, {pipeline_mode = #tpu.pipeline_mode<synchronous>, transform_indices = @transform_1, window_bounds = array<i64: 216, 8>}, {transform_indices = @transform_2, window_bounds = array<i64: 128, 8>}]} {
    %c0 = arith.constant 0 : index
    %c0_0 = arith.constant 0 : index
    %0 = vector.load %arg1[%c0, %c0_0] : memref<128x216xbf16, #tpu.memory_space<vmem>>, vector<128x216xbf16>
    %c0_1 = arith.constant 0 : index
    %c0_2 = arith.constant 0 : index
    %1 = vector.load %arg2[%c0_1, %c0_2] : memref<216x8xbf16, #tpu.memory_space<vmem>>, vector<216x8xbf16>
    %cst = arith.constant dense<0.000000e+00> : vector<128x8xf32>
    %2 = tpu.matmul %0, %1, %cst {dimension_numbers = #tpu.dot_dimension_numbers<[1], [0], [0], [1], [0, 0, 1, 1], [], []>} : vector<128x216xbf16>, vector<216x8xbf16>, vector<128x8xf32> -> vector<128x8xf32>
    %c0_3 = arith.constant 0 : index
    %c0_4 = arith.constant 0 : index
    %3 = vector.load %arg3[%c0_3, %c0_4] : memref<128x8xf32, #tpu.memory_space<vmem>>, vector<128x8xf32>
    tpu.vector_store %arg3[%c0_3, %c0_4], %2 {strides = array<i32>} : memref<128x8xf32, #tpu.memory_space<vmem>>, vector<128x8xf32>,
    return
  }
  func.func @transform_0(%arg0: i32) -> (i32, i32) {
    %c0_i32 = arith.constant 0 : i32
    %c0_i32_0 = arith.constant 0 : i32
    return %arg0, %c0_i32 : i32, i32
  }
  func.func @transform_1(%arg0: i32) -> (i32, i32) {
    %c0_i32 = arith.constant 0 : i32
    %c0_i32_0 = arith.constant 0 : i32
    %c0_i32_1 = arith.constant 0 : i32
    return %c0_i32, %c0_i32_0 : i32, i32
  }
  func.func @transform_2(%arg0: i32) -> (i32, i32) {
    %c0_i32 = arith.constant 0 : i32
    %c0_i32_0 = arith.constant 0 : i32
    return %arg0, %c0_i32 : i32, i32
  }
}

module attributes {stable_mosaic.version = 11 : i64} {
  func.func @_mm_add_kernel(%arg0: i32, %arg1: memref<128x216xbf16, #tpu.memory_space<vmem>>, %arg2: memref<216x8xbf16, #tpu.memory_space<vmem>>, %arg3: memref<128x8xf32, #tpu.memory_space<vmem>>, %arg4: memref<128x8xf32, #tpu.memory_space<vmem>>) attributes {dimension_semantics = [#tpu.dimension_semantics<parallel>], iteration_bounds = array<i64: 1>, scalar_prefetch = 0 : i64, scratch_operands = 0 : i64, tpu.core_type = #tpu.core_type<tc>, window_params = [{transform_indices = @transform_0, window_bounds = array<i64: 128, 216>}, {pipeline_mode = #tpu.pipeline_mode<synchronous>, transform_indices = @transform_1, window_bounds = array<i64: 216, 8>}, {transform_indices = @transform_2, window_bounds = array<i64: 128, 8>}, {transform_indices = @transform_3, window_bounds = array<i64: 128, 8>}]} {
    %c0 = arith.constant 0 : index
    %c0_0 = arith.constant 0 : index
    %0 = vector.load %arg1[%c0, %c0_0] : memref<128x216xbf16, #tpu.memory_space<vmem>>, vector<128x216xbf16>
    %c0_1 = arith.constant 0 : index
    %c0_2 = arith.constant 0 : index
    %1 = vector.load %arg2[%c0_1, %c0_2] : memref<216x8xbf16, #tpu.memory_space<vmem>>, vector<216x8xbf16>
    %cst = arith.constant dense<0.000000e+00> : vector<128x8xf32>
    %2 = tpu.matmul %0, %1, %cst {dimension_numbers = #tpu.dot_dimension_numbers<[1], [0], [0], [1], [0, 0, 1, 1], [], []>} : vector<128x216xbf16>, vector<216x8xbf16>, vector<128x8xf32> -> vector<128x8xf32>
    %c0_3 = arith.constant 0 : index
    %c0_4 = arith.constant 0 : index
    %3 = vector.load %arg3[%c0_3, %c0_4] : memref<128x8xf32, #tpu.memory_space<vmem>>, vector<128x8xf32>
    %4 = arith.addf %2, %3 : vector<128x8xf32>
    %c0_5 = arith.constant 0 : index
    %c0_6 = arith.constant 0 : index
    %5 = vector.load %arg4[%c0_5, %c0_6] : memref<128x8xf32, #tpu.memory_space<vmem>>, vector<128x8xf32>
    tpu.vector_store %arg4[%c0_5, %c0_6], %4 {strides = array<i32>} : memref<128x8xf32, #tpu.memory_space<vmem>>, vector<128x8xf32>,
    return
  }
  func.func @transform_0(%arg0: i32) -> (i32, i32) {
    %c0_i32 = arith.constant 0 : i32
    %c0_i32_0 = arith.constant 0 : i32
    return %arg0, %c0_i32 : i32, i32
  }
  func.func @transform_1(%arg0: i32) -> (i32, i32) {
    %c0_i32 = arith.constant 0 : i32
    %c0_i32_0 = arith.constant 0 : i32
    %c0_i32_1 = arith.constant 0 : i32
    return %c0_i32, %c0_i32_0 : i32, i32
  }
  func.func @transform_2(%arg0: i32) -> (i32, i32) {
    %c0_i32 = arith.constant 0 : i32
    %c0_i32_0 = arith.constant 0 : i32
    return %arg0, %c0_i32 : i32, i32
  }
  func.func @transform_3(%arg0: i32) -> (i32, i32) {
    %c0_i32 = arith.constant 0 : i32
    %c0_i32_0 = arith.constant 0 : i32
    return %arg0, %c0_i32 : i32, i32
  }
}

module attributes {stable_mosaic.version = 11 : i64} {
  func.func @_bnrelu_mm_kernel(%arg0: i32, %arg1: memref<128x8xbf16, #tpu.memory_space<vmem>>, %arg2: memref<1x8xf32, #tpu.memory_space<vmem>>, %arg3: memref<1x8xf32, #tpu.memory_space<vmem>>, %arg4: memref<8x32xbf16, #tpu.memory_space<vmem>>, %arg5: memref<128x32xf32, #tpu.memory_space<vmem>>) attributes {dimension_semantics = [#tpu.dimension_semantics<parallel>], iteration_bounds = array<i64: 1>, scalar_prefetch = 0 : i64, scratch_operands = 0 : i64, tpu.core_type = #tpu.core_type<tc>, window_params = [{transform_indices = @transform_0, window_bounds = array<i64: 128, 8>}, {pipeline_mode = #tpu.pipeline_mode<synchronous>, transform_indices = @transform_1, window_bounds = array<i64: 1, 8>}, {pipeline_mode = #tpu.pipeline_mode<synchronous>, transform_indices = @transform_2, window_bounds = array<i64: 1, 8>}, {pipeline_mode = #tpu.pipeline_mode<synchronous>, transform_indices = @transform_3, window_bounds = array<i64: 8, 32>}, {transform_indices = @transform_4, window_bounds = array<i64: 128, 32>}]} {
    %c0 = arith.constant 0 : index
    %c0_0 = arith.constant 0 : index
    %0 = vector.load %arg1[%c0, %c0_0] : memref<128x8xbf16, #tpu.memory_space<vmem>>, vector<128x8xbf16>
    %1 = arith.extf %0 : vector<128x8xbf16> to vector<128x8xf32>
    %c0_1 = arith.constant 0 : index
    %c0_2 = arith.constant 0 : index
    %2 = vector.load %arg2[%c0_1, %c0_2] : memref<1x8xf32, #tpu.memory_space<vmem>>, vector<1x8xf32>
    %3 = vector.broadcast %2 : vector<1x8xf32> to vector<128x8xf32>
    %4 = arith.mulf %1, %3 : vector<128x8xf32>
    %c0_3 = arith.constant 0 : index
    %c0_4 = arith.constant 0 : index
    %5 = vector.load %arg3[%c0_3, %c0_4] : memref<1x8xf32, #tpu.memory_space<vmem>>, vector<1x8xf32>
    %6 = vector.broadcast %5 : vector<1x8xf32> to vector<128x8xf32>
    %7 = arith.addf %4, %6 : vector<128x8xf32>
    %cst = arith.constant 0.000000e+00 : f32
    %8 = vector.broadcast %cst : f32 to vector<128x8xf32>
    %9 = arith.maximumf %7, %8 : vector<128x8xf32>
    %10 = arith.truncf %9 : vector<128x8xf32> to vector<128x8xbf16>
    %c0_5 = arith.constant 0 : index
    %c0_6 = arith.constant 0 : index
    %11 = vector.load %arg4[%c0_5, %c0_6] : memref<8x32xbf16, #tpu.memory_space<vmem>>, vector<8x32xbf16>
    %cst_7 = arith.constant dense<0.000000e+00> : vector<128x32xf32>
    %12 = tpu.matmul %10, %11, %cst_7 {dimension_numbers = #tpu.dot_dimension_numbers<[1], [0], [0], [1], [0, 0, 1, 1], [], []>} : vector<128x8xbf16>, vector<8x32xbf16>, vector<128x32xf32> -> vector<128x32xf32>
    %c0_8 = arith.constant 0 : index
    %c0_9 = arith.constant 0 : index
    %13 = vector.load %arg5[%c0_8, %c0_9] : memref<128x32xf32, #tpu.memory_space<vmem>>, vector<128x32xf32>
    tpu.vector_store %arg5[%c0_8, %c0_9], %12 {strides = array<i32>} : memref<128x32xf32, #tpu.memory_space<vmem>>, vector<128x32xf32>,
    return
  }
  func.func @transform_0(%arg0: i32) -> (i32, i32) {
    %c0_i32 = arith.constant 0 : i32
    %c0_i32_0 = arith.constant 0 : i32
    return %arg0, %c0_i32 : i32, i32
  }
  func.func @transform_1(%arg0: i32) -> (i32, i32) {
    %c0_i32 = arith.constant 0 : i32
    %c0_i32_0 = arith.constant 0 : i32
    %c0_i32_1 = arith.constant 0 : i32
    return %c0_i32, %c0_i32_0 : i32, i32
  }
  func.func @transform_2(%arg0: i32) -> (i32, i32) {
    %c0_i32 = arith.constant 0 : i32
    %c0_i32_0 = arith.constant 0 : i32
    %c0_i32_1 = arith.constant 0 : i32
    return %c0_i32, %c0_i32_0 : i32, i32
  }
  func.func @transform_3(%arg0: i32) -> (i32, i32) {
    %c0_i32 = arith.constant 0 : i32
    %c0_i32_0 = arith.constant 0 : i32
    %c0_i32_1 = arith.constant 0 : i32
    return %c0_i32, %c0_i32_0 : i32, i32
  }
  func.func @transform_4(%arg0: i32) -> (i32, i32) {
    %c0_i32 = arith.constant 0 : i32
    %c0_i32_0 = arith.constant 0 : i32
    return %arg0, %c0_i32 : i32, i32
  }
}

module attributes {stable_mosaic.version = 11 : i64} {
  func.func @_mm_kernel(%arg0: i32, %arg1: memref<512x216xbf16, #tpu.memory_space<vmem>>, %arg2: memref<216x4xbf16, #tpu.memory_space<vmem>>, %arg3: memref<512x4xf32, #tpu.memory_space<vmem>>) attributes {dimension_semantics = [#tpu.dimension_semantics<parallel>], iteration_bounds = array<i64: 2>, scalar_prefetch = 0 : i64, scratch_operands = 0 : i64, tpu.core_type = #tpu.core_type<tc>, window_params = [{transform_indices = @transform_0, window_bounds = array<i64: 512, 216>}, {pipeline_mode = #tpu.pipeline_mode<synchronous>, transform_indices = @transform_1, window_bounds = array<i64: 216, 4>}, {transform_indices = @transform_2, window_bounds = array<i64: 512, 4>}]} {
    %c0 = arith.constant 0 : index
    %c0_0 = arith.constant 0 : index
    %0 = vector.load %arg1[%c0, %c0_0] : memref<512x216xbf16, #tpu.memory_space<vmem>>, vector<512x216xbf16>
    %c0_1 = arith.constant 0 : index
    %c0_2 = arith.constant 0 : index
    %1 = vector.load %arg2[%c0_1, %c0_2] : memref<216x4xbf16, #tpu.memory_space<vmem>>, vector<216x4xbf16>
    %cst = arith.constant dense<0.000000e+00> : vector<512x4xf32>
    %2 = tpu.matmul %0, %1, %cst {dimension_numbers = #tpu.dot_dimension_numbers<[1], [0], [0], [1], [0, 0, 1, 1], [], []>} : vector<512x216xbf16>, vector<216x4xbf16>, vector<512x4xf32> -> vector<512x4xf32>
    %c0_3 = arith.constant 0 : index
    %c0_4 = arith.constant 0 : index
    %3 = vector.load %arg3[%c0_3, %c0_4] : memref<512x4xf32, #tpu.memory_space<vmem>>, vector<512x4xf32>
    tpu.vector_store %arg3[%c0_3, %c0_4], %2 {strides = array<i32>} : memref<512x4xf32, #tpu.memory_space<vmem>>, vector<512x4xf32>,
    return
  }
  func.func @transform_0(%arg0: i32) -> (i32, i32) {
    %c0_i32 = arith.constant 0 : i32
    %c0_i32_0 = arith.constant 0 : i32
    return %arg0, %c0_i32 : i32, i32
  }
  func.func @transform_1(%arg0: i32) -> (i32, i32) {
    %c0_i32 = arith.constant 0 : i32
    %c0_i32_0 = arith.constant 0 : i32
    %c0_i32_1 = arith.constant 0 : i32
    return %c0_i32, %c0_i32_0 : i32, i32
  }
  func.func @transform_2(%arg0: i32) -> (i32, i32) {
    %c0_i32 = arith.constant 0 : i32
    %c0_i32_0 = arith.constant 0 : i32
    return %arg0, %c0_i32 : i32, i32
  }
}

module attributes {stable_mosaic.version = 11 : i64} {
  func.func @_mm_proj_add_kernel(%arg0: i32, %arg1: memref<512x108xbf16, #tpu.memory_space<vmem>>, %arg2: memref<108x4xbf16, #tpu.memory_space<vmem>>, %arg3: memref<512x8xbf16, #tpu.memory_space<vmem>>, %arg4: memref<8x4xbf16, #tpu.memory_space<vmem>>, %arg5: memref<512x4xf32, #tpu.memory_space<vmem>>) attributes {dimension_semantics = [#tpu.dimension_semantics<parallel>], iteration_bounds = array<i64: 2>, scalar_prefetch = 0 : i64, scratch_operands = 0 : i64, tpu.core_type = #tpu.core_type<tc>, window_params = [{transform_indices = @transform_0, window_bounds = array<i64: 512, 108>}, {pipeline_mode = #tpu.pipeline_mode<synchronous>, transform_indices = @transform_1, window_bounds = array<i64: 108, 4>}, {transform_indices = @transform_2, window_bounds = array<i64: 512, 8>}, {pipeline_mode = #tpu.pipeline_mode<synchronous>, transform_indices = @transform_3, window_bounds = array<i64: 8, 4>}, {transform_indices = @transform_4, window_bounds = array<i64: 512, 4>}]} {
    %c0 = arith.constant 0 : index
    %c0_0 = arith.constant 0 : index
    %0 = vector.load %arg1[%c0, %c0_0] : memref<512x108xbf16, #tpu.memory_space<vmem>>, vector<512x108xbf16>
    %c0_1 = arith.constant 0 : index
    %c0_2 = arith.constant 0 : index
    %1 = vector.load %arg2[%c0_1, %c0_2] : memref<108x4xbf16, #tpu.memory_space<vmem>>, vector<108x4xbf16>
    %cst = arith.constant dense<0.000000e+00> : vector<512x4xf32>
    %2 = tpu.matmul %0, %1, %cst {dimension_numbers = #tpu.dot_dimension_numbers<[1], [0], [0], [1], [0, 0, 1, 1], [], []>} : vector<512x108xbf16>, vector<108x4xbf16>, vector<512x4xf32> -> vector<512x4xf32>
    %c0_3 = arith.constant 0 : index
    %c0_4 = arith.constant 0 : index
    %3 = vector.load %arg3[%c0_3, %c0_4] : memref<512x8xbf16, #tpu.memory_space<vmem>>, vector<512x8xbf16>
    %c0_5 = arith.constant 0 : index
    %c0_6 = arith.constant 0 : index
    %4 = vector.load %arg4[%c0_5, %c0_6] : memref<8x4xbf16, #tpu.memory_space<vmem>>, vector<8x4xbf16>
    %cst_7 = arith.constant dense<0.000000e+00> : vector<512x4xf32>
    %5 = tpu.matmul %3, %4, %cst_7 {dimension_numbers = #tpu.dot_dimension_numbers<[1], [0], [0], [1], [0, 0, 1, 1], [], []>} : vector<512x8xbf16>, vector<8x4xbf16>, vector<512x4xf32> -> vector<512x4xf32>
    %6 = arith.addf %2, %5 : vector<512x4xf32>
    %c0_8 = arith.constant 0 : index
    %c0_9 = arith.constant 0 : index
    %7 = vector.load %arg5[%c0_8, %c0_9] : memref<512x4xf32, #tpu.memory_space<vmem>>, vector<512x4xf32>
    tpu.vector_store %arg5[%c0_8, %c0_9], %6 {strides = array<i32>} : memref<512x4xf32, #tpu.memory_space<vmem>>, vector<512x4xf32>,
    return
  }
  func.func @transform_0(%arg0: i32) -> (i32, i32) {
    %c0_i32 = arith.constant 0 : i32
    %c0_i32_0 = arith.constant 0 : i32
    return %arg0, %c0_i32 : i32, i32
  }
  func.func @transform_1(%arg0: i32) -> (i32, i32) {
    %c0_i32 = arith.constant 0 : i32
    %c0_i32_0 = arith.constant 0 : i32
    %c0_i32_1 = arith.constant 0 : i32
    return %c0_i32, %c0_i32_0 : i32, i32
  }
  func.func @transform_2(%arg0: i32) -> (i32, i32) {
    %c0_i32 = arith.constant 0 : i32
    %c0_i32_0 = arith.constant 0 : i32
    return %arg0, %c0_i32 : i32, i32
  }
  func.func @transform_3(%arg0: i32) -> (i32, i32) {
    %c0_i32 = arith.constant 0 : i32
    %c0_i32_0 = arith.constant 0 : i32
    %c0_i32_1 = arith.constant 0 : i32
    return %c0_i32, %c0_i32_0 : i32, i32
  }
  func.func @transform_4(%arg0: i32) -> (i32, i32) {
    %c0_i32 = arith.constant 0 : i32
    %c0_i32_0 = arith.constant 0 : i32
    return %arg0, %c0_i32 : i32, i32
  }
}

</mosaic_0001>

<llo_original>
// kernel: _lambda_.14
$region0: #{_lambda_.14}
  #allocation0 [shape = 'u32[]', space=smem, size = 0x4, offset = 0x4, fixed_abs, tag = 'smem constant byte address 0x4 - core index']
  #allocation1 [shape = 'u32[144,128]{1,0:T(1,128)}', space=vmem, size = 0x12000, scoped, tag = 'internal scratch']
  %s0 = inlined_call_operand.vmem [shape: bf16[1024,108], index: 0, kind: input, shape index: {}]
  %s1 = inlined_call_operand.vmem [shape: bf16[108,4], index: 1, kind: input, shape index: {}]
  %s2 = inlined_call_operand.vmem [shape: f32[1024,4], index: 2, kind: output, shape index: {}]
  %s3 = sld [smem:[#allocation0]]
  $region41: #{_lambda_.14} parent=0
    _
  %s5 = ssub.s32 1, %s3
  %s6 = scalar_select 0, %s5, %s3
  loop: start=0, step=1, limit=4
  $region2: #{_lambda_.14} parent=0 // loop_pre_header
    _
  $region3: #{_lambda_.14} parent=0 // loop_header
    %s8 = sphi 0, %s12
    %p9 = scmp.ge.s32.totalorder %s8, 4
    %s18 = sphi 0, %s20
    %s21 = sphi 0, %s18
    %s22 = sphi 0, %s21
    %s38 = sphi 0, %s22
    %s42 = sphi 0, %s42
    %s44 = sphi 0, %s42
    %s45 = sphi 0, %s44
    %s59 = sphi 0, %s45
    %s65 = sphi 0, %s67
    %s68 = sphi 0, %s65
    %s69 = sphi 0, %s68
    %s85 = sphi 0, %s69
  $region4: #{_lambda_.14} parent=0 // loop_header_branch
    %11 = sbr.rel (%p9) target = $region8
  $region5: #{_lambda_.14} parent=0 // loop_body
    %s13 = ssub.s32 %s8, 1
    %s14 = ssub.s32 %s8, 2
    %s15 = sadd.s32 %s8, 1
    %s16 = ssub.s32 %s8, %s15
    %p17 = scmp.eq.s32.totalorder %s16, 0
    %s19 = sadd.s32 %s18, 1
    %s20 = scalar_select %p17, %s18, %s19
    %p23 = pneg %p17
    %p24 = scmp.eq.s32.totalorder %s8, 1
    %p25 = por %p23, %p24
    %p26 = scmp.ne.s32.totalorder %s18, %s21
    %p27 = scmp.eq.s32.totalorder %s8, 0
    %p28 = por %p26, %p27
    %p29 = scmp.ne.s32.totalorder %s18, %s21
    %p30 = scmp.eq.s32.totalorder %s13, 1
    %p31 = por %p29, %p30
    %p32 = scmp.ne.s32.totalorder %s21, %s22
    %p33 = scmp.eq.s32.totalorder %s13, 0
    %p34 = por %p32, %p33
    %p35 = scmp.ne.s32.totalorder %s21, %s22
    %p36 = scmp.eq.s32.totalorder %s14, 1
    %p37 = por %p35, %p36
    %p39 = scmp.ne.s32.totalorder %s22, %s38
    %p40 = scmp.eq.s32.totalorder %s14, 0
    %p41 = por %p39, %p40
    %s43 = sadd.s32 %s42, 1
    %p46 = scmp.eq.s32.totalorder %s8, 1
    %p47 = scmp.ne.s32.totalorder %s42, %s44
    %p48 = scmp.eq.s32.totalorder %s8, 0
    %p49 = por %p47, %p48
    %p50 = scmp.ne.s32.totalorder %s42, %s44
    %p51 = scmp.eq.s32.totalorder %s13, 1
    %p52 = por %p50, %p51
    %p53 = scmp.ne.s32.totalorder %s44, %s45
    %p54 = scmp.eq.s32.totalorder %s13, 0
    %p55 = por %p53, %p54
    %p56 = scmp.ne.s32.totalorder %s44, %s45
    %p57 = scmp.eq.s32.totalorder %s14, 1
    %p58 = por %p56, %p57
    %p60 = scmp.ne.s32.totalorder %s45, %s59
    %p61 = scmp.eq.s32.totalorder %s14, 0
    %p62 = por %p60, %p61
    %s63 = ssub.s32 %s8, %s15
    %p64 = scmp.eq.s32.totalorder %s63, 0
    %s66 = sadd.s32 %s65, 1
    %s67 = scalar_select %p64, %s65, %s66
    %p70 = pneg %p64
    %p71 = scmp.eq.s32.totalorder %s8, 1
    %p72 = por %p70, %p71
    %p73 = scmp.ne.s32.totalorder %s65, %s68
    %p74 = scmp.eq.s32.totalorder %s8, 0
    %p75 = por %p73, %p74
    %p76 = scmp.ne.s32.totalorder %s65, %s68
    %p77 = scmp.eq.s32.totalorder %s13, 1
    %p78 = por %p76, %p77
    %p79 = scmp.ne.s32.totalorder %s68, %s69
    %p80 = scmp.eq.s32.totalorder %s13, 0
    %p81 = por %p79, %p80
    %p82 = scmp.ne.s32.totalorder %s68, %s69
    %p83 = scmp.eq.s32.totalorder %s14, 1
    %p84 = por %p82, %p83
    %p86 = scmp.ne.s32.totalorder %s69, %s85
    %p87 = scmp.eq.s32.totalorder %s14, 0
    %p88 = por %p86, %p87
    %p89 = scmp.le.s32.totalorder 1, %s8
    %p90 = scmp.lt.s32.totalorder %s8, 3
    %p91 = pnand %p89, %p90
    %p92 = pneg %p91
    // Predicated region
    $region9: #{_lambda_.14} parent=5 // pred_check
      _
    $region10: #{_lambda_.14} parent=5 // pred_check_branch
      %94 = sbr.rel (%p91) target = $region12
    $region11: #{_lambda_.14} parent=5 // pred_region
      %s95 = ssub.s32 %s8, 1
      // Predicated region
      $region13: #{_lambda_.14} parent=11 // pred_check
        %p96 = pneg %p55
      $region14: #{_lambda_.14} parent=11 // pred_check_branch
        %98 = sbr.rel (%p96) target = $region16
      $region15: #{_lambda_.14} parent=11 // pred_region
        _
      $region16: #{_lambda_.14} parent=11 // pred_fallthru
        _
    $region12: #{_lambda_.14} parent=5 // pred_fallthru
      _
    %p99 = scmp.lt.s32.totalorder %s8, 2
    // Predicated region
    $region17: #{_lambda_.14} parent=5 // pred_check
      %p100 = pneg %p99
    $region18: #{_lambda_.14} parent=5 // pred_check_branch
      %102 = sbr.rel (%p100) target = $region20
    $region19: #{_lambda_.14} parent=5 // pred_region
      // Predicated region
      $region21: #{_lambda_.14} parent=19 // pred_check
        %p103 = pneg %p28
      $region22: #{_lambda_.14} parent=19 // pred_check_branch
        %105 = sbr.rel (%p103) target = $region24
      $region23: #{_lambda_.14} parent=19 // pred_region
        %s106 = smul.u32 64, %s8
        %p107 = scmp.lt.s32.totalorder %s106, 127
        %s108 = scalar_select %p107, %s106, 127
        %s109 = smul.addr %s108, 4
        %s110 = scalar_lea.vmem %s0, %s109
        %s111 = smul.u32 64, %s8
      $region24: #{_lambda_.14} parent=19 // pred_fallthru
        _
    $region20: #{_lambda_.14} parent=5 // pred_fallthru
      _
    %p112 = scmp.le.s32.totalorder 1, %s8
    %p113 = scmp.lt.s32.totalorder %s8, 3
    %p114 = pnand %p112, %p113
    %p115 = pneg %p114
    // Predicated region
    $region25: #{_lambda_.14} parent=5 // pred_check
      _
    $region26: #{_lambda_.14} parent=5 // pred_check_branch
      %117 = sbr.rel (%p114) target = $region28
    $region27: #{_lambda_.14} parent=5 // pred_region
      %s118 = ssub.s32 %s8, 1
      %s119 = smul.u32 64, %s13
      %p120 = scmp.lt.s32.totalorder %s119, 127
      %s121 = scalar_select %p120, %s119, 127
      %s122 = smul.addr %s121, 4
      %s123 = scalar_lea.vmem %s0, %s122
      %p124 = pneg %p34
      %p125 = pneg %p31
      %p126 = pneg %p55
      %p127 = pneg %p52
      %p128 = pneg %p81
      %p129 = pneg %p78
      %s130 = smul.u32 64, %s13
      %p131 = scmp.lt.s32.totalorder %s130, 127
      %s132 = scalar_select %p131, %s130, 127
      %s133 = smul.addr %s132, 8
      %s134 = scalar_lea.vmem %s2, %s133
      %s135 = smul.u32 64, %s13
      %p136 = scmp.lt.s32.totalorder %s135, 127
      %s137 = scalar_select %p136, %s135, 127
      %s138 = smul.addr %s137, 4
      %s139 = scalar_lea.vmem %s0, %s138
      %s140 = smul.u32 64, %s13
      %s141 = smul.u32 64, %s13
      %p142 = scmp.lt.s32.totalorder %s141, 127
      %s143 = scalar_select %p142, %s141, 127
      %s144 = smul.addr %s143, 8
      %s145 = scalar_lea.vmem %s2, %s144
      %s146 = smul.u32 64, %s13
      %v148 = vld [vmem:[%s139] sm:$0xf]
      %v149 = vld [vmem:[%s139 + $0x4] sm:$0xf]
      %v150 = vld [vmem:[%s139 + $0x8] sm:$0xf]
      %v151 = vld [vmem:[%s139 + $0xc] sm:$0xf]
      %v152 = vld [vmem:[%s139 + $0x10] sm:$0xf]
      %v153 = vld [vmem:[%s139 + $0x14] sm:$0xf]
      %v154 = vld [vmem:[%s139 + $0x18] sm:$0xf]
      %v155 = vld [vmem:[%s139 + $0x1c] sm:$0xf]
      %v156 = vld [vmem:[%s139 + $0x20] sm:$0xf]
      %v157 = vld [vmem:[%s139 + $0x24] sm:$0xf]
      %v158 = vld [vmem:[%s139 + $0x28] sm:$0xf]
      %v159 = vld [vmem:[%s139 + $0x2c] sm:$0xf]
      %v160 = vld [vmem:[%s139 + $0x30] sm:$0xf]
      %v161 = vld [vmem:[%s139 + $0x34] sm:$0xf]
      %v162 = vld [vmem:[%s139 + $0x38] sm:$0xf]
      %v163 = vld [vmem:[%s139 + $0x3c] sm:$0xf]
      %v164 = vld [vmem:[%s139 + $0x40] sm:$0xf]
      %v165 = vld [vmem:[%s139 + $0x44] sm:$0xf]
      %v166 = vld [vmem:[%s139 + $0x48] sm:$0xf]
      %v167 = vld [vmem:[%s139 + $0x4c] sm:$0xf]
      %v168 = vld [vmem:[%s139 + $0x50] sm:$0xf]
      %v169 = vld [vmem:[%s139 + $0x54] sm:$0xf]
      %v170 = vld [vmem:[%s139 + $0x58] sm:$0xf]
      %v171 = vld [vmem:[%s139 + $0x5c] sm:$0xf]
      %v172 = vld [vmem:[%s139 + $0x60] sm:$0xf]
      %v173 = vld [vmem:[%s139 + $0x64] sm:$0xf]
      %v174 = vld [vmem:[%s139 + $0x68] sm:$0xf]
      %v175 = vld [vmem:[%s139 + $0x6c] sm:$0xf]
      %v176 = vld [vmem:[%s139 + $0x70] sm:$0xf]
      %v177 = vld [vmem:[%s139 + $0x74] sm:$0xf]
      %v178 = vld [vmem:[%s139 + $0x78] sm:$0xf]
      %v179 = vld [vmem:[%s139 + $0x7c] sm:$0xf]
      %v180 = vld [vmem:[%s139 + $0x80] sm:$0xf]
      %v181 = vld [vmem:[%s139 + $0x84] sm:$0xf]
      %v182 = vld [vmem:[%s139 + $0x88] sm:$0xf]
      %v183 = vld [vmem:[%s139 + $0x8c] sm:$0xf]
      %v184 = vld [vmem:[%s139 + $0x90] sm:$0xf]
      %v185 = vld [vmem:[%s139 + $0x94] sm:$0xf]
      %v186 = vld [vmem:[%s139 + $0x98] sm:$0xf]
      %v187 = vld [vmem:[%s139 + $0x9c] sm:$0xf]
      %v188 = vld [vmem:[%s139 + $0xa0] sm:$0xf]
      %v189 = vld [vmem:[%s139 + $0xa4] sm:$0xf]
      %v190 = vld [vmem:[%s139 + $0xa8] sm:$0xf]
      %v191 = vld [vmem:[%s139 + $0xac] sm:$0xf]
      %v192 = vld [vmem:[%s139 + $0xb0] sm:$0xf]
      %v193 = vld [vmem:[%s139 + $0xb4] sm:$0xf]
      %v194 = vld [vmem:[%s139 + $0xb8] sm:$0xf]
      %v195 = vld [vmem:[%s139 + $0xbc] sm:$0xf]
      %v196 = vld [vmem:[%s139 + $0xc0] sm:$0xf]
      %v197 = vld [vmem:[%s139 + $0xc4] sm:$0xf]
      %v198 = vld [vmem:[%s139 + $0xc8] sm:$0xf]
      %v199 = vld [vmem:[%s139 + $0xcc] sm:$0xf]
      %v200 = vld [vmem:[%s139 + $0xd0] sm:$0xf]
      %v201 = vld [vmem:[%s139 + $0xd4] sm:$0xf]
      %v202 = vld [vmem:[%s139 + $0xd8] sm:$0xf]
      %v203 = vld [vmem:[%s139 + $0xdc] sm:$0xf]
      %v204 = vld [vmem:[%s139 + $0xe0] sm:$0xf]
      %v205 = vld [vmem:[%s139 + $0xe4] sm:$0xf]
      %v206 = vld [vmem:[%s139 + $0xe8] sm:$0xf]
      %v207 = vld [vmem:[%s139 + $0xec] sm:$0xf]
      %v208 = vld [vmem:[%s139 + $0xf0] sm:$0xf]
      %v209 = vld [vmem:[%s139 + $0xf4] sm:$0xf]
      %v210 = vld [vmem:[%s139 + $0xf8] sm:$0xf]
      %v211 = vld [vmem:[%s139 + $0xfc] sm:$0xf]
      %v212 = vld [vmem:[%s1] sm:$0xf]
      %v213 = vld [vmem:[%s1 + $0x4] sm:$0xf]
      %v214 = vld [vmem:[%s1 + $0x8] sm:$0xf]
      %v215 = vld [vmem:[%s1 + $0xc] sm:$0xf]
      %v216 = vld [vmem:[%s1 + $0x10] sm:$0xf]
      %v217 = vld [vmem:[%s1 + $0x14] sm:$0xf]
      %v218 = vld [vmem:[%s1 + $0x18] sm:$0xf]
      %v219 = vld [vmem:[%s1 + $0x1c] sm:$0xf]
      %v220 = vld [vmem:[%s1 + $0x20] sm:$0xf]
      %v221 = vld [vmem:[%s1 + $0x24] sm:$0xf]
      %v222 = vld [vmem:[%s1 + $0x28] sm:$0xf]
      %v223 = vld [vmem:[%s1 + $0x2c] sm:$0xf]
      %v224 = vld [vmem:[%s1 + $0x30] sm:$0xf]
      %v225 = vld [vmem:[%s1 + $0x34] sm:$0x3]
      %v290 = vunpack.c.l.b16 %v148
      %v291 = vunpack.c.l.b16 %v149
      %v292 = vunpack.c.l.b16 %v150
      %v293 = vunpack.c.l.b16 %v151
      %v294 = vunpack.c.l.b16 %v152
      %v295 = vunpack.c.l.b16 %v153
      %v296 = vunpack.c.l.b16 %v154
      %v297 = vunpack.c.l.b16 %v155
      %v298 = vunpack.c.l.b16 %v156
      %v299 = vunpack.c.l.b16 %v157
      %v300 = vunpack.c.l.b16 %v158
      %v301 = vunpack.c.l.b16 %v159
      %v302 = vunpack.c.l.b16 %v160
      %v303 = vunpack.c.l.b16 %v161
      %v304 = vunpack.c.l.b16 %v162
      %v305 = vunpack.c.l.b16 %v163
      %v306 = vunpack.c.l.b16 %v164
      %v307 = vunpack.c.l.b16 %v165
      %v308 = vunpack.c.l.b16 %v166
      %v309 = vunpack.c.l.b16 %v167
      %v310 = vunpack.c.l.b16 %v168
      %v311 = vunpack.c.l.b16 %v169
      %v312 = vunpack.c.l.b16 %v170
      %v313 = vunpack.c.l.b16 %v171
      %v314 = vunpack.c.l.b16 %v172
      %v315 = vunpack.c.l.b16 %v173
      %v316 = vunpack.c.l.b16 %v174
      %v317 = vunpack.c.l.b16 %v175
      %v318 = vunpack.c.l.b16 %v176
      %v319 = vunpack.c.l.b16 %v177
      %v320 = vunpack.c.l.b16 %v178
      %v321 = vunpack.c.l.b16 %v179
      %v322 = vunpack.c.l.b16 %v180
      %v323 = vunpack.c.l.b16 %v181
      %v324 = vunpack.c.l.b16 %v182
      %v325 = vunpack.c.l.b16 %v183
      %v326 = vunpack.c.l.b16 %v184
      %v327 = vunpack.c.l.b16 %v185
      %v328 = vunpack.c.l.b16 %v186
      %v329 = vunpack.c.l.b16 %v187
      %v330 = vunpack.c.l.b16 %v188
      %v331 = vunpack.c.l.b16 %v189
      %v332 = vunpack.c.l.b16 %v190
      %v333 = vunpack.c.l.b16 %v191
      %v334 = vunpack.c.l.b16 %v192
      %v335 = vunpack.c.l.b16 %v193
      %v336 = vunpack.c.l.b16 %v194
      %v337 = vunpack.c.l.b16 %v195
      %v338 = vunpack.c.l.b16 %v196
      %v339 = vunpack.c.l.b16 %v197
      %v340 = vunpack.c.l.b16 %v198
      %v341 = vunpack.c.l.b16 %v199
      %v342 = vunpack.c.l.b16 %v200
      %v343 = vunpack.c.l.b16 %v201
      %v344 = vunpack.c.l.b16 %v202
      %v345 = vunpack.c.l.b16 %v203
      %v346 = vunpack.c.l.b16 %v204
      %v347 = vunpack.c.l.b16 %v205
      %v348 = vunpack.c.l.b16 %v206
      %v349 = vunpack.c.l.b16 %v207
      %v350 = vunpack.c.l.b16 %v208
      %v351 = vunpack.c.l.b16 %v209
      %v352 = vunpack.c.l.b16 %v210
      %v353 = vunpack.c.l.b16 %v211
      %v354 = vpack.c.b16 %v291, %v290
      %v355 = vpack.c.b16 %v293, %v292
      %v356 = vpack.c.b16 %v295, %v294
      %v357 = vpack.c.b16 %v297, %v296
      %v358 = vpack.c.b16 %v299, %v298
      %v359 = vpack.c.b16 %v301, %v300
      %v360 = vpack.c.b16 %v303, %v302
      %v361 = vpack.c.b16 %v305, %v304
      %v362 = vpack.c.b16 %v307, %v306
      %v363 = vpack.c.b16 %v309, %v308
      %v364 = vpack.c.b16 %v311, %v310
      %v365 = vpack.c.b16 %v313, %v312
      %v366 = vpack.c.b16 %v315, %v314
      %v367 = vpack.c.b16 %v317, %v316
      %v368 = vpack.c.b16 %v319, %v318
      %v369 = vpack.c.b16 %v321, %v320
      %v370 = vpack.c.b16 %v323, %v322
      %v371 = vpack.c.b16 %v325, %v324
      %v372 = vpack.c.b16 %v327, %v326
      %v373 = vpack.c.b16 %v329, %v328
      %v374 = vpack.c.b16 %v331, %v330
      %v375 = vpack.c.b16 %v333, %v332
      %v376 = vpack.c.b16 %v335, %v334
      %v377 = vpack.c.b16 %v337, %v336
      %v378 = vpack.c.b16 %v339, %v338
      %v379 = vpack.c.b16 %v341, %v340
      %v380 = vpack.c.b16 %v343, %v342
      %v381 = vpack.c.b16 %v345, %v344
      %v382 = vpack.c.b16 %v347, %v346
      %v383 = vpack.c.b16 %v349, %v348
      %v384 = vpack.c.b16 %v351, %v350
      %v385 = vpack.c.b16 %v353, %v352
      %v400 = vunpack.c.l.b16 %v212
      %v401 = vunpack.c.l.b16 %v213
      %v402 = vunpack.c.l.b16 %v214
      %v403 = vunpack.c.l.b16 %v215
      %v404 = vunpack.c.l.b16 %v216
      %v405 = vunpack.c.l.b16 %v217
      %v406 = vunpack.c.l.b16 %v218
      %v407 = vunpack.c.l.b16 %v219
      %v408 = vunpack.c.l.b16 %v220
      %v409 = vunpack.c.l.b16 %v221
      %v410 = vunpack.c.l.b16 %v222
      %v411 = vunpack.c.l.b16 %v223
      %v412 = vunpack.c.l.b16 %v224
      %v413 = vunpack.c.l.b16 %v225
      %v414 = vpack.c.b16 %v401, %v400
      %v415 = vpack.c.b16 %v403, %v402
      %v416 = vpack.c.b16 %v405, %v404
      %v417 = vpack.c.b16 %v407, %v406
      %v418 = vpack.c.b16 %v409, %v408
      %v419 = vpack.c.b16 %v411, %v410
      %v420 = vpack.c.b16 %v413, %v412
      %vm427 = vcmask 883712
      %v429 = vsel %vm427, %v354, 0
      %v432 = vsel %vm427, %v355, 0
      %v435 = vsel %vm427, %v356, 0
      %v438 = vsel %vm427, %v357, 0
      %v441 = vsel %vm427, %v358, 0
      %v444 = vsel %vm427, %v359, 0
      %v447 = vsel %vm427, %v360, 0
      %v450 = vsel %vm427, %v361, 0
      %v453 = vsel %vm427, %v362, 0
      %v456 = vsel %vm427, %v363, 0
      %v459 = vsel %vm427, %v364, 0
      %v462 = vsel %vm427, %v365, 0
      %v465 = vsel %vm427, %v366, 0
      %v468 = vsel %vm427, %v367, 0
      %v471 = vsel %vm427, %v368, 0
      %v474 = vsel %vm427, %v369, 0
      %v477 = vsel %vm427, %v370, 0
      %v480 = vsel %vm427, %v371, 0
      %v483 = vsel %vm427, %v372, 0
      %v486 = vsel %vm427, %v373, 0
      %v489 = vsel %vm427, %v374, 0
      %v492 = vsel %vm427, %v375, 0
      %v495 = vsel %vm427, %v376, 0
      %v498 = vsel %vm427, %v377, 0
      %v501 = vsel %vm427, %v378, 0
      %v504 = vsel %vm427, %v379, 0
      %v507 = vsel %vm427, %v380, 0
      %v510 = vsel %vm427, %v381, 0
      %v513 = vsel %vm427, %v382, 0
      %v516 = vsel %vm427, %v383, 0
      %v519 = vsel %vm427, %v384, 0
      %v522 = vsel %vm427, %v385, 0
      %vm524 = vcmask 1045504
      %v526 = vsel %vm524, %v420, 0
      %528 = vmatprep.subr.bf16.mxu0 0
      %529 = vmatpush1.bf16.msra.mxu0 %v414
      %530 = vmatprep.subr.bf16.mxu0 0
      %531 = vmatpush1.bf16.msra.mxu0 %v415
      %532 = vmatprep.subr.bf16.mxu0 0
      %533 = vmatpush1.bf16.msra.mxu0 %v416
      %534 = vmatprep.subr.bf16.mxu0 0
      %535 = vmatpush1.bf16.msra.mxu0 %v417
      %536 = vmatprep.subr.bf16.mxu0 0
      %537 = vmatpush1.bf16.msra.mxu0 %v418
      %538 = vmatprep.subr.bf16.mxu0 0
      %539 = vmatpush1.bf16.msra.mxu0 %v419
      %540 = vmatprep.subr.bf16.mxu0 0
      %541 = vmatpush1.bf16.msra.mxu0 %v526
      %542 = vmatprep.subr.bf16.mxu0 0
      %543 = vmatpush1.bf16.msra.mxu0 0
      %544 = vmatprep.subr.bf16.mxu0 0
      %545 = vmatpush1.bf16.msra.mxu0 0
      %546 = vmatprep.subr.bf16.mxu0 0
      %547 = vmatpush1.bf16.msra.mxu0 0
      %548 = vmatprep.subr.bf16.mxu0 0
      %549 = vmatpush1.bf16.msra.mxu0 0
      %550 = vmatprep.subr.bf16.mxu0 0
      %551 = vmatpush1.bf16.msra.mxu0 0
      %552 = vmatprep.subr.bf16.mxu0 0
      %553 = vmatpush1.bf16.msra.mxu0 0
      %554 = vmatprep.subr.bf16.mxu0 0
      %555 = vmatpush1.bf16.msra.mxu0 0
      %556 = vmatprep.subr.bf16.mxu0 0
      %557 = vmatpush1.bf16.msra.mxu0 0
      %558 = vmatprep.subr.bf16.mxu0 0
      %559 = vmatpush1.bf16.msra.mxu0 0
      %560 = vmatprep.mubr.bf16.mxu0 0
      %561 = vmatmul.mubr.bf16.gmra.mrb[0].mxu0 %v429
      %v562 = vpop.f32.mrb[0].mxu0
      %v563 = vadd.f32 0.0, %v562
      %v564 = vpop.f32.mrb[0].mxu0
      %v565 = vpop.f32.mrb[0].mxu0
      %v566 = vadd.f32 0.0, %v565
      %v567 = vpop.f32.mrb[0].mxu0
      %568 = vmatprep.mubr.bf16.mxu0 0
      %569 = vmatmul.mubr.bf16.gmra.mrb[0].mxu0 %v432
      %v570 = vpop.f32.mrb[0].mxu0
      %v571 = vadd.f32 0.0, %v570
      %v572 = vpop.f32.mrb[0].mxu0
      %v573 = vpop.f32.mrb[0].mxu0
      %v574 = vadd.f32 0.0, %v573
      %v575 = vpop.f32.mrb[0].mxu0
      %576 = vmatprep.mubr.bf16.mxu0 0
      %577 = vmatmul.mubr.bf16.gmra.mrb[0].mxu0 %v435
      %v578 = vpop.f32.mrb[0].mxu0
      %v579 = vadd.f32 0.0, %v578
      %v580 = vpop.f32.mrb[0].mxu0
      %v581 = vpop.f32.mrb[0].mxu0
      %v582 = vadd.f32 0.0, %v581
      %v583 = vpop.f32.mrb[0].mxu0
      %584 = vmatprep.mubr.bf16.mxu0 0
      %585 = vmatmul.mubr.bf16.gmra.mrb[0].mxu0 %v438
      %v586 = vpop.f32.mrb[0].mxu0
      %v587 = vadd.f32 0.0, %v586
      %v588 = vpop.f32.mrb[0].mxu0
      %v589 = vpop.f32.mrb[0].mxu0
      %v590 = vadd.f32 0.0, %v589
      %v591 = vpop.f32.mrb[0].mxu0
      %592 = vmatprep.mubr.bf16.mxu0 0
      %593 = vmatmul.mubr.bf16.gmra.mrb[0].mxu0 %v441
      %v594 = vpop.f32.mrb[0].mxu0
      %v595 = vadd.f32 0.0, %v594
      %v596 = vpop.f32.mrb[0].mxu0
      %v597 = vpop.f32.mrb[0].mxu0
      %v598 = vadd.f32 0.0, %v597
      %v599 = vpop.f32.mrb[0].mxu0
      %600 = vmatprep.mubr.bf16.mxu0 0
      %601 = vmatmul.mubr.bf16.gmra.mrb[0].mxu0 %v444
      %v602 = vpop.f32.mrb[0].mxu0
      %v603 = vadd.f32 0.0, %v602
      %v604 = vpop.f32.mrb[0].mxu0
      %v605 = vpop.f32.mrb[0].mxu0
      %v606 = vadd.f32 0.0, %v605
      %v607 = vpop.f32.mrb[0].mxu0
      %608 = vmatprep.mubr.bf16.mxu0 0
      %609 = vmatmul.mubr.bf16.gmra.mrb[0].mxu0 %v447
      %v610 = vpop.f32.mrb[0].mxu0
      %v611 = vadd.f32 0.0, %v610
      %v612 = vpop.f32.mrb[0].mxu0
      %v613 = vpop.f32.mrb[0].mxu0
      %v614 = vadd.f32 0.0, %v613
      %v615 = vpop.f32.mrb[0].mxu0
      %616 = vmatprep.mubr.bf16.mxu0 0
      %617 = vmatmul.mubr.bf16.gmra.mrb[0].mxu0 %v450
      %v618 = vpop.f32.mrb[0].mxu0
      %v619 = vadd.f32 0.0, %v618
      %v620 = vpop.f32.mrb[0].mxu0
      %v621 = vpop.f32.mrb[0].mxu0
      %v622 = vadd.f32 0.0, %v621
      %v623 = vpop.f32.mrb[0].mxu0
      %624 = vmatprep.mubr.bf16.mxu0 0
      %625 = vmatmul.mubr.bf16.gmra.mrb[0].mxu0 %v453
      %v626 = vpop.f32.mrb[0].mxu0
      %v627 = vadd.f32 0.0, %v626
      %v628 = vpop.f32.mrb[0].mxu0
      %v629 = vpop.f32.mrb[0].mxu0
      %v630 = vadd.f32 0.0, %v629
      %v631 = vpop.f32.mrb[0].mxu0
      %632 = vmatprep.mubr.bf16.mxu0 0
      %633 = vmatmul.mubr.bf16.gmra.mrb[0].mxu0 %v456
      %v634 = vpop.f32.mrb[0].mxu0
      %v635 = vadd.f32 0.0, %v634
      %v636 = vpop.f32.mrb[0].mxu0
      %v637 = vpop.f32.mrb[0].mxu0
      %v638 = vadd.f32 0.0, %v637
      %v639 = vpop.f32.mrb[0].mxu0
      %640 = vmatprep.mubr.bf16.mxu0 0
      %641 = vmatmul.mubr.bf16.gmra.mrb[0].mxu0 %v459
      %v642 = vpop.f32.mrb[0].mxu0
      %v643 = vadd.f32 0.0, %v642
      %v644 = vpop.f32.mrb[0].mxu0
      %v645 = vpop.f32.mrb[0].mxu0
      %v646 = vadd.f32 0.0, %v645
      %v647 = vpop.f32.mrb[0].mxu0
      %648 = vmatprep.mubr.bf16.mxu0 0
      %649 = vmatmul.mubr.bf16.gmra.mrb[0].mxu0 %v462
      %v650 = vpop.f32.mrb[0].mxu0
      %v651 = vadd.f32 0.0, %v650
      %v652 = vpop.f32.mrb[0].mxu0
      %v653 = vpop.f32.mrb[0].mxu0
      %v654 = vadd.f32 0.0, %v653
      %v655 = vpop.f32.mrb[0].mxu0
      %656 = vmatprep.mubr.bf16.mxu0 0
      %657 = vmatmul.mubr.bf16.gmra.mrb[0].mxu0 %v465
      %v658 = vpop.f32.mrb[0].mxu0
      %v659 = vadd.f32 0.0, %v658
      %v660 = vpop.f32.mrb[0].mxu0
      %v661 = vpop.f32.mrb[0].mxu0
      %v662 = vadd.f32 0.0, %v661
      %v663 = vpop.f32.mrb[0].mxu0
      %664 = vmatprep.mubr.bf16.mxu0 0
      %665 = vmatmul.mubr.bf16.gmra.mrb[0].mxu0 %v468
      %v666 = vpop.f32.mrb[0].mxu0
      %v667 = vadd.f32 0.0, %v666
      %v668 = vpop.f32.mrb[0].mxu0
      %v669 = vpop.f32.mrb[0].mxu0
      %v670 = vadd.f32 0.0, %v669
      %v671 = vpop.f32.mrb[0].mxu0
      %672 = vmatprep.mubr.bf16.mxu0 0
      %673 = vmatmul.mubr.bf16.gmra.mrb[0].mxu0 %v471
      %v674 = vpop.f32.mrb[0].mxu0
      %v675 = vadd.f32 0.0, %v674
      %v676 = vpop.f32.mrb[0].mxu0
      %v677 = vpop.f32.mrb[0].mxu0
      %v678 = vadd.f32 0.0, %v677
      %v679 = vpop.f32.mrb[0].mxu0
      %680 = vmatprep.mubr.bf16.mxu0 0
      %681 = vmatmul.mubr.bf16.gmra.mrb[0].mxu0 %v474
      %v682 = vpop.f32.mrb[0].mxu0
      %v683 = vadd.f32 0.0, %v682
      %v684 = vpop.f32.mrb[0].mxu0
      %v685 = vpop.f32.mrb[0].mxu0
      %v686 = vadd.f32 0.0, %v685
      %v687 = vpop.f32.mrb[0].mxu0
      %688 = vmatprep.mubr.bf16.mxu0 0
      %689 = vmatmul.mubr.bf16.gmra.mrb[0].mxu0 %v477
      %v690 = vpop.f32.mrb[0].mxu0
      %v691 = vadd.f32 0.0, %v690
      %v692 = vpop.f32.mrb[0].mxu0
      %v693 = vpop.f32.mrb[0].mxu0
      %v694 = vadd.f32 0.0, %v693
      %v695 = vpop.f32.mrb[0].mxu0
      %696 = vmatprep.mubr.bf16.mxu0 0
      %697 = vmatmul.mubr.bf16.gmra.mrb[0].mxu0 %v480
      %v698 = vpop.f32.mrb[0].mxu0
      %v699 = vadd.f32 0.0, %v698
      %v700 = vpop.f32.mrb[0].mxu0
      %v701 = vpop.f32.mrb[0].mxu0
      %v702 = vadd.f32 0.0, %v701
      %v703 = vpop.f32.mrb[0].mxu0
      %704 = vmatprep.mubr.bf16.mxu0 0
      %705 = vmatmul.mubr.bf16.gmra.mrb[0].mxu0 %v483
      %v706 = vpop.f32.mrb[0].mxu0
      %v707 = vadd.f32 0.0, %v706
      %v708 = vpop.f32.mrb[0].mxu0
      %v709 = vpop.f32.mrb[0].mxu0
      %v710 = vadd.f32 0.0, %v709
      %v711 = vpop.f32.mrb[0].mxu0
      %712 = vmatprep.mubr.bf16.mxu0 0
      %713 = vmatmul.mubr.bf16.gmra.mrb[0].mxu0 %v486
      %v714 = vpop.f32.mrb[0].mxu0
      %v715 = vadd.f32 0.0, %v714
      %v716 = vpop.f32.mrb[0].mxu0
      %v717 = vpop.f32.mrb[0].mxu0
      %v718 = vadd.f32 0.0, %v717
      %v719 = vpop.f32.mrb[0].mxu0
      %720 = vmatprep.mubr.bf16.mxu0 0
      %721 = vmatmul.mubr.bf16.gmra.mrb[0].mxu0 %v489
      %v722 = vpop.f32.mrb[0].mxu0
      %v723 = vadd.f32 0.0, %v722
      %v724 = vpop.f32.mrb[0].mxu0
      %v725 = vpop.f32.mrb[0].mxu0
      %v726 = vadd.f32 0.0, %v725
      %v727 = vpop.f32.mrb[0].mxu0
      %728 = vmatprep.mubr.bf16.mxu0 0
      %729 = vmatmul.mubr.bf16.gmra.mrb[0].mxu0 %v492
      %v730 = vpop.f32.mrb[0].mxu0
      %v731 = vadd.f32 0.0, %v730
      %v732 = vpop.f32.mrb[0].mxu0
      %v733 = vpop.f32.mrb[0].mxu0
      %v734 = vadd.f32 0.0, %v733
      %v735 = vpop.f32.mrb[0].mxu0
      %736 = vmatprep.mubr.bf16.mxu0 0
      %737 = vmatmul.mubr.bf16.gmra.mrb[0].mxu0 %v495
      %v738 = vpop.f32.mrb[0].mxu0
      %v739 = vadd.f32 0.0, %v738
      %v740 = vpop.f32.mrb[0].mxu0
      %v741 = vpop.f32.mrb[0].mxu0
      %v742 = vadd.f32 0.0, %v741
      %v743 = vpop.f32.mrb[0].mxu0
      %744 = vmatprep.mubr.bf16.mxu0 0
      %745 = vmatmul.mubr.bf16.gmra.mrb[0].mxu0 %v498
      %v746 = vpop.f32.mrb[0].mxu0
      %v747 = vadd.f32 0.0, %v746
      %v748 = vpop.f32.mrb[0].mxu0
      %v749 = vpop.f32.mrb[0].mxu0
      %v750 = vadd.f32 0.0, %v749
      %v751 = vpop.f32.mrb[0].mxu0
      %752 = vmatprep.mubr.bf16.mxu0 0
      %753 = vmatmul.mubr.bf16.gmra.mrb[0].mxu0 %v501
      %v754 = vpop.f32.mrb[0].mxu0
      %v755 = vadd.f32 0.0, %v754
      %v756 = vpop.f32.mrb[0].mxu0
      %v757 = vpop.f32.mrb[0].mxu0
      %v758 = vadd.f32 0.0, %v757
      %v759 = vpop.f32.mrb[0].mxu0
      %760 = vmatprep.mubr.bf16.mxu0 0
      %761 = vmatmul.mubr.bf16.gmra.mrb[0].mxu0 %v504
      %v762 = vpop.f32.mrb[0].mxu0
      %v763 = vadd.f32 0.0, %v762
      %v764 = vpop.f32.mrb[0].mxu0
      %v765 = vpop.f32.mrb[0].mxu0
      %v766 = vadd.f32 0.0, %v765
      %v767 = vpop.f32.mrb[0].mxu0
      %768 = vmatprep.mubr.bf16.mxu0 0
      %769 = vmatmul.mubr.bf16.gmra.mrb[0].mxu0 %v507
      %v770 = vpop.f32.mrb[0].mxu0
      %v771 = vadd.f32 0.0, %v770
      %v772 = vpop.f32.mrb[0].mxu0
      %v773 = vpop.f32.mrb[0].mxu0
      %v774 = vadd.f32 0.0, %v773
      %v775 = vpop.f32.mrb[0].mxu0
      %776 = vmatprep.mubr.bf16.mxu0 0
      %777 = vmatmul.mubr.bf16.gmra.mrb[0].mxu0 %v510
      %v778 = vpop.f32.mrb[0].mxu0
      %v779 = vadd.f32 0.0, %v778
      %v780 = vpop.f32.mrb[0].mxu0
      %v781 = vpop.f32.mrb[0].mxu0
      %v782 = vadd.f32 0.0, %v781
      %v783 = vpop.f32.mrb[0].mxu0
      %784 = vmatprep.mubr.bf16.mxu0 0
      %785 = vmatmul.mubr.bf16.gmra.mrb[0].mxu0 %v513
      %v786 = vpop.f32.mrb[0].mxu0
      %v787 = vadd.f32 0.0, %v786
      %v788 = vpop.f32.mrb[0].mxu0
      %v789 = vpop.f32.mrb[0].mxu0
      %v790 = vadd.f32 0.0, %v789
      %v791 = vpop.f32.mrb[0].mxu0
      %792 = vmatprep.mubr.bf16.mxu0 0
      %793 = vmatmul.mubr.bf16.gmra.mrb[0].mxu0 %v516
      %v794 = vpop.f32.mrb[0].mxu0
      %v795 = vadd.f32 0.0, %v794
      %v796 = vpop.f32.mrb[0].mxu0
      %v797 = vpop.f32.mrb[0].mxu0
      %v798 = vadd.f32 0.0, %v797
      %v799 = vpop.f32.mrb[0].mxu0
      %800 = vmatprep.mubr.bf16.mxu0 0
      %801 = vmatmul.mubr.bf16.gmra.mrb[0].mxu0 %v519
      %v802 = vpop.f32.mrb[0].mxu0
      %v803 = vadd.f32 0.0, %v802
      %v804 = vpop.f32.mrb[0].mxu0
      %v805 = vpop.f32.mrb[0].mxu0
      %v806 = vadd.f32 0.0, %v805
      %v807 = vpop.f32.mrb[0].mxu0
      %808 = vmatprep.mubr.bf16.mxu0 0
      %809 = vmatmul.mubr.bf16.gmra.mrb[0].mxu0 %v522
      %v810 = vpop.f32.mrb[0].mxu0
      %v811 = vadd.f32 0.0, %v810
      %v812 = vpop.f32.mrb[0].mxu0
      %v813 = vpop.f32.mrb[0].mxu0
      %v814 = vadd.f32 0.0, %v813
      %v815 = vpop.f32.mrb[0].mxu0
      %816 = vdwg.mxu0
      %vm817 = vcmask 31744
      %818 = vst.msk [vmem:[%s145] sm:$0xff] %vm817, %v563
      %819 = vst.msk [vmem:[%s145 + $0x8] sm:$0xff] %vm817, %v566
      %820 = vst.msk [vmem:[%s145 + $0x10] sm:$0xff] %vm817, %v571
      %821 = vst.msk [vmem:[%s145 + $0x18] sm:$0xff] %vm817, %v574
      %822 = vst.msk [vmem:[%s145 + $0x20] sm:$0xff] %vm817, %v579
      %823 = vst.msk [vmem:[%s145 + $0x28] sm:$0xff] %vm817, %v582
      %824 = vst.msk [vmem:[%s145 + $0x30] sm:$0xff] %vm817, %v587
      %825 = vst.msk [vmem:[%s145 + $0x38] sm:$0xff] %vm817, %v590
      %826 = vst.msk [vmem:[%s145 + $0x40] sm:$0xff] %vm817, %v595
      %827 = vst.msk [vmem:[%s145 + $0x48] sm:$0xff] %vm817, %v598
      %828 = vst.msk [vmem:[%s145 + $0x50] sm:$0xff] %vm817, %v603
      %829 = vst.msk [vmem:[%s145 + $0x58] sm:$0xff] %vm817, %v606
      %830 = vst.msk [vmem:[%s145 + $0x60] sm:$0xff] %vm817, %v611
      %831 = vst.msk [vmem:[%s145 + $0x68] sm:$0xff] %vm817, %v614
      %832 = vst.msk [vmem:[%s145 + $0x70] sm:$0xff] %vm817, %v619
      %833 = vst.msk [vmem:[%s145 + $0x78] sm:$0xff] %vm817, %v622
      %834 = vst.msk [vmem:[%s145 + $0x80] sm:$0xff] %vm817, %v627
      %835 = vst.msk [vmem:[%s145 + $0x88] sm:$0xff] %vm817, %v630
      %836 = vst.msk [vmem:[%s145 + $0x90] sm:$0xff] %vm817, %v635
      %837 = vst.msk [vmem:[%s145 + $0x98] sm:$0xff] %vm817, %v638
      %838 = vst.msk [vmem:[%s145 + $0xa0] sm:$0xff] %vm817, %v643
      %839 = vst.msk [vmem:[%s145 + $0xa8] sm:$0xff] %vm817, %v646
      %840 = vst.msk [vmem:[%s145 + $0xb0] sm:$0xff] %vm817, %v651
      %841 = vst.msk [vmem:[%s145 + $0xb8] sm:$0xff] %vm817, %v654
      %842 = vst.msk [vmem:[%s145 + $0xc0] sm:$0xff] %vm817, %v659
      %843 = vst.msk [vmem:[%s145 + $0xc8] sm:$0xff] %vm817, %v662
      %844 = vst.msk [vmem:[%s145 + $0xd0] sm:$0xff] %vm817, %v667
      %845 = vst.msk [vmem:[%s145 + $0xd8] sm:$0xff] %vm817, %v670
      %846 = vst.msk [vmem:[%s145 + $0xe0] sm:$0xff] %vm817, %v675
      %847 = vst.msk [vmem:[%s145 + $0xe8] sm:$0xff] %vm817, %v678
      %848 = vst.msk [vmem:[%s145 + $0xf0] sm:$0xff] %vm817, %v683
      %849 = vst.msk [vmem:[%s145 + $0xf8] sm:$0xff] %vm817, %v686
      %850 = vst.msk [vmem:[%s145 + $0x100] sm:$0xff] %vm817, %v691
      %851 = vst.msk [vmem:[%s145 + $0x108] sm:$0xff] %vm817, %v694
      %852 = vst.msk [vmem:[%s145 + $0x110] sm:$0xff] %vm817, %v699
      %853 = vst.msk [vmem:[%s145 + $0x118] sm:$0xff] %vm817, %v702
      %854 = vst.msk [vmem:[%s145 + $0x120] sm:$0xff] %vm817, %v707
      %855 = vst.msk [vmem:[%s145 + $0x128] sm:$0xff] %vm817, %v710
      %856 = vst.msk [vmem:[%s145 + $0x130] sm:$0xff] %vm817, %v715
      %857 = vst.msk [vmem:[%s145 + $0x138] sm:$0xff] %vm817, %v718
      %858 = vst.msk [vmem:[%s145 + $0x140] sm:$0xff] %vm817, %v723
      %859 = vst.msk [vmem:[%s145 + $0x148] sm:$0xff] %vm817, %v726
      %860 = vst.msk [vmem:[%s145 + $0x150] sm:$0xff] %vm817, %v731
      %861 = vst.msk [vmem:[%s145 + $0x158] sm:$0xff] %vm817, %v734
      %862 = vst.msk [vmem:[%s145 + $0x160] sm:$0xff] %vm817, %v739
      %863 = vst.msk [vmem:[%s145 + $0x168] sm:$0xff] %vm817, %v742
      %864 = vst.msk [vmem:[%s145 + $0x170] sm:$0xff] %vm817, %v747
      %865 = vst.msk [vmem:[%s145 + $0x178] sm:$0xff] %vm817, %v750
      %866 = vst.msk [vmem:[%s145 + $0x180] sm:$0xff] %vm817, %v755
      %867 = vst.msk [vmem:[%s145 + $0x188] sm:$0xff] %vm817, %v758
      %868 = vst.msk [vmem:[%s145 + $0x190] sm:$0xff] %vm817, %v763
      %869 = vst.msk [vmem:[%s145 + $0x198] sm:$0xff] %vm817, %v766
      %870 = vst.msk [vmem:[%s145 + $0x1a0] sm:$0xff] %vm817, %v771
      %871 = vst.msk [vmem:[%s145 + $0x1a8] sm:$0xff] %vm817, %v774
      %872 = vst.msk [vmem:[%s145 + $0x1b0] sm:$0xff] %vm817, %v779
      %873 = vst.msk [vmem:[%s145 + $0x1b8] sm:$0xff] %vm817, %v782
      %874 = vst.msk [vmem:[%s145 + $0x1c0] sm:$0xff] %vm817, %v787
      %875 = vst.msk [vmem:[%s145 + $0x1c8] sm:$0xff] %vm817, %v790
      %876 = vst.msk [vmem:[%s145 + $0x1d0] sm:$0xff] %vm817, %v795
      %877 = vst.msk [vmem:[%s145 + $0x1d8] sm:$0xff] %vm817, %v798
      %878 = vst.msk [vmem:[%s145 + $0x1e0] sm:$0xff] %vm817, %v803
      %879 = vst.msk [vmem:[%s145 + $0x1e8] sm:$0xff] %vm817, %v806
      %880 = vst.msk [vmem:[%s145 + $0x1f0] sm:$0xff] %vm817, %v811
      %881 = vst.msk [vmem:[%s145 + $0x1f8] sm:$0xff] %vm817, %v814
      %s882 = smul.u32 64, %s13
      %p883 = scmp.lt.s32.totalorder %s882, 127
      %s884 = scalar_select %p883, %s882, 127
      %s885 = smul.addr %s884, 8
      %s886 = scalar_lea.vmem %s2, %s885
      // Predicated region
      $region29: #{_lambda_.14} parent=27 // pred_check
        %p887 = pneg %p78
      $region30: #{_lambda_.14} parent=27 // pred_check_branch
        %889 = sbr.rel (%p887) target = $region32
      $region31: #{_lambda_.14} parent=27 // pred_region
        %s890 = smul.u32 64, %s13
      $region32: #{_lambda_.14} parent=27 // pred_fallthru
        _
    $region28: #{_lambda_.14} parent=5 // pred_fallthru
      _
    %p891 = scmp.le.s32.totalorder 2, %s8
    // Predicated region
    $region33: #{_lambda_.14} parent=5 // pred_check
      %p892 = pneg %p891
    $region34: #{_lambda_.14} parent=5 // pred_check_branch
      %894 = sbr.rel (%p892) target = $region36
    $region35: #{_lambda_.14} parent=5 // pred_region
      %s895 = ssub.s32 %s8, 2
      // Predicated region
      $region37: #{_lambda_.14} parent=35 // pred_check
        %p896 = pneg %p84
      $region38: #{_lambda_.14} parent=35 // pred_check_branch
        %898 = sbr.rel (%p896) target = $region40
      $region39: #{_lambda_.14} parent=35 // pred_region
        %s899 = smul.u32 64, %s14
        %p900 = scmp.lt.s32.totalorder %s899, 127
        %s901 = scalar_select %p900, %s899, 127
        %s902 = smul.addr %s901, 8
        %s903 = scalar_lea.vmem %s2, %s902
      $region40: #{_lambda_.14} parent=35 // pred_fallthru
        _
    $region36: #{_lambda_.14} parent=5 // pred_fallthru
      _
  $region6: #{_lambda_.14} parent=0 // loop_footer
    %s12 = sadd.s32 1, %s8
  $region7: #{_lambda_.14} parent=0 // loop_footer_branch
    %7 = sbr.rel target = $region3
  $region8: #{_lambda_.14} parent=0 // loop_exit
    _

// kernel: _lambda_.15
$region0: #{_lambda_.15}
  #allocation0 [shape = 'u32[]', space=smem, size = 0x4, offset = 0x4, fixed_abs, tag = 'smem constant byte address 0x4 - core index']
  #allocation1 [shape = 'u32[144,128]{1,0:T(1,128)}', space=vmem, size = 0x12000, scoped, tag = 'internal scratch']
  %s0 = inlined_call_operand.vmem [shape: bf16[1024,108], index: 0, kind: input, shape index: {}]
  %s1 = inlined_call_operand.vmem [shape: bf16[108,4], index: 1, kind: input, shape index: {}]
  %s2 = inlined_call_operand.vmem [shape: f32[1024,4], index: 2, kind: input, shape index: {}]
  %s3 = inlined_call_operand.vmem [shape: f32[1024,4], index: 3, kind: output, shape index: {}]
  %s4 = sld [smem:[#allocation0]]
  $region45: #{_lambda_.15} parent=0
    _
  %s6 = ssub.s32 1, %s4
  %s7 = scalar_select 0, %s6, %s4
  loop: start=0, step=1, limit=4
  $region2: #{_lambda_.15} parent=0 // loop_pre_header
    _
  $region3: #{_lambda_.15} parent=0 // loop_header
    %s9 = sphi 0, %s13
    %p10 = scmp.ge.s32.totalorder %s9, 4
    %s19 = sphi 0, %s21
    %s22 = sphi 0, %s19
    %s23 = sphi 0, %s22
    %s39 = sphi 0, %s23
    %s43 = sphi 0, %s43
    %s45 = sphi 0, %s43
    %s46 = sphi 0, %s45
    %s60 = sphi 0, %s46
    %s66 = sphi 0, %s68
    %s69 = sphi 0, %s66
    %s70 = sphi 0, %s69
    %s86 = sphi 0, %s70
    %s92 = sphi 0, %s94
    %s95 = sphi 0, %s92
    %s96 = sphi 0, %s95
    %s112 = sphi 0, %s96
  $region4: #{_lambda_.15} parent=0 // loop_header_branch
    %12 = sbr.rel (%p10) target = $region8
  $region5: #{_lambda_.15} parent=0 // loop_body
    %s14 = ssub.s32 %s9, 1
    %s15 = ssub.s32 %s9, 2
    %s16 = sadd.s32 %s9, 1
    %s17 = ssub.s32 %s9, %s16
    %p18 = scmp.eq.s32.totalorder %s17, 0
    %s20 = sadd.s32 %s19, 1
    %s21 = scalar_select %p18, %s19, %s20
    %p24 = pneg %p18
    %p25 = scmp.eq.s32.totalorder %s9, 1
    %p26 = por %p24, %p25
    %p27 = scmp.ne.s32.totalorder %s19, %s22
    %p28 = scmp.eq.s32.totalorder %s9, 0
    %p29 = por %p27, %p28
    %p30 = scmp.ne.s32.totalorder %s19, %s22
    %p31 = scmp.eq.s32.totalorder %s14, 1
    %p32 = por %p30, %p31
    %p33 = scmp.ne.s32.totalorder %s22, %s23
    %p34 = scmp.eq.s32.totalorder %s14, 0
    %p35 = por %p33, %p34
    %p36 = scmp.ne.s32.totalorder %s22, %s23
    %p37 = scmp.eq.s32.totalorder %s15, 1
    %p38 = por %p36, %p37
    %p40 = scmp.ne.s32.totalorder %s23, %s39
    %p41 = scmp.eq.s32.totalorder %s15, 0
    %p42 = por %p40, %p41
    %s44 = sadd.s32 %s43, 1
    %p47 = scmp.eq.s32.totalorder %s9, 1
    %p48 = scmp.ne.s32.totalorder %s43, %s45
    %p49 = scmp.eq.s32.totalorder %s9, 0
    %p50 = por %p48, %p49
    %p51 = scmp.ne.s32.totalorder %s43, %s45
    %p52 = scmp.eq.s32.totalorder %s14, 1
    %p53 = por %p51, %p52
    %p54 = scmp.ne.s32.totalorder %s45, %s46
    %p55 = scmp.eq.s32.totalorder %s14, 0
    %p56 = por %p54, %p55
    %p57 = scmp.ne.s32.totalorder %s45, %s46
    %p58 = scmp.eq.s32.totalorder %s15, 1
    %p59 = por %p57, %p58
    %p61 = scmp.ne.s32.totalorder %s46, %s60
    %p62 = scmp.eq.s32.totalorder %s15, 0
    %p63 = por %p61, %p62
    %s64 = ssub.s32 %s9, %s16
    %p65 = scmp.eq.s32.totalorder %s64, 0
    %s67 = sadd.s32 %s66, 1
    %s68 = scalar_select %p65, %s66, %s67
    %p71 = pneg %p65
    %p72 = scmp.eq.s32.totalorder %s9, 1
    %p73 = por %p71, %p72
    %p74 = scmp.ne.s32.totalorder %s66, %s69
    %p75 = scmp.eq.s32.totalorder %s9, 0
    %p76 = por %p74, %p75
    %p77 = scmp.ne.s32.totalorder %s66, %s69
    %p78 = scmp.eq.s32.totalorder %s14, 1
    %p79 = por %p77, %p78
    %p80 = scmp.ne.s32.totalorder %s69, %s70
    %p81 = scmp.eq.s32.totalorder %s14, 0
    %p82 = por %p80, %p81
    %p83 = scmp.ne.s32.totalorder %s69, %s70
    %p84 = scmp.eq.s32.totalorder %s15, 1
    %p85 = por %p83, %p84
    %p87 = scmp.ne.s32.totalorder %s70, %s86
    %p88 = scmp.eq.s32.totalorder %s15, 0
    %p89 = por %p87, %p88
    %s90 = ssub.s32 %s9, %s16
    %p91 = scmp.eq.s32.totalorder %s90, 0
    %s93 = sadd.s32 %s92, 1
    %s94 = scalar_select %p91, %s92, %s93
    %p97 = pneg %p91
    %p98 = scmp.eq.s32.totalorder %s9, 1
    %p99 = por %p97, %p98
    %p100 = scmp.ne.s32.totalorder %s92, %s95
    %p101 = scmp.eq.s32.totalorder %s9, 0
    %p102 = por %p100, %p101
    %p103 = scmp.ne.s32.totalorder %s92, %s95
    %p104 = scmp.eq.s32.totalorder %s14, 1
    %p105 = por %p103, %p104
    %p106 = scmp.ne.s32.totalorder %s95, %s96
    %p107 = scmp.eq.s32.totalorder %s14, 0
    %p108 = por %p106, %p107
    %p109 = scmp.ne.s32.totalorder %s95, %s96
    %p110 = scmp.eq.s32.totalorder %s15, 1
    %p111 = por %p109, %p110
    %p113 = scmp.ne.s32.totalorder %s96, %s112
    %p114 = scmp.eq.s32.totalorder %s15, 0
    %p115 = por %p113, %p114
    %p116 = scmp.le.s32.totalorder 1, %s9
    %p117 = scmp.lt.s32.totalorder %s9, 3
    %p118 = pnand %p116, %p117
    %p119 = pneg %p118
    // Predicated region
    $region9: #{_lambda_.15} parent=5 // pred_check
      _
    $region10: #{_lambda_.15} parent=5 // pred_check_branch
      %121 = sbr.rel (%p118) target = $region12
    $region11: #{_lambda_.15} parent=5 // pred_region
      %s122 = ssub.s32 %s9, 1
      // Predicated region
      $region13: #{_lambda_.15} parent=11 // pred_check
        %p123 = pneg %p56
      $region14: #{_lambda_.15} parent=11 // pred_check_branch
        %125 = sbr.rel (%p123) target = $region16
      $region15: #{_lambda_.15} parent=11 // pred_region
        _
      $region16: #{_lambda_.15} parent=11 // pred_fallthru
        _
    $region12: #{_lambda_.15} parent=5 // pred_fallthru
      _
    %p126 = scmp.lt.s32.totalorder %s9, 2
    // Predicated region
    $region17: #{_lambda_.15} parent=5 // pred_check
      %p127 = pneg %p126
    $region18: #{_lambda_.15} parent=5 // pred_check_branch
      %129 = sbr.rel (%p127) target = $region20
    $region19: #{_lambda_.15} parent=5 // pred_region
      // Predicated region
      $region21: #{_lambda_.15} parent=19 // pred_check
        %p130 = pneg %p29
      $region22: #{_lambda_.15} parent=19 // pred_check_branch
        %132 = sbr.rel (%p130) target = $region24
      $region23: #{_lambda_.15} parent=19 // pred_region
        %s133 = smul.u32 64, %s9
        %p134 = scmp.lt.s32.totalorder %s133, 127
        %s135 = scalar_select %p134, %s133, 127
        %s136 = smul.addr %s135, 4
        %s137 = scalar_lea.vmem %s0, %s136
        %s138 = smul.u32 64, %s9
      $region24: #{_lambda_.15} parent=19 // pred_fallthru
        _
      // Predicated region
      $region25: #{_lambda_.15} parent=19 // pred_check
        %p139 = pneg %p76
      $region26: #{_lambda_.15} parent=19 // pred_check_branch
        %141 = sbr.rel (%p139) target = $region28
      $region27: #{_lambda_.15} parent=19 // pred_region
        %s142 = smul.u32 64, %s9
        %p143 = scmp.lt.s32.totalorder %s142, 127
        %s144 = scalar_select %p143, %s142, 127
        %s145 = smul.addr %s144, 8
        %s146 = scalar_lea.vmem %s2, %s145
        %s147 = smul.u32 64, %s9
      $region28: #{_lambda_.15} parent=19 // pred_fallthru
        _
    $region20: #{_lambda_.15} parent=5 // pred_fallthru
      _
    %p148 = scmp.le.s32.totalorder 1, %s9
    %p149 = scmp.lt.s32.totalorder %s9, 3
    %p150 = pnand %p148, %p149
    %p151 = pneg %p150
    // Predicated region
    $region29: #{_lambda_.15} parent=5 // pred_check
      _
    $region30: #{_lambda_.15} parent=5 // pred_check_branch
      %153 = sbr.rel (%p150) target = $region32
    $region31: #{_lambda_.15} parent=5 // pred_region
      %s154 = ssub.s32 %s9, 1
      %s155 = smul.u32 64, %s14
      %p156 = scmp.lt.s32.totalorder %s155, 127
      %s157 = scalar_select %p156, %s155, 127
      %s158 = smul.addr %s157, 4
      %s159 = scalar_lea.vmem %s0, %s158
      %p160 = pneg %p35
      %p161 = pneg %p32
      %p162 = pneg %p56
      %p163 = pneg %p53
      %s164 = smul.u32 64, %s14
      %p165 = scmp.lt.s32.totalorder %s164, 127
      %s166 = scalar_select %p165, %s164, 127
      %s167 = smul.addr %s166, 8
      %s168 = scalar_lea.vmem %s2, %s167
      %p169 = pneg %p82
      %p170 = pneg %p79
      %p171 = pneg %p108
      %p172 = pneg %p105
      %s173 = smul.u32 64, %s14
      %p174 = scmp.lt.s32.totalorder %s173, 127
      %s175 = scalar_select %p174, %s173, 127
      %s176 = smul.addr %s175, 8
      %s177 = scalar_lea.vmem %s3, %s176
      %s178 = smul.u32 64, %s14
      %p179 = scmp.lt.s32.totalorder %s178, 127
      %s180 = scalar_select %p179, %s178, 127
      %s181 = smul.addr %s180, 4
      %s182 = scalar_lea.vmem %s0, %s181
      %s183 = smul.u32 64, %s14
      %s184 = smul.u32 64, %s14
      %p185 = scmp.lt.s32.totalorder %s184, 127
      %s186 = scalar_select %p185, %s184, 127
      %s187 = smul.addr %s186, 8
      %s188 = scalar_lea.vmem %s2, %s187
      %s189 = smul.u32 64, %s14
      %s190 = smul.u32 64, %s14
      %p191 = scmp.lt.s32.totalorder %s190, 127
      %s192 = scalar_select %p191, %s190, 127
      %s193 = smul.addr %s192, 8
      %s194 = scalar_lea.vmem %s3, %s193
      %s195 = smul.u32 64, %s14
      %v197 = vld [vmem:[%s182] sm:$0xf]
      %v198 = vld [vmem:[%s182 + $0x4] sm:$0xf]
      %v199 = vld [vmem:[%s182 + $0x8] sm:$0xf]
      %v200 = vld [vmem:[%s182 + $0xc] sm:$0xf]
      %v201 = vld [vmem:[%s182 + $0x10] sm:$0xf]
      %v202 = vld [vmem:[%s182 + $0x14] sm:$0xf]
      %v203 = vld [vmem:[%s182 + $0x18] sm:$0xf]
      %v204 = vld [vmem:[%s182 + $0x1c] sm:$0xf]
      %v205 = vld [vmem:[%s182 + $0x20] sm:$0xf]
      %v206 = vld [vmem:[%s182 + $0x24] sm:$0xf]
      %v207 = vld [vmem:[%s182 + $0x28] sm:$0xf]
      %v208 = vld [vmem:[%s182 + $0x2c] sm:$0xf]
      %v209 = vld [vmem:[%s182 + $0x30] sm:$0xf]
      %v210 = vld [vmem:[%s182 + $0x34] sm:$0xf]
      %v211 = vld [vmem:[%s182 + $0x38] sm:$0xf]
      %v212 = vld [vmem:[%s182 + $0x3c] sm:$0xf]
      %v213 = vld [vmem:[%s182 + $0x40] sm:$0xf]
      %v214 = vld [vmem:[%s182 + $0x44] sm:$0xf]
      %v215 = vld [vmem:[%s182 + $0x48] sm:$0xf]
      %v216 = vld [vmem:[%s182 + $0x4c] sm:$0xf]
      %v217 = vld [vmem:[%s182 + $0x50] sm:$0xf]
      %v218 = vld [vmem:[%s182 + $0x54] sm:$0xf]
      %v219 = vld [vmem:[%s182 + $0x58] sm:$0xf]
      %v220 = vld [vmem:[%s182 + $0x5c] sm:$0xf]
      %v221 = vld [vmem:[%s182 + $0x60] sm:$0xf]
      %v222 = vld [vmem:[%s182 + $0x64] sm:$0xf]
      %v223 = vld [vmem:[%s182 + $0x68] sm:$0xf]
      %v224 = vld [vmem:[%s182 + $0x6c] sm:$0xf]
      %v225 = vld [vmem:[%s182 + $0x70] sm:$0xf]
      %v226 = vld [vmem:[%s182 + $0x74] sm:$0xf]
      %v227 = vld [vmem:[%s182 + $0x78] sm:$0xf]
      %v228 = vld [vmem:[%s182 + $0x7c] sm:$0xf]
      %v229 = vld [vmem:[%s182 + $0x80] sm:$0xf]
      %v230 = vld [vmem:[%s182 + $0x84] sm:$0xf]
      %v231 = vld [vmem:[%s182 + $0x88] sm:$0xf]
      %v232 = vld [vmem:[%s182 + $0x8c] sm:$0xf]
      %v233 = vld [vmem:[%s182 + $0x90] sm:$0xf]
      %v234 = vld [vmem:[%s182 + $0x94] sm:$0xf]
      %v235 = vld [vmem:[%s182 + $0x98] sm:$0xf]
      %v236 = vld [vmem:[%s182 + $0x9c] sm:$0xf]
      %v237 = vld [vmem:[%s182 + $0xa0] sm:$0xf]
      %v238 = vld [vmem:[%s182 + $0xa4] sm:$0xf]
      %v239 = vld [vmem:[%s182 + $0xa8] sm:$0xf]
      %v240 = vld [vmem:[%s182 + $0xac] sm:$0xf]
      %v241 = vld [vmem:[%s182 + $0xb0] sm:$0xf]
      %v242 = vld [vmem:[%s182 + $0xb4] sm:$0xf]
      %v243 = vld [vmem:[%s182 + $0xb8] sm:$0xf]
      %v244 = vld [vmem:[%s182 + $0xbc] sm:$0xf]
      %v245 = vld [vmem:[%s182 + $0xc0] sm:$0xf]
      %v246 = vld [vmem:[%s182 + $0xc4] sm:$0xf]
      %v247 = vld [vmem:[%s182 + $0xc8] sm:$0xf]
      %v248 = vld [vmem:[%s182 + $0xcc] sm:$0xf]
      %v249 = vld [vmem:[%s182 + $0xd0] sm:$0xf]
      %v250 = vld [vmem:[%s182 + $0xd4] sm:$0xf]
      %v251 = vld [vmem:[%s182 + $0xd8] sm:$0xf]
      %v252 = vld [vmem:[%s182 + $0xdc] sm:$0xf]
      %v253 = vld [vmem:[%s182 + $0xe0] sm:$0xf]
      %v254 = vld [vmem:[%s182 + $0xe4] sm:$0xf]
      %v255 = vld [vmem:[%s182 + $0xe8] sm:$0xf]
      %v256 = vld [vmem:[%s182 + $0xec] sm:$0xf]
      %v257 = vld [vmem:[%s182 + $0xf0] sm:$0xf]
      %v258 = vld [vmem:[%s182 + $0xf4] sm:$0xf]
      %v259 = vld [vmem:[%s182 + $0xf8] sm:$0xf]
      %v260 = vld [vmem:[%s182 + $0xfc] sm:$0xf]
      %v261 = vld [vmem:[%s1] sm:$0xf]
      %v262 = vld [vmem:[%s1 + $0x4] sm:$0xf]
      %v263 = vld [vmem:[%s1 + $0x8] sm:$0xf]
      %v264 = vld [vmem:[%s1 + $0xc] sm:$0xf]
      %v265 = vld [vmem:[%s1 + $0x10] sm:$0xf]
      %v266 = vld [vmem:[%s1 + $0x14] sm:$0xf]
      %v267 = vld [vmem:[%s1 + $0x18] sm:$0xf]
      %v268 = vld [vmem:[%s1 + $0x1c] sm:$0xf]
      %v269 = vld [vmem:[%s1 + $0x20] sm:$0xf]
      %v270 = vld [vmem:[%s1 + $0x24] sm:$0xf]
      %v271 = vld [vmem:[%s1 + $0x28] sm:$0xf]
      %v272 = vld [vmem:[%s1 + $0x2c] sm:$0xf]
      %v273 = vld [vmem:[%s1 + $0x30] sm:$0xf]
      %v274 = vld [vmem:[%s1 + $0x34] sm:$0x3]
      %v275 = vld [vmem:[%s188] sm:$0xff]
      %v276 = vld [vmem:[%s188 + $0x8] sm:$0xff]
      %v277 = vld [vmem:[%s188 + $0x10] sm:$0xff]
      %v278 = vld [vmem:[%s188 + $0x18] sm:$0xff]
      %v279 = vld [vmem:[%s188 + $0x20] sm:$0xff]
      %v280 = vld [vmem:[%s188 + $0x28] sm:$0xff]
      %v281 = vld [vmem:[%s188 + $0x30] sm:$0xff]
      %v282 = vld [vmem:[%s188 + $0x38] sm:$0xff]
      %v283 = vld [vmem:[%s188 + $0x40] sm:$0xff]
      %v284 = vld [vmem:[%s188 + $0x48] sm:$0xff]
      %v285 = vld [vmem:[%s188 + $0x50] sm:$0xff]
      %v286 = vld [vmem:[%s188 + $0x58] sm:$0xff]
      %v287 = vld [vmem:[%s188 + $0x60] sm:$0xff]
      %v288 = vld [vmem:[%s188 + $0x68] sm:$0xff]
      %v289 = vld [vmem:[%s188 + $0x70] sm:$0xff]
      %v290 = vld [vmem:[%s188 + $0x78] sm:$0xff]
      %v291 = vld [vmem:[%s188 + $0x80] sm:$0xff]
      %v292 = vld [vmem:[%s188 + $0x88] sm:$0xff]
      %v293 = vld [vmem:[%s188 + $0x90] sm:$0xff]
      %v294 = vld [vmem:[%s188 + $0x98] sm:$0xff]
      %v295 = vld [vmem:[%s188 + $0xa0] sm:$0xff]
      %v296 = vld [vmem:[%s188 + $0xa8] sm:$0xff]
      %v297 = vld [vmem:[%s188 + $0xb0] sm:$0xff]
      %v298 = vld [vmem:[%s188 + $0xb8] sm:$0xff]
      %v299 = vld [vmem:[%s188 + $0xc0] sm:$0xff]
      %v300 = vld [vmem:[%s188 + $0xc8] sm:$0xff]
      %v301 = vld [vmem:[%s188 + $0xd0] sm:$0xff]
      %v302 = vld [vmem:[%s188 + $0xd8] sm:$0xff]
      %v303 = vld [vmem:[%s188 + $0xe0] sm:$0xff]
      %v304 = vld [vmem:[%s188 + $0xe8] sm:$0xff]
      %v305 = vld [vmem:[%s188 + $0xf0] sm:$0xff]
      %v306 = vld [vmem:[%s188 + $0xf8] sm:$0xff]
      %v307 = vld [vmem:[%s188 + $0x100] sm:$0xff]
      %v308 = vld [vmem:[%s188 + $0x108] sm:$0xff]
      %v309 = vld [vmem:[%s188 + $0x110] sm:$0xff]
      %v310 = vld [vmem:[%s188 + $0x118] sm:$0xff]
      %v311 = vld [vmem:[%s188 + $0x120] sm:$0xff]
      %v312 = vld [vmem:[%s188 + $0x128] sm:$0xff]
      %v313 = vld [vmem:[%s188 + $0x130] sm:$0xff]
      %v314 = vld [vmem:[%s188 + $0x138] sm:$0xff]
      %v315 = vld [vmem:[%s188 + $0x140] sm:$0xff]
      %v316 = vld [vmem:[%s188 + $0x148] sm:$0xff]
      %v317 = vld [vmem:[%s188 + $0x150] sm:$0xff]
      %v318 = vld [vmem:[%s188 + $0x158] sm:$0xff]
      %v319 = vld [vmem:[%s188 + $0x160] sm:$0xff]
      %v320 = vld [vmem:[%s188 + $0x168] sm:$0xff]
      %v321 = vld [vmem:[%s188 + $0x170] sm:$0xff]
      %v322 = vld [vmem:[%s188 + $0x178] sm:$0xff]
      %v323 = vld [vmem:[%s188 + $0x180] sm:$0xff]
      %v324 = vld [vmem:[%s188 + $0x188] sm:$0xff]
      %v325 = vld [vmem:[%s188 + $0x190] sm:$0xff]
      %v326 = vld [vmem:[%s188 + $0x198] sm:$0xff]
      %v327 = vld [vmem:[%s188 + $0x1a0] sm:$0xff]
      %v328 = vld [vmem:[%s188 + $0x1a8] sm:$0xff]
      %v329 = vld [vmem:[%s188 + $0x1b0] sm:$0xff]
      %v330 = vld [vmem:[%s188 + $0x1b8] sm:$0xff]
      %v331 = vld [vmem:[%s188 + $0x1c0] sm:$0xff]
      %v332 = vld [vmem:[%s188 + $0x1c8] sm:$0xff]
      %v333 = vld [vmem:[%s188 + $0x1d0] sm:$0xff]
      %v334 = vld [vmem:[%s188 + $0x1d8] sm:$0xff]
      %v335 = vld [vmem:[%s188 + $0x1e0] sm:$0xff]
      %v336 = vld [vmem:[%s188 + $0x1e8] sm:$0xff]
      %v337 = vld [vmem:[%s188 + $0x1f0] sm:$0xff]
      %v338 = vld [vmem:[%s188 + $0x1f8] sm:$0xff]
      %v403 = vunpack.c.l.b16 %v197
      %v404 = vunpack.c.l.b16 %v198
      %v405 = vunpack.c.l.b16 %v199
      %v406 = vunpack.c.l.b16 %v200
      %v407 = vunpack.c.l.b16 %v201
      %v408 = vunpack.c.l.b16 %v202
      %v409 = vunpack.c.l.b16 %v203
      %v410 = vunpack.c.l.b16 %v204
      %v411 = vunpack.c.l.b16 %v205
      %v412 = vunpack.c.l.b16 %v206
      %v413 = vunpack.c.l.b16 %v207
      %v414 = vunpack.c.l.b16 %v208
      %v415 = vunpack.c.l.b16 %v209
      %v416 = vunpack.c.l.b16 %v210
      %v417 = vunpack.c.l.b16 %v211
      %v418 = vunpack.c.l.b16 %v212
      %v419 = vunpack.c.l.b16 %v213
      %v420 = vunpack.c.l.b16 %v214
      %v421 = vunpack.c.l.b16 %v215
      %v422 = vunpack.c.l.b16 %v216
      %v423 = vunpack.c.l.b16 %v217
      %v424 = vunpack.c.l.b16 %v218
      %v425 = vunpack.c.l.b16 %v219
      %v426 = vunpack.c.l.b16 %v220
      %v427 = vunpack.c.l.b16 %v221
      %v428 = vunpack.c.l.b16 %v222
      %v429 = vunpack.c.l.b16 %v223
      %v430 = vunpack.c.l.b16 %v224
      %v431 = vunpack.c.l.b16 %v225
      %v432 = vunpack.c.l.b16 %v226
      %v433 = vunpack.c.l.b16 %v227
      %v434 = vunpack.c.l.b16 %v228
      %v435 = vunpack.c.l.b16 %v229
      %v436 = vunpack.c.l.b16 %v230
      %v437 = vunpack.c.l.b16 %v231
      %v438 = vunpack.c.l.b16 %v232
      %v439 = vunpack.c.l.b16 %v233
      %v440 = vunpack.c.l.b16 %v234
      %v441 = vunpack.c.l.b16 %v235
      %v442 = vunpack.c.l.b16 %v236
      %v443 = vunpack.c.l.b16 %v237
      %v444 = vunpack.c.l.b16 %v238
      %v445 = vunpack.c.l.b16 %v239
      %v446 = vunpack.c.l.b16 %v240
      %v447 = vunpack.c.l.b16 %v241
      %v448 = vunpack.c.l.b16 %v242
      %v449 = vunpack.c.l.b16 %v243
      %v450 = vunpack.c.l.b16 %v244
      %v451 = vunpack.c.l.b16 %v245
      %v452 = vunpack.c.l.b16 %v246
      %v453 = vunpack.c.l.b16 %v247
      %v454 = vunpack.c.l.b16 %v248
      %v455 = vunpack.c.l.b16 %v249
      %v456 = vunpack.c.l.b16 %v250
      %v457 = vunpack.c.l.b16 %v251
      %v458 = vunpack.c.l.b16 %v252
      %v459 = vunpack.c.l.b16 %v253
      %v460 = vunpack.c.l.b16 %v254
      %v461 = vunpack.c.l.b16 %v255
      %v462 = vunpack.c.l.b16 %v256
      %v463 = vunpack.c.l.b16 %v257
      %v464 = vunpack.c.l.b16 %v258
      %v465 = vunpack.c.l.b16 %v259
      %v466 = vunpack.c.l.b16 %v260
      %v467 = vpack.c.b16 %v404, %v403
      %v468 = vpack.c.b16 %v406, %v405
      %v469 = vpack.c.b16 %v408, %v407
      %v470 = vpack.c.b16 %v410, %v409
      %v471 = vpack.c.b16 %v412, %v411
      %v472 = vpack.c.b16 %v414, %v413
      %v473 = vpack.c.b16 %v416, %v415
      %v474 = vpack.c.b16 %v418, %v417
      %v475 = vpack.c.b16 %v420, %v419
      %v476 = vpack.c.b16 %v422, %v421
      %v477 = vpack.c.b16 %v424, %v423
      %v478 = vpack.c.b16 %v426, %v425
      %v479 = vpack.c.b16 %v428, %v427
      %v480 = vpack.c.b16 %v430, %v429
      %v481 = vpack.c.b16 %v432, %v431
      %v482 = vpack.c.b16 %v434, %v433
      %v483 = vpack.c.b16 %v436, %v435
      %v484 = vpack.c.b16 %v438, %v437
      %v485 = vpack.c.b16 %v440, %v439
      %v486 = vpack.c.b16 %v442, %v441
      %v487 = vpack.c.b16 %v444, %v443
      %v488 = vpack.c.b16 %v446, %v445
      %v489 = vpack.c.b16 %v448, %v447
      %v490 = vpack.c.b16 %v450, %v449
      %v491 = vpack.c.b16 %v452, %v451
      %v492 = vpack.c.b16 %v454, %v453
      %v493 = vpack.c.b16 %v456, %v455
      %v494 = vpack.c.b16 %v458, %v457
      %v495 = vpack.c.b16 %v460, %v459
      %v496 = vpack.c.b16 %v462, %v461
      %v497 = vpack.c.b16 %v464, %v463
      %v498 = vpack.c.b16 %v466, %v465
      %v513 = vunpack.c.l.b16 %v261
      %v514 = vunpack.c.l.b16 %v262
      %v515 = vunpack.c.l.b16 %v263
      %v516 = vunpack.c.l.b16 %v264
      %v517 = vunpack.c.l.b16 %v265
      %v518 = vunpack.c.l.b16 %v266
      %v519 = vunpack.c.l.b16 %v267
      %v520 = vunpack.c.l.b16 %v268
      %v521 = vunpack.c.l.b16 %v269
      %v522 = vunpack.c.l.b16 %v270
      %v523 = vunpack.c.l.b16 %v271
      %v524 = vunpack.c.l.b16 %v272
      %v525 = vunpack.c.l.b16 %v273
      %v526 = vunpack.c.l.b16 %v274
      %v527 = vpack.c.b16 %v514, %v513
      %v528 = vpack.c.b16 %v516, %v515
      %v529 = vpack.c.b16 %v518, %v517
      %v530 = vpack.c.b16 %v520, %v519
      %v531 = vpack.c.b16 %v522, %v521
      %v532 = vpack.c.b16 %v524, %v523
      %v533 = vpack.c.b16 %v526, %v525
      %vm540 = vcmask 883712
      %v542 = vsel %vm540, %v467, 0
      %v545 = vsel %vm540, %v468, 0
      %v548 = vsel %vm540, %v469, 0
      %v551 = vsel %vm540, %v470, 0
      %v554 = vsel %vm540, %v471, 0
      %v557 = vsel %vm540, %v472, 0
      %v560 = vsel %vm540, %v473, 0
      %v563 = vsel %vm540, %v474, 0
      %v566 = vsel %vm540, %v475, 0
      %v569 = vsel %vm540, %v476, 0
      %v572 = vsel %vm540, %v477, 0
      %v575 = vsel %vm540, %v478, 0
      %v578 = vsel %vm540, %v479, 0
      %v581 = vsel %vm540, %v480, 0
      %v584 = vsel %vm540, %v481, 0
      %v587 = vsel %vm540, %v482, 0
      %v590 = vsel %vm540, %v483, 0
      %v593 = vsel %vm540, %v484, 0
      %v596 = vsel %vm540, %v485, 0
      %v599 = vsel %vm540, %v486, 0
      %v602 = vsel %vm540, %v487, 0
      %v605 = vsel %vm540, %v488, 0
      %v608 = vsel %vm540, %v489, 0
      %v611 = vsel %vm540, %v490, 0
      %v614 = vsel %vm540, %v491, 0
      %v617 = vsel %vm540, %v492, 0
      %v620 = vsel %vm540, %v493, 0
      %v623 = vsel %vm540, %v494, 0
      %v626 = vsel %vm540, %v495, 0
      %v629 = vsel %vm540, %v496, 0
      %v632 = vsel %vm540, %v497, 0
      %v635 = vsel %vm540, %v498, 0
      %vm637 = vcmask 1045504
      %v639 = vsel %vm637, %v533, 0
      %641 = vmatprep.subr.bf16.mxu0 0
      %642 = vmatpush1.bf16.msra.mxu0 %v527
      %643 = vmatprep.subr.bf16.mxu0 0
      %644 = vmatpush1.bf16.msra.mxu0 %v528
      %645 = vmatprep.subr.bf16.mxu0 0
      %646 = vmatpush1.bf16.msra.mxu0 %v529
      %647 = vmatprep.subr.bf16.mxu0 0
      %648 = vmatpush1.bf16.msra.mxu0 %v530
      %649 = vmatprep.subr.bf16.mxu0 0
      %650 = vmatpush1.bf16.msra.mxu0 %v531
      %651 = vmatprep.subr.bf16.mxu0 0
      %652 = vmatpush1.bf16.msra.mxu0 %v532
      %653 = vmatprep.subr.bf16.mxu0 0
      %654 = vmatpush1.bf16.msra.mxu0 %v639
      %655 = vmatprep.subr.bf16.mxu0 0
      %656 = vmatpush1.bf16.msra.mxu0 0
      %657 = vmatprep.subr.bf16.mxu0 0
      %658 = vmatpush1.bf16.msra.mxu0 0
      %659 = vmatprep.subr.bf16.mxu0 0
      %660 = vmatpush1.bf16.msra.mxu0 0
      %661 = vmatprep.subr.bf16.mxu0 0
      %662 = vmatpush1.bf16.msra.mxu0 0
      %663 = vmatprep.subr.bf16.mxu0 0
      %664 = vmatpush1.bf16.msra.mxu0 0
      %665 = vmatprep.subr.bf16.mxu0 0
      %666 = vmatpush1.bf16.msra.mxu0 0
      %667 = vmatprep.subr.bf16.mxu0 0
      %668 = vmatpush1.bf16.msra.mxu0 0
      %669 = vmatprep.subr.bf16.mxu0 0
      %670 = vmatpush1.bf16.msra.mxu0 0
      %671 = vmatprep.subr.bf16.mxu0 0
      %672 = vmatpush1.bf16.msra.mxu0 0
      %673 = vmatprep.mubr.bf16.mxu0 0
      %674 = vmatmul.mubr.bf16.gmra.mrb[0].mxu0 %v542
      %v675 = vpop.f32.mrb[0].mxu0
      %v676 = vadd.f32 %v275, %v675
      %v677 = vpop.f32.mrb[0].mxu0
      %v678 = vpop.f32.mrb[0].mxu0
      %v679 = vadd.f32 %v276, %v678
      %v680 = vpop.f32.mrb[0].mxu0
      %681 = vmatprep.mubr.bf16.mxu0 0
      %682 = vmatmul.mubr.bf16.gmra.mrb[0].mxu0 %v545
      %v683 = vpop.f32.mrb[0].mxu0
      %v684 = vadd.f32 %v277, %v683
      %v685 = vpop.f32.mrb[0].mxu0
      %v686 = vpop.f32.mrb[0].mxu0
      %v687 = vadd.f32 %v278, %v686
      %v688 = vpop.f32.mrb[0].mxu0
      %689 = vmatprep.mubr.bf16.mxu0 0
      %690 = vmatmul.mubr.bf16.gmra.mrb[0].mxu0 %v548
      %v691 = vpop.f32.mrb[0].mxu0
      %v692 = vadd.f32 %v279, %v691
      %v693 = vpop.f32.mrb[0].mxu0
      %v694 = vpop.f32.mrb[0].mxu0
      %v695 = vadd.f32 %v280, %v694
      %v696 = vpop.f32.mrb[0].mxu0
      %697 = vmatprep.mubr.bf16.mxu0 0
      %698 = vmatmul.mubr.bf16.gmra.mrb[0].mxu0 %v551
      %v699 = vpop.f32.mrb[0].mxu0
      %v700 = vadd.f32 %v281, %v699
      %v701 = vpop.f32.mrb[0].mxu0
      %v702 = vpop.f32.mrb[0].mxu0
      %v703 = vadd.f32 %v282, %v702
      %v704 = vpop.f32.mrb[0].mxu0
      %705 = vmatprep.mubr.bf16.mxu0 0
      %706 = vmatmul.mubr.bf16.gmra.mrb[0].mxu0 %v554
      %v707 = vpop.f32.mrb[0].mxu0
      %v708 = vadd.f32 %v283, %v707
      %v709 = vpop.f32.mrb[0].mxu0
      %v710 = vpop.f32.mrb[0].mxu0
      %v711 = vadd.f32 %v284, %v710
      %v712 = vpop.f32.mrb[0].mxu0
      %713 = vmatprep.mubr.bf16.mxu0 0
      %714 = vmatmul.mubr.bf16.gmra.mrb[0].mxu0 %v557
      %v715 = vpop.f32.mrb[0].mxu0
      %v716 = vadd.f32 %v285, %v715
      %v717 = vpop.f32.mrb[0].mxu0
      %v718 = vpop.f32.mrb[0].mxu0
      %v719 = vadd.f32 %v286, %v718
      %v720 = vpop.f32.mrb[0].mxu0
      %721 = vmatprep.mubr.bf16.mxu0 0
      %722 = vmatmul.mubr.bf16.gmra.mrb[0].mxu0 %v560
      %v723 = vpop.f32.mrb[0].mxu0
      %v724 = vadd.f32 %v287, %v723
      %v725 = vpop.f32.mrb[0].mxu0
      %v726 = vpop.f32.mrb[0].mxu0
      %v727 = vadd.f32 %v288, %v726
      %v728 = vpop.f32.mrb[0].mxu0
      %729 = vmatprep.mubr.bf16.mxu0 0
      %730 = vmatmul.mubr.bf16.gmra.mrb[0].mxu0 %v563
      %v731 = vpop.f32.mrb[0].mxu0
      %v732 = vadd.f32 %v289, %v731
      %v733 = vpop.f32.mrb[0].mxu0
      %v734 = vpop.f32.mrb[0].mxu0
      %v735 = vadd.f32 %v290, %v734
      %v736 = vpop.f32.mrb[0].mxu0
      %737 = vmatprep.mubr.bf16.mxu0 0
      %738 = vmatmul.mubr.bf16.gmra.mrb[0].mxu0 %v566
      %v739 = vpop.f32.mrb[0].mxu0
      %v740 = vadd.f32 %v291, %v739
      %v741 = vpop.f32.mrb[0].mxu0
      %v742 = vpop.f32.mrb[0].mxu0
      %v743 = vadd.f32 %v292, %v742
      %v744 = vpop.f32.mrb[0].mxu0
      %745 = vmatprep.mubr.bf16.mxu0 0
      %746 = vmatmul.mubr.bf16.gmra.mrb[0].mxu0 %v569
      %v747 = vpop.f32.mrb[0].mxu0
      %v748 = vadd.f32 %v293, %v747
      %v749 = vpop.f32.mrb[0].mxu0
      %v750 = vpop.f32.mrb[0].mxu0
      %v751 = vadd.f32 %v294, %v750
      %v752 = vpop.f32.mrb[0].mxu0
      %753 = vmatprep.mubr.bf16.mxu0 0
      %754 = vmatmul.mubr.bf16.gmra.mrb[0].mxu0 %v572
      %v755 = vpop.f32.mrb[0].mxu0
      %v756 = vadd.f32 %v295, %v755
      %v757 = vpop.f32.mrb[0].mxu0
      %v758 = vpop.f32.mrb[0].mxu0
      %v759 = vadd.f32 %v296, %v758
      %v760 = vpop.f32.mrb[0].mxu0
      %761 = vmatprep.mubr.bf16.mxu0 0
      %762 = vmatmul.mubr.bf16.gmra.mrb[0].mxu0 %v575
      %v763 = vpop.f32.mrb[0].mxu0
      %v764 = vadd.f32 %v297, %v763
      %v765 = vpop.f32.mrb[0].mxu0
      %v766 = vpop.f32.mrb[0].mxu0
      %v767 = vadd.f32 %v298, %v766
      %v768 = vpop.f32.mrb[0].mxu0
      %769 = vmatprep.mubr.bf16.mxu0 0
      %770 = vmatmul.mubr.bf16.gmra.mrb[0].mxu0 %v578
      %v771 = vpop.f32.mrb[0].mxu0
      %v772 = vadd.f32 %v299, %v771
      %v773 = vpop.f32.mrb[0].mxu0
      %v774 = vpop.f32.mrb[0].mxu0
      %v775 = vadd.f32 %v300, %v774
      %v776 = vpop.f32.mrb[0].mxu0
      %777 = vmatprep.mubr.bf16.mxu0 0
      %778 = vmatmul.mubr.bf16.gmra.mrb[0].mxu0 %v581
      %v779 = vpop.f32.mrb[0].mxu0
      %v780 = vadd.f32 %v301, %v779
      %v781 = vpop.f32.mrb[0].mxu0
      %v782 = vpop.f32.mrb[0].mxu0
      %v783 = vadd.f32 %v302, %v782
      %v784 = vpop.f32.mrb[0].mxu0
      %785 = vmatprep.mubr.bf16.mxu0 0
      %786 = vmatmul.mubr.bf16.gmra.mrb[0].mxu0 %v584
      %v787 = vpop.f32.mrb[0].mxu0
      %v788 = vadd.f32 %v303, %v787
      %v789 = vpop.f32.mrb[0].mxu0
      %v790 = vpop.f32.mrb[0].mxu0
      %v791 = vadd.f32 %v304, %v790
      %v792 = vpop.f32.mrb[0].mxu0
      %793 = vmatprep.mubr.bf16.mxu0 0
      %794 = vmatmul.mubr.bf16.gmra.mrb[0].mxu0 %v587
      %v795 = vpop.f32.mrb[0].mxu0
      %v796 = vadd.f32 %v305, %v795
      %v797 = vpop.f32.mrb[0].mxu0
      %v798 = vpop.f32.mrb[0].mxu0
      %v799 = vadd.f32 %v306, %v798
      %v800 = vpop.f32.mrb[0].mxu0
      %801 = vmatprep.mubr.bf16.mxu0 0
      %802 = vmatmul.mubr.bf16.gmra.mrb[0].mxu0 %v590
      %v803 = vpop.f32.mrb[0].mxu0
      %v804 = vadd.f32 %v307, %v803
      %v805 = vpop.f32.mrb[0].mxu0
      %v806 = vpop.f32.mrb[0].mxu0
      %v807 = vadd.f32 %v308, %v806
      %v808 = vpop.f32.mrb[0].mxu0
      %809 = vmatprep.mubr.bf16.mxu0 0
      %810 = vmatmul.mubr.bf16.gmra.mrb[0].mxu0 %v593
      %v811 = vpop.f32.mrb[0].mxu0
      %v812 = vadd.f32 %v309, %v811
      %v813 = vpop.f32.mrb[0].mxu0
      %v814 = vpop.f32.mrb[0].mxu0
      %v815 = vadd.f32 %v310, %v814
      %v816 = vpop.f32.mrb[0].mxu0
      %817 = vmatprep.mubr.bf16.mxu0 0
      %818 = vmatmul.mubr.bf16.gmra.mrb[0].mxu0 %v596
      %v819 = vpop.f32.mrb[0].mxu0
      %v820 = vadd.f32 %v311, %v819
      %v821 = vpop.f32.mrb[0].mxu0
      %v822 = vpop.f32.mrb[0].mxu0
      %v823 = vadd.f32 %v312, %v822
      %v824 = vpop.f32.mrb[0].mxu0
      %825 = vmatprep.mubr.bf16.mxu0 0
      %826 = vmatmul.mubr.bf16.gmra.mrb[0].mxu0 %v599
      %v827 = vpop.f32.mrb[0].mxu0
      %v828 = vadd.f32 %v313, %v827
      %v829 = vpop.f32.mrb[0].mxu0
      %v830 = vpop.f32.mrb[0].mxu0
      %v831 = vadd.f32 %v314, %v830
      %v832 = vpop.f32.mrb[0].mxu0
      %833 = vmatprep.mubr.bf16.mxu0 0
      %834 = vmatmul.mubr.bf16.gmra.mrb[0].mxu0 %v602
      %v835 = vpop.f32.mrb[0].mxu0
      %v836 = vadd.f32 %v315, %v835
      %v837 = vpop.f32.mrb[0].mxu0
      %v838 = vpop.f32.mrb[0].mxu0
      %v839 = vadd.f32 %v316, %v838
      %v840 = vpop.f32.mrb[0].mxu0
      %841 = vmatprep.mubr.bf16.mxu0 0
      %842 = vmatmul.mubr.bf16.gmra.mrb[0].mxu0 %v605
      %v843 = vpop.f32.mrb[0].mxu0
      %v844 = vadd.f32 %v317, %v843
      %v845 = vpop.f32.mrb[0].mxu0
      %v846 = vpop.f32.mrb[0].mxu0
      %v847 = vadd.f32 %v318, %v846
      %v848 = vpop.f32.mrb[0].mxu0
      %849 = vmatprep.mubr.bf16.mxu0 0
      %850 = vmatmul.mubr.bf16.gmra.mrb[0].mxu0 %v608
      %v851 = vpop.f32.mrb[0].mxu0
      %v852 = vadd.f32 %v319, %v851
      %v853 = vpop.f32.mrb[0].mxu0
      %v854 = vpop.f32.mrb[0].mxu0
      %v855 = vadd.f32 %v320, %v854
      %v856 = vpop.f32.mrb[0].mxu0
      %857 = vmatprep.mubr.bf16.mxu0 0
      %858 = vmatmul.mubr.bf16.gmra.mrb[0].mxu0 %v611
      %v859 = vpop.f32.mrb[0].mxu0
      %v860 = vadd.f32 %v321, %v859
      %v861 = vpop.f32.mrb[0].mxu0
      %v862 = vpop.f32.mrb[0].mxu0
      %v863 = vadd.f32 %v322, %v862
      %v864 = vpop.f32.mrb[0].mxu0
      %865 = vmatprep.mubr.bf16.mxu0 0
      %866 = vmatmul.mubr.bf16.gmra.mrb[0].mxu0 %v614
      %v867 = vpop.f32.mrb[0].mxu0
      %v868 = vadd.f32 %v323, %v867
      %v869 = vpop.f32.mrb[0].mxu0
      %v870 = vpop.f32.mrb[0].mxu0
      %v871 = vadd.f32 %v324, %v870
      %v872 = vpop.f32.mrb[0].mxu0
      %873 = vmatprep.mubr.bf16.mxu0 0
      %874 = vmatmul.mubr.bf16.gmra.mrb[0].mxu0 %v617
      %v875 = vpop.f32.mrb[0].mxu0
      %v876 = vadd.f32 %v325, %v875
      %v877 = vpop.f32.mrb[0].mxu0
      %v878 = vpop.f32.mrb[0].mxu0
      %v879 = vadd.f32 %v326, %v878
      %v880 = vpop.f32.mrb[0].mxu0
      %881 = vmatprep.mubr.bf16.mxu0 0
      %882 = vmatmul.mubr.bf16.gmra.mrb[0].mxu0 %v620
      %v883 = vpop.f32.mrb[0].mxu0
      %v884 = vadd.f32 %v327, %v883
      %v885 = vpop.f32.mrb[0].mxu0
      %v886 = vpop.f32.mrb[0].mxu0
      %v887 = vadd.f32 %v328, %v886
      %v888 = vpop.f32.mrb[0].mxu0
      %889 = vmatprep.mubr.bf16.mxu0 0
      %890 = vmatmul.mubr.bf16.gmra.mrb[0].mxu0 %v623
      %v891 = vpop.f32.mrb[0].mxu0
      %v892 = vadd.f32 %v329, %v891
      %v893 = vpop.f32.mrb[0].mxu0
      %v894 = vpop.f32.mrb[0].mxu0
      %v895 = vadd.f32 %v330, %v894
      %v896 = vpop.f32.mrb[0].mxu0
      %897 = vmatprep.mubr.bf16.mxu0 0
      %898 = vmatmul.mubr.bf16.gmra.mrb[0].mxu0 %v626
      %v899 = vpop.f32.mrb[0].mxu0
      %v900 = vadd.f32 %v331, %v899
      %v901 = vpop.f32.mrb[0].mxu0
      %v902 = vpop.f32.mrb[0].mxu0
      %v903 = vadd.f32 %v332, %v902
      %v904 = vpop.f32.mrb[0].mxu0
      %905 = vmatprep.mubr.bf16.mxu0 0
      %906 = vmatmul.mubr.bf16.gmra.mrb[0].mxu0 %v629
      %v907 = vpop.f32.mrb[0].mxu0
      %v908 = vadd.f32 %v333, %v907
      %v909 = vpop.f32.mrb[0].mxu0
      %v910 = vpop.f32.mrb[0].mxu0
      %v911 = vadd.f32 %v334, %v910
      %v912 = vpop.f32.mrb[0].mxu0
      %913 = vmatprep.mubr.bf16.mxu0 0
      %914 = vmatmul.mubr.bf16.gmra.mrb[0].mxu0 %v632
      %v915 = vpop.f32.mrb[0].mxu0
      %v916 = vadd.f32 %v335, %v915
      %v917 = vpop.f32.mrb[0].mxu0
      %v918 = vpop.f32.mrb[0].mxu0
      %v919 = vadd.f32 %v336, %v918
      %v920 = vpop.f32.mrb[0].mxu0
      %921 = vmatprep.mubr.bf16.mxu0 0
      %922 = vmatmul.mubr.bf16.gmra.mrb[0].mxu0 %v635
      %v923 = vpop.f32.mrb[0].mxu0
      %v924 = vadd.f32 %v337, %v923
      %v925 = vpop.f32.mrb[0].mxu0
      %v926 = vpop.f32.mrb[0].mxu0
      %v927 = vadd.f32 %v338, %v926
      %v928 = vpop.f32.mrb[0].mxu0
      %929 = vdwg.mxu0
      %vm930 = vcmask 31744
      %931 = vst.msk [vmem:[%s194] sm:$0xff] %vm930, %v676
      %932 = vst.msk [vmem:[%s194 + $0x8] sm:$0xff] %vm930, %v679
      %933 = vst.msk [vmem:[%s194 + $0x10] sm:$0xff] %vm930, %v684
      %934 = vst.msk [vmem:[%s194 + $0x18] sm:$0xff] %vm930, %v687
      %935 = vst.msk [vmem:[%s194 + $0x20] sm:$0xff] %vm930, %v692
      %936 = vst.msk [vmem:[%s194 + $0x28] sm:$0xff] %vm930, %v695
      %937 = vst.msk [vmem:[%s194 + $0x30] sm:$0xff] %vm930, %v700
      %938 = vst.msk [vmem:[%s194 + $0x38] sm:$0xff] %vm930, %v703
      %939 = vst.msk [vmem:[%s194 + $0x40] sm:$0xff] %vm930, %v708
      %940 = vst.msk [vmem:[%s194 + $0x48] sm:$0xff] %vm930, %v711
      %941 = vst.msk [vmem:[%s194 + $0x50] sm:$0xff] %vm930, %v716
      %942 = vst.msk [vmem:[%s194 + $0x58] sm:$0xff] %vm930, %v719
      %943 = vst.msk [vmem:[%s194 + $0x60] sm:$0xff] %vm930, %v724
      %944 = vst.msk [vmem:[%s194 + $0x68] sm:$0xff] %vm930, %v727
      %945 = vst.msk [vmem:[%s194 + $0x70] sm:$0xff] %vm930, %v732
      %946 = vst.msk [vmem:[%s194 + $0x78] sm:$0xff] %vm930, %v735
      %947 = vst.msk [vmem:[%s194 + $0x80] sm:$0xff] %vm930, %v740
      %948 = vst.msk [vmem:[%s194 + $0x88] sm:$0xff] %vm930, %v743
      %949 = vst.msk [vmem:[%s194 + $0x90] sm:$0xff] %vm930, %v748
      %950 = vst.msk [vmem:[%s194 + $0x98] sm:$0xff] %vm930, %v751
      %951 = vst.msk [vmem:[%s194 + $0xa0] sm:$0xff] %vm930, %v756
      %952 = vst.msk [vmem:[%s194 + $0xa8] sm:$0xff] %vm930, %v759
      %953 = vst.msk [vmem:[%s194 + $0xb0] sm:$0xff] %vm930, %v764
      %954 = vst.msk [vmem:[%s194 + $0xb8] sm:$0xff] %vm930, %v767
      %955 = vst.msk [vmem:[%s194 + $0xc0] sm:$0xff] %vm930, %v772
      %956 = vst.msk [vmem:[%s194 + $0xc8] sm:$0xff] %vm930, %v775
      %957 = vst.msk [vmem:[%s194 + $0xd0] sm:$0xff] %vm930, %v780
      %958 = vst.msk [vmem:[%s194 + $0xd8] sm:$0xff] %vm930, %v783
      %959 = vst.msk [vmem:[%s194 + $0xe0] sm:$0xff] %vm930, %v788
      %960 = vst.msk [vmem:[%s194 + $0xe8] sm:$0xff] %vm930, %v791
      %961 = vst.msk [vmem:[%s194 + $0xf0] sm:$0xff] %vm930, %v796
      %962 = vst.msk [vmem:[%s194 + $0xf8] sm:$0xff] %vm930, %v799
      %963 = vst.msk [vmem:[%s194 + $0x100] sm:$0xff] %vm930, %v804
      %964 = vst.msk [vmem:[%s194 + $0x108] sm:$0xff] %vm930, %v807
      %965 = vst.msk [vmem:[%s194 + $0x110] sm:$0xff] %vm930, %v812
      %966 = vst.msk [vmem:[%s194 + $0x118] sm:$0xff] %vm930, %v815
      %967 = vst.msk [vmem:[%s194 + $0x120] sm:$0xff] %vm930, %v820
      %968 = vst.msk [vmem:[%s194 + $0x128] sm:$0xff] %vm930, %v823
      %969 = vst.msk [vmem:[%s194 + $0x130] sm:$0xff] %vm930, %v828
      %970 = vst.msk [vmem:[%s194 + $0x138] sm:$0xff] %vm930, %v831
      %971 = vst.msk [vmem:[%s194 + $0x140] sm:$0xff] %vm930, %v836
      %972 = vst.msk [vmem:[%s194 + $0x148] sm:$0xff] %vm930, %v839
      %973 = vst.msk [vmem:[%s194 + $0x150] sm:$0xff] %vm930, %v844
      %974 = vst.msk [vmem:[%s194 + $0x158] sm:$0xff] %vm930, %v847
      %975 = vst.msk [vmem:[%s194 + $0x160] sm:$0xff] %vm930, %v852
      %976 = vst.msk [vmem:[%s194 + $0x168] sm:$0xff] %vm930, %v855
      %977 = vst.msk [vmem:[%s194 + $0x170] sm:$0xff] %vm930, %v860
      %978 = vst.msk [vmem:[%s194 + $0x178] sm:$0xff] %vm930, %v863
      %979 = vst.msk [vmem:[%s194 + $0x180] sm:$0xff] %vm930, %v868
      %980 = vst.msk [vmem:[%s194 + $0x188] sm:$0xff] %vm930, %v871
      %981 = vst.msk [vmem:[%s194 + $0x190] sm:$0xff] %vm930, %v876
      %982 = vst.msk [vmem:[%s194 + $0x198] sm:$0xff] %vm930, %v879
      %983 = vst.msk [vmem:[%s194 + $0x1a0] sm:$0xff] %vm930, %v884
      %984 = vst.msk [vmem:[%s194 + $0x1a8] sm:$0xff] %vm930, %v887
      %985 = vst.msk [vmem:[%s194 + $0x1b0] sm:$0xff] %vm930, %v892
      %986 = vst.msk [vmem:[%s194 + $0x1b8] sm:$0xff] %vm930, %v895
      %987 = vst.msk [vmem:[%s194 + $0x1c0] sm:$0xff] %vm930, %v900
      %988 = vst.msk [vmem:[%s194 + $0x1c8] sm:$0xff] %vm930, %v903
      %989 = vst.msk [vmem:[%s194 + $0x1d0] sm:$0xff] %vm930, %v908
      %990 = vst.msk [vmem:[%s194 + $0x1d8] sm:$0xff] %vm930, %v911
      %991 = vst.msk [vmem:[%s194 + $0x1e0] sm:$0xff] %vm930, %v916
      %992 = vst.msk [vmem:[%s194 + $0x1e8] sm:$0xff] %vm930, %v919
      %993 = vst.msk [vmem:[%s194 + $0x1f0] sm:$0xff] %vm930, %v924
      %994 = vst.msk [vmem:[%s194 + $0x1f8] sm:$0xff] %vm930, %v927
      %s995 = smul.u32 64, %s14
      %p996 = scmp.lt.s32.totalorder %s995, 127
      %s997 = scalar_select %p996, %s995, 127
      %s998 = smul.addr %s997, 8
      %s999 = scalar_lea.vmem %s3, %s998
      // Predicated region
      $region33: #{_lambda_.15} parent=31 // pred_check
        %p1000 = pneg %p105
      $region34: #{_lambda_.15} parent=31 // pred_check_branch
        %1002 = sbr.rel (%p1000) target = $region36
      $region35: #{_lambda_.15} parent=31 // pred_region
        %s1003 = smul.u32 64, %s14
      $region36: #{_lambda_.15} parent=31 // pred_fallthru
        _
    $region32: #{_lambda_.15} parent=5 // pred_fallthru
      _
    %p1004 = scmp.le.s32.totalorder 2, %s9
    // Predicated region
    $region37: #{_lambda_.15} parent=5 // pred_check
      %p1005 = pneg %p1004
    $region38: #{_lambda_.15} parent=5 // pred_check_branch
      %1007 = sbr.rel (%p1005) target = $region40
    $region39: #{_lambda_.15} parent=5 // pred_region
      %s1008 = ssub.s32 %s9, 2
      // Predicated region
      $region41: #{_lambda_.15} parent=39 // pred_check
        %p1009 = pneg %p111
      $region42: #{_lambda_.15} parent=39 // pred_check_branch
        %1011 = sbr.rel (%p1009) target = $region44
      $region43: #{_lambda_.15} parent=39 // pred_region
        %s1012 = smul.u32 64, %s15
        %p1013 = scmp.lt.s32.totalorder %s1012, 127
        %s1014 = scalar_select %p1013, %s1012, 127
        %s1015 = smul.addr %s1014, 8
        %s1016 = scalar_lea.vmem %s3, %s1015
      $region44: #{_lambda_.15} parent=39 // pred_fallthru
        _
    $region40: #{_lambda_.15} parent=5 // pred_fallthru
      _
  $region6: #{_lambda_.15} parent=0 // loop_footer
    %s13 = sadd.s32 1, %s9
  $region7: #{_lambda_.15} parent=0 // loop_footer_branch
    %8 = sbr.rel target = $region3
  $region8: #{_lambda_.15} parent=0 // loop_exit
    _

// kernel: tile.13
$region0: #{tile.13}
  #allocation0 [shape = 's32[1]{0}', space=sflag, size = 0x4, scoped, tag = 'scoped memory for tile.13']
  %s0 = inlined_call_operand.vmem [shape: f32[4], index: 0, kind: input, shape index: {}]
  %s1 = inlined_call_operand.vmem [shape: f32[8,4], index: 1, kind: output, shape index: {}]
  // Predicated region
  $region2: #{tile.13} parent=0 // pred_check
    _
  $region3: #{tile.13} parent=0 // pred_check_branch
    %3 = sbr.rel (0) target = $region5
  $region4: #{tile.13} parent=0 // pred_region
    _
  $region5: #{tile.13} parent=0 // pred_fallthru
    _
  %v4 = vld [vmem:[%s0] ss:$0 sm:$0xff]
  %5 = vst [vmem:[%s1] sm:$0xff] %v4

// kernel: tile.18
$region0: #{tile.18}
  %s0 = inlined_call_operand.vmem [shape: f32[8,4], index: 0, kind: input, shape index: {}]
  %s1 = inlined_call_operand.vmem [shape: f32[1,32], index: 1, kind: output, shape index: {}]
  $region1: #{tile.18} parent=0
    #allocation0 [shape = 'u8[4096]{0}', space=vmem, size = 0x1000, scoped, tag = 'scoped mem for output reshape']
    %v2 = vld [vmem:[%s0] sm:$0x1]
    %vm3 = vcmask 31744
    %4 = vst.msk [vmem:[#allocation0] sm:$0x1] %vm3, %v2
    %s5 = scalar_lea.vmem %s0, 7
    %v6 = vld [vmem:[%s5] sm:$0x1]
    %7 = vrot.lane.b32.xlu0 %v6, 28
    %v8 = vpop.permute.xlu0 %7
    %vm9 = vcmask 261344
    %10 = vst.msk [vmem:[#allocation0] sm:$0x1] %vm9, %v8
    %s11 = scalar_lea.vmem %s0, 6
    %v12 = vld [vmem:[%s11] sm:$0x1]
    %13 = vrot.lane.b32.xlu0 %v12, 24
    %v14 = vpop.permute.xlu0 %13
    %vm15 = vcmask 228544
    %16 = vst.msk [vmem:[#allocation0] sm:$0x1] %vm15, %v14
    %s17 = scalar_lea.vmem %s0, 5
    %v18 = vld [vmem:[%s17] sm:$0x1]
    %19 = vrot.lane.b32.xlu0 %v18, 20
    %v20 = vpop.permute.xlu0 %19
    %vm21 = vcmask 195744
    %22 = vst.msk [vmem:[#allocation0] sm:$0x1] %vm21, %v20
    %s23 = scalar_lea.vmem %s0, 4
    %v24 = vld [vmem:[%s23] sm:$0x1]
    %25 = vrot.lane.b32.xlu0 %v24, 16
    %v26 = vpop.permute.xlu0 %25
    %vm27 = vcmask 162944
    %28 = vst.msk [vmem:[#allocation0] sm:$0x1] %vm27, %v26
    %s29 = scalar_lea.vmem %s0, 3
    %v30 = vld [vmem:[%s29] sm:$0x1]
    %31 = vrot.lane.b32.xlu0 %v30, 12
    %v32 = vpop.permute.xlu0 %31
    %vm33 = vcmask 130144
    %34 = vst.msk [vmem:[#allocation0] sm:$0x1] %vm33, %v32
    %s35 = scalar_lea.vmem %s0, 2
    %v36 = vld [vmem:[%s35] sm:$0x1]
    %37 = vrot.lane.b32.xlu0 %v36, 8
    %v38 = vpop.permute.xlu0 %37
    %vm39 = vcmask 97344
    %40 = vst.msk [vmem:[#allocation0] sm:$0x1] %vm39, %v38
    %s41 = scalar_lea.vmem %s0, 1
    %v42 = vld [vmem:[%s41] sm:$0x1]
    %43 = vrot.lane.b32.xlu0 %v42, 4
    %v44 = vpop.permute.xlu0 %43
    %vm45 = vcmask 64544
    %46 = vst.msk [vmem:[#allocation0] sm:$0x1] %vm45, %v44
    %s48 = sshllo.u32 0, 1
    %v50 = vld [vmem:[#allocation0] sm:%s48]
    %s51 = sshllo.u32 0, 1
    %52 = vst [vmem:[%s1] sm:%s51] %v50

// kernel: _lambda_.18
$region0: #{_lambda_.18}
  #allocation0 [shape = 'u32[]', space=smem, size = 0x4, offset = 0x4, fixed_abs, tag = 'smem constant byte address 0x4 - core index']
  #allocation1 [shape = 'u32[144,128]{1,0:T(1,128)}', space=vmem, size = 0x12000, scoped, tag = 'internal scratch']
  %s0 = inlined_call_operand.vmem [shape: bf16[128,32], index: 0, kind: input, shape index: {}]
  %s1 = inlined_call_operand.vmem [shape: f32[1,32], index: 1, kind: input, shape index: {}]
  %s2 = inlined_call_operand.vmem [shape: f32[1,32], index: 2, kind: input, shape index: {}]
  %s3 = inlined_call_operand.vmem [shape: bf16[32,8], index: 3, kind: input, shape index: {}]
  %s4 = inlined_call_operand.vmem [shape: f32[128,8], index: 4, kind: output, shape index: {}]
  %s5 = sld [smem:[#allocation0]]
  $region26: #{_lambda_.18} parent=0
    _
  %s7 = ssub.s32 1, %s5
  %s8 = scalar_select 0, %s7, %s5
  // Predicated region
  $region2: #{_lambda_.18} parent=0 // pred_check
    _
  $region3: #{_lambda_.18} parent=0 // pred_check_branch
    %10 = sbr.rel (0) target = $region5
  $region4: #{_lambda_.18} parent=0 // pred_region
    _
  $region5: #{_lambda_.18} parent=0 // pred_fallthru
    _
  // Predicated region
  $region6: #{_lambda_.18} parent=0 // pred_check
    _
  $region7: #{_lambda_.18} parent=0 // pred_check_branch
    %12 = sbr.rel (0) target = $region9
  $region8: #{_lambda_.18} parent=0 // pred_region
    _
  $region9: #{_lambda_.18} parent=0 // pred_fallthru
    _
  // Predicated region
  $region10: #{_lambda_.18} parent=0 // pred_check
    _
  $region11: #{_lambda_.18} parent=0 // pred_check_branch
    %14 = sbr.rel (0) target = $region13
  $region12: #{_lambda_.18} parent=0 // pred_region
    _
  $region13: #{_lambda_.18} parent=0 // pred_fallthru
    _
  // Predicated region
  $region14: #{_lambda_.18} parent=0 // pred_check
    _
  $region15: #{_lambda_.18} parent=0 // pred_check_branch
    %16 = sbr.rel (0) target = $region17
  $region16: #{_lambda_.18} parent=0 // pred_region
    _
  $region17: #{_lambda_.18} parent=0 // pred_fallthru
    _
  %v18 = vld [vmem:[%s0] sm:$0xf]
  %v19 = vld [vmem:[%s0 + $0x4] sm:$0xf]
  %v20 = vld [vmem:[%s0 + $0x8] sm:$0xf]
  %v21 = vld [vmem:[%s0 + $0xc] sm:$0xf]
  %v22 = vld [vmem:[%s0 + $0x10] sm:$0xf]
  %v23 = vld [vmem:[%s0 + $0x14] sm:$0xf]
  %v24 = vld [vmem:[%s0 + $0x18] sm:$0xf]
  %v25 = vld [vmem:[%s0 + $0x1c] sm:$0xf]
  %v26 = vld [vmem:[%s0 + $0x20] sm:$0xf]
  %v27 = vld [vmem:[%s0 + $0x24] sm:$0xf]
  %v28 = vld [vmem:[%s0 + $0x28] sm:$0xf]
  %v29 = vld [vmem:[%s0 + $0x2c] sm:$0xf]
  %v30 = vld [vmem:[%s0 + $0x30] sm:$0xf]
  %v31 = vld [vmem:[%s0 + $0x34] sm:$0xf]
  %v32 = vld [vmem:[%s0 + $0x38] sm:$0xf]
  %v33 = vld [vmem:[%s0 + $0x3c] sm:$0xf]
  %v34 = vunpack.c.l.bf16 %v18
  %v35 = vunpack.c.l.bf16 %v19
  %v36 = vunpack.c.l.bf16 %v20
  %v37 = vunpack.c.l.bf16 %v21
  %v38 = vunpack.c.l.bf16 %v22
  %v39 = vunpack.c.l.bf16 %v23
  %v40 = vunpack.c.l.bf16 %v24
  %v41 = vunpack.c.l.bf16 %v25
  %v42 = vunpack.c.l.bf16 %v26
  %v43 = vunpack.c.l.bf16 %v27
  %v44 = vunpack.c.l.bf16 %v28
  %v45 = vunpack.c.l.bf16 %v29
  %v46 = vunpack.c.l.bf16 %v30
  %v47 = vunpack.c.l.bf16 %v31
  %v48 = vunpack.c.l.bf16 %v32
  %v49 = vunpack.c.l.bf16 %v33
  %v50 = vld [vmem:[%s1] sm:$0x1]
  %v52 = vlaneseq
  %v53 = vshrl.u32 %v52, 7
  %v54 = vsub.s32 0, %v53
  %v55 = vrot.slane %v50, %v54
  %v57 = vmul.f32 %v34, %v55
  %v58 = vmul.f32 %v35, %v55
  %v59 = vmul.f32 %v36, %v55
  %v60 = vmul.f32 %v37, %v55
  %v61 = vmul.f32 %v38, %v55
  %v62 = vmul.f32 %v39, %v55
  %v63 = vmul.f32 %v40, %v55
  %v64 = vmul.f32 %v41, %v55
  %v65 = vmul.f32 %v42, %v55
  %v66 = vmul.f32 %v43, %v55
  %v67 = vmul.f32 %v44, %v55
  %v68 = vmul.f32 %v45, %v55
  %v69 = vmul.f32 %v46, %v55
  %v70 = vmul.f32 %v47, %v55
  %v71 = vmul.f32 %v48, %v55
  %v72 = vmul.f32 %v49, %v55
  %v73 = vld [vmem:[%s2] sm:$0x1]
  %v75 = vlaneseq
  %v76 = vshrl.u32 %v75, 7
  %v77 = vsub.s32 0, %v76
  %v78 = vrot.slane %v73, %v77
  %v80 = vadd.f32 %v57, %v78
  %v81 = vadd.f32 %v58, %v78
  %v82 = vadd.f32 %v59, %v78
  %v83 = vadd.f32 %v60, %v78
  %v84 = vadd.f32 %v61, %v78
  %v85 = vadd.f32 %v62, %v78
  %v86 = vadd.f32 %v63, %v78
  %v87 = vadd.f32 %v64, %v78
  %v88 = vadd.f32 %v65, %v78
  %v89 = vadd.f32 %v66, %v78
  %v90 = vadd.f32 %v67, %v78
  %v91 = vadd.f32 %v68, %v78
  %v92 = vadd.f32 %v69, %v78
  %v93 = vadd.f32 %v70, %v78
  %v94 = vadd.f32 %v71, %v78
  %v95 = vadd.f32 %v72, %v78
  %v96 = vmax.f32 %v80, 0.0
  %v97 = vmax.f32 %v81, 0.0
  %v98 = vmax.f32 %v82, 0.0
  %v99 = vmax.f32 %v83, 0.0
  %v100 = vmax.f32 %v84, 0.0
  %v101 = vmax.f32 %v85, 0.0
  %v102 = vmax.f32 %v86, 0.0
  %v103 = vmax.f32 %v87, 0.0
  %v104 = vmax.f32 %v88, 0.0
  %v105 = vmax.f32 %v89, 0.0
  %v106 = vmax.f32 %v90, 0.0
  %v107 = vmax.f32 %v91, 0.0
  %v108 = vmax.f32 %v92, 0.0
  %v109 = vmax.f32 %v93, 0.0
  %v110 = vmax.f32 %v94, 0.0
  %v111 = vmax.f32 %v95, 0.0
  %v112 = vpack.c.bf16 %v97, %v96
  %v113 = vpack.c.bf16 %v99, %v98
  %v114 = vpack.c.bf16 %v101, %v100
  %v115 = vpack.c.bf16 %v103, %v102
  %v116 = vpack.c.bf16 %v105, %v104
  %v117 = vpack.c.bf16 %v107, %v106
  %v118 = vpack.c.bf16 %v109, %v108
  %v119 = vpack.c.bf16 %v111, %v110
  %v120 = vld [vmem:[%s3] sm:$0xf]
  %v121 = vld [vmem:[%s3 + $0x4] sm:$0xf]
  %v122 = vld [vmem:[%s3 + $0x8] sm:$0xf]
  %v123 = vld [vmem:[%s3 + $0xc] sm:$0xf]
  %v128 = vunpack.c.l.b16 %v120
  %v129 = vunpack.c.l.b16 %v121
  %v130 = vunpack.c.l.b16 %v122
  %v131 = vunpack.c.l.b16 %v123
  %v132 = vpack.c.b16 %v129, %v128
  %v133 = vpack.c.b16 %v131, %v130
  %vm136 = vcmask 261120
  %v138 = vsel %vm136, %v112, 0
  %v141 = vsel %vm136, %v113, 0
  %v144 = vsel %vm136, %v114, 0
  %v147 = vsel %vm136, %v115, 0
  %v150 = vsel %vm136, %v116, 0
  %v153 = vsel %vm136, %v117, 0
  %v156 = vsel %vm136, %v118, 0
  %v159 = vsel %vm136, %v119, 0
  %161 = vmatprep.subr.bf16.mxu0 0
  %162 = vmatpush1.bf16.msra.mxu0 %v132
  %163 = vmatprep.subr.bf16.mxu0 0
  %164 = vmatpush1.bf16.msra.mxu0 %v133
  %165 = vmatprep.subr.bf16.mxu0 0
  %166 = vmatpush1.bf16.msra.mxu0 0
  %167 = vmatprep.subr.bf16.mxu0 0
  %168 = vmatpush1.bf16.msra.mxu0 0
  %169 = vmatprep.subr.bf16.mxu0 0
  %170 = vmatpush1.bf16.msra.mxu0 0
  %171 = vmatprep.subr.bf16.mxu0 0
  %172 = vmatpush1.bf16.msra.mxu0 0
  %173 = vmatprep.subr.bf16.mxu0 0
  %174 = vmatpush1.bf16.msra.mxu0 0
  %175 = vmatprep.subr.bf16.mxu0 0
  %176 = vmatpush1.bf16.msra.mxu0 0
  %177 = vmatprep.subr.bf16.mxu0 0
  %178 = vmatpush1.bf16.msra.mxu0 0
  %179 = vmatprep.subr.bf16.mxu0 0
  %180 = vmatpush1.bf16.msra.mxu0 0
  %181 = vmatprep.subr.bf16.mxu0 0
  %182 = vmatpush1.bf16.msra.mxu0 0
  %183 = vmatprep.subr.bf16.mxu0 0
  %184 = vmatpush1.bf16.msra.mxu0 0
  %185 = vmatprep.subr.bf16.mxu0 0
  %186 = vmatpush1.bf16.msra.mxu0 0
  %187 = vmatprep.subr.bf16.mxu0 0
  %188 = vmatpush1.bf16.msra.mxu0 0
  %189 = vmatprep.subr.bf16.mxu0 0
  %190 = vmatpush1.bf16.msra.mxu0 0
  %191 = vmatprep.subr.bf16.mxu0 0
  %192 = vmatpush1.bf16.msra.mxu0 0
  %193 = vmatprep.mubr.bf16.mxu0 0
  %194 = vmatmul.mubr.bf16.gmra.mrb[0].mxu0 %v138
  %v195 = vpop.f32.mrb[0].mxu0
  %v196 = vadd.f32 0.0, %v195
  %v197 = vpop.f32.mrb[0].mxu0
  %v198 = vpop.f32.mrb[0].mxu0
  %v199 = vadd.f32 0.0, %v198
  %v200 = vpop.f32.mrb[0].mxu0
  %201 = vmatprep.mubr.bf16.mxu0 0
  %202 = vmatmul.mubr.bf16.gmra.mrb[0].mxu0 %v141
  %v203 = vpop.f32.mrb[0].mxu0
  %v204 = vadd.f32 0.0, %v203
  %v205 = vpop.f32.mrb[0].mxu0
  %v206 = vpop.f32.mrb[0].mxu0
  %v207 = vadd.f32 0.0, %v206
  %v208 = vpop.f32.mrb[0].mxu0
  %209 = vmatprep.mubr.bf16.mxu0 0
  %210 = vmatmul.mubr.bf16.gmra.mrb[0].mxu0 %v144
  %v211 = vpop.f32.mrb[0].mxu0
  %v212 = vadd.f32 0.0, %v211
  %v213 = vpop.f32.mrb[0].mxu0
  %v214 = vpop.f32.mrb[0].mxu0
  %v215 = vadd.f32 0.0, %v214
  %v216 = vpop.f32.mrb[0].mxu0
  %217 = vmatprep.mubr.bf16.mxu0 0
  %218 = vmatmul.mubr.bf16.gmra.mrb[0].mxu0 %v147
  %v219 = vpop.f32.mrb[0].mxu0
  %v220 = vadd.f32 0.0, %v219
  %v221 = vpop.f32.mrb[0].mxu0
  %v222 = vpop.f32.mrb[0].mxu0
  %v223 = vadd.f32 0.0, %v222
  %v224 = vpop.f32.mrb[0].mxu0
  %225 = vmatprep.mubr.bf16.mxu0 0
  %226 = vmatmul.mubr.bf16.gmra.mrb[0].mxu0 %v150
  %v227 = vpop.f32.mrb[0].mxu0
  %v228 = vadd.f32 0.0, %v227
  %v229 = vpop.f32.mrb[0].mxu0
  %v230 = vpop.f32.mrb[0].mxu0
  %v231 = vadd.f32 0.0, %v230
  %v232 = vpop.f32.mrb[0].mxu0
  %233 = vmatprep.mubr.bf16.mxu0 0
  %234 = vmatmul.mubr.bf16.gmra.mrb[0].mxu0 %v153
  %v235 = vpop.f32.mrb[0].mxu0
  %v236 = vadd.f32 0.0, %v235
  %v237 = vpop.f32.mrb[0].mxu0
  %v238 = vpop.f32.mrb[0].mxu0
  %v239 = vadd.f32 0.0, %v238
  %v240 = vpop.f32.mrb[0].mxu0
  %241 = vmatprep.mubr.bf16.mxu0 0
  %242 = vmatmul.mubr.bf16.gmra.mrb[0].mxu0 %v156
  %v243 = vpop.f32.mrb[0].mxu0
  %v244 = vadd.f32 0.0, %v243
  %v245 = vpop.f32.mrb[0].mxu0
  %v246 = vpop.f32.mrb[0].mxu0
  %v247 = vadd.f32 0.0, %v246
  %v248 = vpop.f32.mrb[0].mxu0
  %249 = vmatprep.mubr.bf16.mxu0 0
  %250 = vmatmul.mubr.bf16.gmra.mrb[0].mxu0 %v159
  %v251 = vpop.f32.mrb[0].mxu0
  %v252 = vadd.f32 0.0, %v251
  %v253 = vpop.f32.mrb[0].mxu0
  %v254 = vpop.f32.mrb[0].mxu0
  %v255 = vadd.f32 0.0, %v254
  %v256 = vpop.f32.mrb[0].mxu0
  %257 = vdwg.mxu0
  %vm258 = vcmask 64512
  %259 = vst.msk [vmem:[%s4] sm:$0xff] %vm258, %v196
  %260 = vst.msk [vmem:[%s4 + $0x8] sm:$0xff] %vm258, %v199
  %261 = vst.msk [vmem:[%s4 + $0x10] sm:$0xff] %vm258, %v204
  %262 = vst.msk [vmem:[%s4 + $0x18] sm:$0xff] %vm258, %v207
  %263 = vst.msk [vmem:[%s4 + $0x20] sm:$0xff] %vm258, %v212
  %264 = vst.msk [vmem:[%s4 + $0x28] sm:$0xff] %vm258, %v215
  %265 = vst.msk [vmem:[%s4 + $0x30] sm:$0xff] %vm258, %v220
  %266 = vst.msk [vmem:[%s4 + $0x38] sm:$0xff] %vm258, %v223
  %267 = vst.msk [vmem:[%s4 + $0x40] sm:$0xff] %vm258, %v228
  %268 = vst.msk [vmem:[%s4 + $0x48] sm:$0xff] %vm258, %v231
  %269 = vst.msk [vmem:[%s4 + $0x50] sm:$0xff] %vm258, %v236
  %270 = vst.msk [vmem:[%s4 + $0x58] sm:$0xff] %vm258, %v239
  %271 = vst.msk [vmem:[%s4 + $0x60] sm:$0xff] %vm258, %v244
  %272 = vst.msk [vmem:[%s4 + $0x68] sm:$0xff] %vm258, %v247
  %273 = vst.msk [vmem:[%s4 + $0x70] sm:$0xff] %vm258, %v252
  %274 = vst.msk [vmem:[%s4 + $0x78] sm:$0xff] %vm258, %v255
  // Predicated region
  $region18: #{_lambda_.18} parent=0 // pred_check
    _
  $region19: #{_lambda_.18} parent=0 // pred_check_branch
    %276 = sbr.rel (0) target = $region21
  $region20: #{_lambda_.18} parent=0 // pred_region
    _
  $region21: #{_lambda_.18} parent=0 // pred_fallthru
    _
  // Predicated region
  $region22: #{_lambda_.18} parent=0 // pred_check
    _
  $region23: #{_lambda_.18} parent=0 // pred_check_branch
    %278 = sbr.rel (0) target = $region25
  $region24: #{_lambda_.18} parent=0 // pred_region
    _
  $region25: #{_lambda_.18} parent=0 // pred_fallthru
    _

// kernel: _lambda_.19
$region0: #{_lambda_.19}
  #allocation0 [shape = 'u32[]', space=smem, size = 0x4, offset = 0x4, fixed_abs, tag = 'smem constant byte address 0x4 - core index']
  #allocation1 [shape = 'u32[144,128]{1,0:T(1,128)}', space=vmem, size = 0x12000, scoped, tag = 'internal scratch']
  %s0 = inlined_call_operand.vmem [shape: bf16[128,216], index: 0, kind: input, shape index: {}]
  %s1 = inlined_call_operand.vmem [shape: bf16[216,8], index: 1, kind: input, shape index: {}]
  %s2 = inlined_call_operand.vmem [shape: f32[128,8], index: 2, kind: output, shape index: {}]
  %s3 = sld [smem:[#allocation0]]
  $region18: #{_lambda_.19} parent=0
    _
  %s5 = ssub.s32 1, %s3
  %s6 = scalar_select 0, %s5, %s3
  // Predicated region
  $region2: #{_lambda_.19} parent=0 // pred_check
    _
  $region3: #{_lambda_.19} parent=0 // pred_check_branch
    %8 = sbr.rel (0) target = $region5
  $region4: #{_lambda_.19} parent=0 // pred_region
    _
  $region5: #{_lambda_.19} parent=0 // pred_fallthru
    _
  // Predicated region
  $region6: #{_lambda_.19} parent=0 // pred_check
    _
  $region7: #{_lambda_.19} parent=0 // pred_check_branch
    %10 = sbr.rel (0) target = $region9
  $region8: #{_lambda_.19} parent=0 // pred_region
    _
  $region9: #{_lambda_.19} parent=0 // pred_fallthru
    _
  %v12 = vld [vmem:[%s0] sm:$0xff]
  %v13 = vld [vmem:[%s0 + $0x8] sm:$0xff]
  %v14 = vld [vmem:[%s0 + $0x10] sm:$0xff]
  %v15 = vld [vmem:[%s0 + $0x18] sm:$0xff]
  %v16 = vld [vmem:[%s0 + $0x20] sm:$0xff]
  %v17 = vld [vmem:[%s0 + $0x28] sm:$0xff]
  %v18 = vld [vmem:[%s0 + $0x30] sm:$0xff]
  %v19 = vld [vmem:[%s0 + $0x38] sm:$0xff]
  %v20 = vld [vmem:[%s0 + $0x40] sm:$0xff]
  %v21 = vld [vmem:[%s0 + $0x48] sm:$0xff]
  %v22 = vld [vmem:[%s0 + $0x50] sm:$0xff]
  %v23 = vld [vmem:[%s0 + $0x58] sm:$0xff]
  %v24 = vld [vmem:[%s0 + $0x60] sm:$0xff]
  %v25 = vld [vmem:[%s0 + $0x68] sm:$0xff]
  %v26 = vld [vmem:[%s0 + $0x70] sm:$0xff]
  %v27 = vld [vmem:[%s0 + $0x78] sm:$0xff]
  %v28 = vld [vmem:[%s1] sm:$0xf]
  %v29 = vld [vmem:[%s1 + $0x4] sm:$0xf]
  %v30 = vld [vmem:[%s1 + $0x8] sm:$0xf]
  %v31 = vld [vmem:[%s1 + $0xc] sm:$0xf]
  %v32 = vld [vmem:[%s1 + $0x10] sm:$0xf]
  %v33 = vld [vmem:[%s1 + $0x14] sm:$0xf]
  %v34 = vld [vmem:[%s1 + $0x18] sm:$0xf]
  %v35 = vld [vmem:[%s1 + $0x1c] sm:$0xf]
  %v36 = vld [vmem:[%s1 + $0x20] sm:$0xf]
  %v37 = vld [vmem:[%s1 + $0x24] sm:$0xf]
  %v38 = vld [vmem:[%s1 + $0x28] sm:$0xf]
  %v39 = vld [vmem:[%s1 + $0x2c] sm:$0xf]
  %v40 = vld [vmem:[%s1 + $0x30] sm:$0xf]
  %v41 = vld [vmem:[%s1 + $0x34] sm:$0xf]
  %v42 = vld [vmem:[%s1 + $0x38] sm:$0xf]
  %v43 = vld [vmem:[%s1 + $0x3c] sm:$0xf]
  %v44 = vld [vmem:[%s1 + $0x40] sm:$0xf]
  %v45 = vld [vmem:[%s1 + $0x44] sm:$0xf]
  %v46 = vld [vmem:[%s1 + $0x48] sm:$0xf]
  %v47 = vld [vmem:[%s1 + $0x4c] sm:$0xf]
  %v48 = vld [vmem:[%s1 + $0x50] sm:$0xf]
  %v49 = vld [vmem:[%s1 + $0x54] sm:$0xf]
  %v50 = vld [vmem:[%s1 + $0x58] sm:$0xf]
  %v51 = vld [vmem:[%s1 + $0x5c] sm:$0xf]
  %v52 = vld [vmem:[%s1 + $0x60] sm:$0xf]
  %v53 = vld [vmem:[%s1 + $0x64] sm:$0xf]
  %v54 = vld [vmem:[%s1 + $0x68] sm:$0xf]
  %v71 = vunpack.c.l.b16 %v12
  %v72 = vunpack.c.h.b16 %v12
  %v73 = vunpack.c.l.b16 %v13
  %v74 = vunpack.c.h.b16 %v13
  %v75 = vunpack.c.l.b16 %v14
  %v76 = vunpack.c.h.b16 %v14
  %v77 = vunpack.c.l.b16 %v15
  %v78 = vunpack.c.h.b16 %v15
  %v79 = vunpack.c.l.b16 %v16
  %v80 = vunpack.c.h.b16 %v16
  %v81 = vunpack.c.l.b16 %v17
  %v82 = vunpack.c.h.b16 %v17
  %v83 = vunpack.c.l.b16 %v18
  %v84 = vunpack.c.h.b16 %v18
  %v85 = vunpack.c.l.b16 %v19
  %v86 = vunpack.c.h.b16 %v19
  %v87 = vunpack.c.l.b16 %v20
  %v88 = vunpack.c.h.b16 %v20
  %v89 = vunpack.c.l.b16 %v21
  %v90 = vunpack.c.h.b16 %v21
  %v91 = vunpack.c.l.b16 %v22
  %v92 = vunpack.c.h.b16 %v22
  %v93 = vunpack.c.l.b16 %v23
  %v94 = vunpack.c.h.b16 %v23
  %v95 = vunpack.c.l.b16 %v24
  %v96 = vunpack.c.h.b16 %v24
  %v97 = vunpack.c.l.b16 %v25
  %v98 = vunpack.c.h.b16 %v25
  %v99 = vunpack.c.l.b16 %v26
  %v100 = vunpack.c.h.b16 %v26
  %v101 = vunpack.c.l.b16 %v27
  %v102 = vunpack.c.h.b16 %v27
  %v103 = vpack.c.b16 %v73, %v71
  %v104 = vpack.c.b16 %v74, %v72
  %v105 = vpack.c.b16 %v77, %v75
  %v106 = vpack.c.b16 %v78, %v76
  %v107 = vpack.c.b16 %v81, %v79
  %v108 = vpack.c.b16 %v82, %v80
  %v109 = vpack.c.b16 %v85, %v83
  %v110 = vpack.c.b16 %v86, %v84
  %v111 = vpack.c.b16 %v89, %v87
  %v112 = vpack.c.b16 %v90, %v88
  %v113 = vpack.c.b16 %v93, %v91
  %v114 = vpack.c.b16 %v94, %v92
  %v115 = vpack.c.b16 %v97, %v95
  %v116 = vpack.c.b16 %v98, %v96
  %v117 = vpack.c.b16 %v101, %v99
  %v118 = vpack.c.b16 %v102, %v100
  %v154 = vunpack.c.l.b16 %v28
  %v155 = vunpack.c.l.b16 %v29
  %v156 = vunpack.c.l.b16 %v30
  %v157 = vunpack.c.l.b16 %v31
  %v158 = vunpack.c.l.b16 %v32
  %v159 = vunpack.c.l.b16 %v33
  %v160 = vunpack.c.l.b16 %v34
  %v161 = vunpack.c.l.b16 %v35
  %v162 = vunpack.c.l.b16 %v36
  %v163 = vunpack.c.l.b16 %v37
  %v164 = vunpack.c.l.b16 %v38
  %v165 = vunpack.c.l.b16 %v39
  %v166 = vunpack.c.l.b16 %v40
  %v167 = vunpack.c.l.b16 %v41
  %v168 = vunpack.c.l.b16 %v42
  %v169 = vunpack.c.l.b16 %v43
  %v170 = vunpack.c.l.b16 %v44
  %v171 = vunpack.c.l.b16 %v45
  %v172 = vunpack.c.l.b16 %v46
  %v173 = vunpack.c.l.b16 %v47
  %v174 = vunpack.c.l.b16 %v48
  %v175 = vunpack.c.l.b16 %v49
  %v176 = vunpack.c.l.b16 %v50
  %v177 = vunpack.c.l.b16 %v51
  %v178 = vunpack.c.l.b16 %v52
  %v179 = vunpack.c.l.b16 %v53
  %v180 = vunpack.c.l.b16 %v54
  %v181 = vpack.c.b16 %v155, %v154
  %v182 = vpack.c.b16 %v157, %v156
  %v183 = vpack.c.b16 %v159, %v158
  %v184 = vpack.c.b16 %v161, %v160
  %v185 = vpack.c.b16 %v163, %v162
  %v186 = vpack.c.b16 %v165, %v164
  %v187 = vpack.c.b16 %v167, %v166
  %v188 = vpack.c.b16 %v169, %v168
  %v189 = vpack.c.b16 %v171, %v170
  %v190 = vpack.c.b16 %v173, %v172
  %v191 = vpack.c.b16 %v175, %v174
  %v192 = vpack.c.b16 %v177, %v176
  %v193 = vpack.c.b16 %v179, %v178
  %v194 = vpack.c.b16 %v180, %v180
  %vm208 = vcmask 719872
  %v210 = vsel %vm208, %v104, 0
  %v213 = vsel %vm208, %v106, 0
  %v216 = vsel %vm208, %v108, 0
  %v219 = vsel %vm208, %v110, 0
  %v222 = vsel %vm208, %v112, 0
  %v225 = vsel %vm208, %v114, 0
  %v228 = vsel %vm208, %v116, 0
  %v231 = vsel %vm208, %v118, 0
  %vm233 = vcmask 1043456
  %v235 = vsel %vm233, %v194, 0
  %237 = vmatprep.subr.bf16.mxu0 0
  %238 = vmatpush1.bf16.msra.mxu0 %v181
  %239 = vmatprep.subr.bf16.mxu0 0
  %240 = vmatpush1.bf16.msra.mxu0 %v182
  %241 = vmatprep.subr.bf16.mxu0 0
  %242 = vmatpush1.bf16.msra.mxu0 %v183
  %243 = vmatprep.subr.bf16.mxu0 0
  %244 = vmatpush1.bf16.msra.mxu0 %v184
  %245 = vmatprep.subr.bf16.mxu0 0
  %246 = vmatpush1.bf16.msra.mxu0 %v185
  %247 = vmatprep.subr.bf16.mxu0 0
  %248 = vmatpush1.bf16.msra.mxu0 %v186
  %249 = vmatprep.subr.bf16.mxu0 0
  %250 = vmatpush1.bf16.msra.mxu0 %v187
  %251 = vmatprep.subr.bf16.mxu0 0
  %252 = vmatpush1.bf16.msra.mxu0 %v188
  %253 = vmatprep.subr.bf16.mxu0 0
  %254 = vmatpush1.bf16.msra.mxu0 %v189
  %255 = vmatprep.subr.bf16.mxu0 0
  %256 = vmatpush1.bf16.msra.mxu0 %v190
  %257 = vmatprep.subr.bf16.mxu0 0
  %258 = vmatpush1.bf16.msra.mxu0 %v191
  %259 = vmatprep.subr.bf16.mxu0 0
  %260 = vmatpush1.bf16.msra.mxu0 %v192
  %261 = vmatprep.subr.bf16.mxu0 0
  %262 = vmatpush1.bf16.msra.mxu0 %v193
  %263 = vmatprep.subr.bf16.mxu0 0
  %264 = vmatpush1.bf16.msra.mxu0 %v235
  %265 = vmatprep.subr.bf16.mxu0 0
  %266 = vmatpush1.bf16.msra.mxu0 0
  %267 = vmatprep.subr.bf16.mxu0 0
  %268 = vmatpush1.bf16.msra.mxu0 0
  %269 = vmatprep.mubr.bf16.mxu0 %v210
  %270 = vmatmul.mubr.bf16.gmra.mrb[0].mxu0 %v103
  %v271 = vpop.f32.mrb[0].mxu0
  %v272 = vadd.f32 0.0, %v271
  %v273 = vpop.f32.mrb[0].mxu0
  %v274 = vpop.f32.mrb[0].mxu0
  %v275 = vadd.f32 0.0, %v274
  %v276 = vpop.f32.mrb[0].mxu0
  %277 = vmatprep.mubr.bf16.mxu0 %v213
  %278 = vmatmul.mubr.bf16.gmra.mrb[0].mxu0 %v105
  %v279 = vpop.f32.mrb[0].mxu0
  %v280 = vadd.f32 0.0, %v279
  %v281 = vpop.f32.mrb[0].mxu0
  %v282 = vpop.f32.mrb[0].mxu0
  %v283 = vadd.f32 0.0, %v282
  %v284 = vpop.f32.mrb[0].mxu0
  %285 = vmatprep.mubr.bf16.mxu0 %v216
  %286 = vmatmul.mubr.bf16.gmra.mrb[0].mxu0 %v107
  %v287 = vpop.f32.mrb[0].mxu0
  %v288 = vadd.f32 0.0, %v287
  %v289 = vpop.f32.mrb[0].mxu0
  %v290 = vpop.f32.mrb[0].mxu0
  %v291 = vadd.f32 0.0, %v290
  %v292 = vpop.f32.mrb[0].mxu0
  %293 = vmatprep.mubr.bf16.mxu0 %v219
  %294 = vmatmul.mubr.bf16.gmra.mrb[0].mxu0 %v109
  %v295 = vpop.f32.mrb[0].mxu0
  %v296 = vadd.f32 0.0, %v295
  %v297 = vpop.f32.mrb[0].mxu0
  %v298 = vpop.f32.mrb[0].mxu0
  %v299 = vadd.f32 0.0, %v298
  %v300 = vpop.f32.mrb[0].mxu0
  %301 = vmatprep.mubr.bf16.mxu0 %v222
  %302 = vmatmul.mubr.bf16.gmra.mrb[0].mxu0 %v111
  %v303 = vpop.f32.mrb[0].mxu0
  %v304 = vadd.f32 0.0, %v303
  %v305 = vpop.f32.mrb[0].mxu0
  %v306 = vpop.f32.mrb[0].mxu0
  %v307 = vadd.f32 0.0, %v306
  %v308 = vpop.f32.mrb[0].mxu0
  %309 = vmatprep.mubr.bf16.mxu0 %v225
  %310 = vmatmul.mubr.bf16.gmra.mrb[0].mxu0 %v113
  %v311 = vpop.f32.mrb[0].mxu0
  %v312 = vadd.f32 0.0, %v311
  %v313 = vpop.f32.mrb[0].mxu0
  %v314 = vpop.f32.mrb[0].mxu0
  %v315 = vadd.f32 0.0, %v314
  %v316 = vpop.f32.mrb[0].mxu0
  %317 = vmatprep.mubr.bf16.mxu0 %v228
  %318 = vmatmul.mubr.bf16.gmra.mrb[0].mxu0 %v115
  %v319 = vpop.f32.mrb[0].mxu0
  %v320 = vadd.f32 0.0, %v319
  %v321 = vpop.f32.mrb[0].mxu0
  %v322 = vpop.f32.mrb[0].mxu0
  %v323 = vadd.f32 0.0, %v322
  %v324 = vpop.f32.mrb[0].mxu0
  %325 = vmatprep.mubr.bf16.mxu0 %v231
  %326 = vmatmul.mubr.bf16.gmra.mrb[0].mxu0 %v117
  %v327 = vpop.f32.mrb[0].mxu0
  %v328 = vadd.f32 0.0, %v327
  %v329 = vpop.f32.mrb[0].mxu0
  %v330 = vpop.f32.mrb[0].mxu0
  %v331 = vadd.f32 0.0, %v330
  %v332 = vpop.f32.mrb[0].mxu0
  %333 = vdwg.mxu0
  %vm334 = vcmask 64512
  %335 = vst.msk [vmem:[%s2] sm:$0xff] %vm334, %v272
  %336 = vst.msk [vmem:[%s2 + $0x8] sm:$0xff] %vm334, %v275
  %337 = vst.msk [vmem:[%s2 + $0x10] sm:$0xff] %vm334, %v280
  %338 = vst.msk [vmem:[%s2 + $0x18] sm:$0xff] %vm334, %v283
  %339 = vst.msk [vmem:[%s2 + $0x20] sm:$0xff] %vm334, %v288
  %340 = vst.msk [vmem:[%s2 + $0x28] sm:$0xff] %vm334, %v291
  %341 = vst.msk [vmem:[%s2 + $0x30] sm:$0xff] %vm334, %v296
  %342 = vst.msk [vmem:[%s2 + $0x38] sm:$0xff] %vm334, %v299
  %343 = vst.msk [vmem:[%s2 + $0x40] sm:$0xff] %vm334, %v304
  %344 = vst.msk [vmem:[%s2 + $0x48] sm:$0xff] %vm334, %v307
  %345 = vst.msk [vmem:[%s2 + $0x50] sm:$0xff] %vm334, %v312
  %346 = vst.msk [vmem:[%s2 + $0x58] sm:$0xff] %vm334, %v315
  %347 = vst.msk [vmem:[%s2 + $0x60] sm:$0xff] %vm334, %v320
  %348 = vst.msk [vmem:[%s2 + $0x68] sm:$0xff] %vm334, %v323
  %349 = vst.msk [vmem:[%s2 + $0x70] sm:$0xff] %vm334, %v328
  %350 = vst.msk [vmem:[%s2 + $0x78] sm:$0xff] %vm334, %v331
  // Predicated region
  $region10: #{_lambda_.19} parent=0 // pred_check
    _
  $region11: #{_lambda_.19} parent=0 // pred_check_branch
    %352 = sbr.rel (0) target = $region13
  $region12: #{_lambda_.19} parent=0 // pred_region
    _
  $region13: #{_lambda_.19} parent=0 // pred_fallthru
    _
  // Predicated region
  $region14: #{_lambda_.19} parent=0 // pred_check
    _
  $region15: #{_lambda_.19} parent=0 // pred_check_branch
    %354 = sbr.rel (0) target = $region17
  $region16: #{_lambda_.19} parent=0 // pred_region
    _
  $region17: #{_lambda_.19} parent=0 // pred_fallthru
    _

// kernel: _lambda_.20
$region0: #{_lambda_.20}
  #allocation0 [shape = 'u32[]', space=smem, size = 0x4, offset = 0x4, fixed_abs, tag = 'smem constant byte address 0x4 - core index']
  #allocation1 [shape = 'u32[144,128]{1,0:T(1,128)}', space=vmem, size = 0x12000, scoped, tag = 'internal scratch']
  %s0 = inlined_call_operand.vmem [shape: bf16[128,216], index: 0, kind: input, shape index: {}]
  %s1 = inlined_call_operand.vmem [shape: bf16[216,8], index: 1, kind: input, shape index: {}]
  %s2 = inlined_call_operand.vmem [shape: f32[128,8], index: 2, kind: input, shape index: {}]
  %s3 = inlined_call_operand.vmem [shape: f32[128,8], index: 3, kind: output, shape index: {}]
  %s4 = sld [smem:[#allocation0]]
  $region22: #{_lambda_.20} parent=0
    _
  %s6 = ssub.s32 1, %s4
  %s7 = scalar_select 0, %s6, %s4
  // Predicated region
  $region2: #{_lambda_.20} parent=0 // pred_check
    _
  $region3: #{_lambda_.20} parent=0 // pred_check_branch
    %9 = sbr.rel (0) target = $region5
  $region4: #{_lambda_.20} parent=0 // pred_region
    _
  $region5: #{_lambda_.20} parent=0 // pred_fallthru
    _
  // Predicated region
  $region6: #{_lambda_.20} parent=0 // pred_check
    _
  $region7: #{_lambda_.20} parent=0 // pred_check_branch
    %11 = sbr.rel (0) target = $region9
  $region8: #{_lambda_.20} parent=0 // pred_region
    _
  $region9: #{_lambda_.20} parent=0 // pred_fallthru
    _
  // Predicated region
  $region10: #{_lambda_.20} parent=0 // pred_check
    _
  $region11: #{_lambda_.20} parent=0 // pred_check_branch
    %13 = sbr.rel (0) target = $region13
  $region12: #{_lambda_.20} parent=0 // pred_region
    _
  $region13: #{_lambda_.20} parent=0 // pred_fallthru
    _
  %v15 = vld [vmem:[%s0] sm:$0xff]
  %v16 = vld [vmem:[%s0 + $0x8] sm:$0xff]
  %v17 = vld [vmem:[%s0 + $0x10] sm:$0xff]
  %v18 = vld [vmem:[%s0 + $0x18] sm:$0xff]
  %v19 = vld [vmem:[%s0 + $0x20] sm:$0xff]
  %v20 = vld [vmem:[%s0 + $0x28] sm:$0xff]
  %v21 = vld [vmem:[%s0 + $0x30] sm:$0xff]
  %v22 = vld [vmem:[%s0 + $0x38] sm:$0xff]
  %v23 = vld [vmem:[%s0 + $0x40] sm:$0xff]
  %v24 = vld [vmem:[%s0 + $0x48] sm:$0xff]
  %v25 = vld [vmem:[%s0 + $0x50] sm:$0xff]
  %v26 = vld [vmem:[%s0 + $0x58] sm:$0xff]
  %v27 = vld [vmem:[%s0 + $0x60] sm:$0xff]
  %v28 = vld [vmem:[%s0 + $0x68] sm:$0xff]
  %v29 = vld [vmem:[%s0 + $0x70] sm:$0xff]
  %v30 = vld [vmem:[%s0 + $0x78] sm:$0xff]
  %v31 = vld [vmem:[%s1] sm:$0xf]
  %v32 = vld [vmem:[%s1 + $0x4] sm:$0xf]
  %v33 = vld [vmem:[%s1 + $0x8] sm:$0xf]
  %v34 = vld [vmem:[%s1 + $0xc] sm:$0xf]
  %v35 = vld [vmem:[%s1 + $0x10] sm:$0xf]
  %v36 = vld [vmem:[%s1 + $0x14] sm:$0xf]
  %v37 = vld [vmem:[%s1 + $0x18] sm:$0xf]
  %v38 = vld [vmem:[%s1 + $0x1c] sm:$0xf]
  %v39 = vld [vmem:[%s1 + $0x20] sm:$0xf]
  %v40 = vld [vmem:[%s1 + $0x24] sm:$0xf]
  %v41 = vld [vmem:[%s1 + $0x28] sm:$0xf]
  %v42 = vld [vmem:[%s1 + $0x2c] sm:$0xf]
  %v43 = vld [vmem:[%s1 + $0x30] sm:$0xf]
  %v44 = vld [vmem:[%s1 + $0x34] sm:$0xf]
  %v45 = vld [vmem:[%s1 + $0x38] sm:$0xf]
  %v46 = vld [vmem:[%s1 + $0x3c] sm:$0xf]
  %v47 = vld [vmem:[%s1 + $0x40] sm:$0xf]
  %v48 = vld [vmem:[%s1 + $0x44] sm:$0xf]
  %v49 = vld [vmem:[%s1 + $0x48] sm:$0xf]
  %v50 = vld [vmem:[%s1 + $0x4c] sm:$0xf]
  %v51 = vld [vmem:[%s1 + $0x50] sm:$0xf]
  %v52 = vld [vmem:[%s1 + $0x54] sm:$0xf]
  %v53 = vld [vmem:[%s1 + $0x58] sm:$0xf]
  %v54 = vld [vmem:[%s1 + $0x5c] sm:$0xf]
  %v55 = vld [vmem:[%s1 + $0x60] sm:$0xf]
  %v56 = vld [vmem:[%s1 + $0x64] sm:$0xf]
  %v57 = vld [vmem:[%s1 + $0x68] sm:$0xf]
  %v58 = vld [vmem:[%s2] sm:$0xff]
  %v59 = vld [vmem:[%s2 + $0x8] sm:$0xff]
  %v60 = vld [vmem:[%s2 + $0x10] sm:$0xff]
  %v61 = vld [vmem:[%s2 + $0x18] sm:$0xff]
  %v62 = vld [vmem:[%s2 + $0x20] sm:$0xff]
  %v63 = vld [vmem:[%s2 + $0x28] sm:$0xff]
  %v64 = vld [vmem:[%s2 + $0x30] sm:$0xff]
  %v65 = vld [vmem:[%s2 + $0x38] sm:$0xff]
  %v66 = vld [vmem:[%s2 + $0x40] sm:$0xff]
  %v67 = vld [vmem:[%s2 + $0x48] sm:$0xff]
  %v68 = vld [vmem:[%s2 + $0x50] sm:$0xff]
  %v69 = vld [vmem:[%s2 + $0x58] sm:$0xff]
  %v70 = vld [vmem:[%s2 + $0x60] sm:$0xff]
  %v71 = vld [vmem:[%s2 + $0x68] sm:$0xff]
  %v72 = vld [vmem:[%s2 + $0x70] sm:$0xff]
  %v73 = vld [vmem:[%s2 + $0x78] sm:$0xff]
  %v90 = vunpack.c.l.b16 %v15
  %v91 = vunpack.c.h.b16 %v15
  %v92 = vunpack.c.l.b16 %v16
  %v93 = vunpack.c.h.b16 %v16
  %v94 = vunpack.c.l.b16 %v17
  %v95 = vunpack.c.h.b16 %v17
  %v96 = vunpack.c.l.b16 %v18
  %v97 = vunpack.c.h.b16 %v18
  %v98 = vunpack.c.l.b16 %v19
  %v99 = vunpack.c.h.b16 %v19
  %v100 = vunpack.c.l.b16 %v20
  %v101 = vunpack.c.h.b16 %v20
  %v102 = vunpack.c.l.b16 %v21
  %v103 = vunpack.c.h.b16 %v21
  %v104 = vunpack.c.l.b16 %v22
  %v105 = vunpack.c.h.b16 %v22
  %v106 = vunpack.c.l.b16 %v23
  %v107 = vunpack.c.h.b16 %v23
  %v108 = vunpack.c.l.b16 %v24
  %v109 = vunpack.c.h.b16 %v24
  %v110 = vunpack.c.l.b16 %v25
  %v111 = vunpack.c.h.b16 %v25
  %v112 = vunpack.c.l.b16 %v26
  %v113 = vunpack.c.h.b16 %v26
  %v114 = vunpack.c.l.b16 %v27
  %v115 = vunpack.c.h.b16 %v27
  %v116 = vunpack.c.l.b16 %v28
  %v117 = vunpack.c.h.b16 %v28
  %v118 = vunpack.c.l.b16 %v29
  %v119 = vunpack.c.h.b16 %v29
  %v120 = vunpack.c.l.b16 %v30
  %v121 = vunpack.c.h.b16 %v30
  %v122 = vpack.c.b16 %v92, %v90
  %v123 = vpack.c.b16 %v93, %v91
  %v124 = vpack.c.b16 %v96, %v94
  %v125 = vpack.c.b16 %v97, %v95
  %v126 = vpack.c.b16 %v100, %v98
  %v127 = vpack.c.b16 %v101, %v99
  %v128 = vpack.c.b16 %v104, %v102
  %v129 = vpack.c.b16 %v105, %v103
  %v130 = vpack.c.b16 %v108, %v106
  %v131 = vpack.c.b16 %v109, %v107
  %v132 = vpack.c.b16 %v112, %v110
  %v133 = vpack.c.b16 %v113, %v111
  %v134 = vpack.c.b16 %v116, %v114
  %v135 = vpack.c.b16 %v117, %v115
  %v136 = vpack.c.b16 %v120, %v118
  %v137 = vpack.c.b16 %v121, %v119
  %v173 = vunpack.c.l.b16 %v31
  %v174 = vunpack.c.l.b16 %v32
  %v175 = vunpack.c.l.b16 %v33
  %v176 = vunpack.c.l.b16 %v34
  %v177 = vunpack.c.l.b16 %v35
  %v178 = vunpack.c.l.b16 %v36
  %v179 = vunpack.c.l.b16 %v37
  %v180 = vunpack.c.l.b16 %v38
  %v181 = vunpack.c.l.b16 %v39
  %v182 = vunpack.c.l.b16 %v40
  %v183 = vunpack.c.l.b16 %v41
  %v184 = vunpack.c.l.b16 %v42
  %v185 = vunpack.c.l.b16 %v43
  %v186 = vunpack.c.l.b16 %v44
  %v187 = vunpack.c.l.b16 %v45
  %v188 = vunpack.c.l.b16 %v46
  %v189 = vunpack.c.l.b16 %v47
  %v190 = vunpack.c.l.b16 %v48
  %v191 = vunpack.c.l.b16 %v49
  %v192 = vunpack.c.l.b16 %v50
  %v193 = vunpack.c.l.b16 %v51
  %v194 = vunpack.c.l.b16 %v52
  %v195 = vunpack.c.l.b16 %v53
  %v196 = vunpack.c.l.b16 %v54
  %v197 = vunpack.c.l.b16 %v55
  %v198 = vunpack.c.l.b16 %v56
  %v199 = vunpack.c.l.b16 %v57
  %v200 = vpack.c.b16 %v174, %v173
  %v201 = vpack.c.b16 %v176, %v175
  %v202 = vpack.c.b16 %v178, %v177
  %v203 = vpack.c.b16 %v180, %v179
  %v204 = vpack.c.b16 %v182, %v181
  %v205 = vpack.c.b16 %v184, %v183
  %v206 = vpack.c.b16 %v186, %v185
  %v207 = vpack.c.b16 %v188, %v187
  %v208 = vpack.c.b16 %v190, %v189
  %v209 = vpack.c.b16 %v192, %v191
  %v210 = vpack.c.b16 %v194, %v193
  %v211 = vpack.c.b16 %v196, %v195
  %v212 = vpack.c.b16 %v198, %v197
  %v213 = vpack.c.b16 %v199, %v199
  %vm227 = vcmask 719872
  %v229 = vsel %vm227, %v123, 0
  %v232 = vsel %vm227, %v125, 0
  %v235 = vsel %vm227, %v127, 0
  %v238 = vsel %vm227, %v129, 0
  %v241 = vsel %vm227, %v131, 0
  %v244 = vsel %vm227, %v133, 0
  %v247 = vsel %vm227, %v135, 0
  %v250 = vsel %vm227, %v137, 0
  %vm252 = vcmask 1043456
  %v254 = vsel %vm252, %v213, 0
  %256 = vmatprep.subr.bf16.mxu0 0
  %257 = vmatpush1.bf16.msra.mxu0 %v200
  %258 = vmatprep.subr.bf16.mxu0 0
  %259 = vmatpush1.bf16.msra.mxu0 %v201
  %260 = vmatprep.subr.bf16.mxu0 0
  %261 = vmatpush1.bf16.msra.mxu0 %v202
  %262 = vmatprep.subr.bf16.mxu0 0
  %263 = vmatpush1.bf16.msra.mxu0 %v203
  %264 = vmatprep.subr.bf16.mxu0 0
  %265 = vmatpush1.bf16.msra.mxu0 %v204
  %266 = vmatprep.subr.bf16.mxu0 0
  %267 = vmatpush1.bf16.msra.mxu0 %v205
  %268 = vmatprep.subr.bf16.mxu0 0
  %269 = vmatpush1.bf16.msra.mxu0 %v206
  %270 = vmatprep.subr.bf16.mxu0 0
  %271 = vmatpush1.bf16.msra.mxu0 %v207
  %272 = vmatprep.subr.bf16.mxu0 0
  %273 = vmatpush1.bf16.msra.mxu0 %v208
  %274 = vmatprep.subr.bf16.mxu0 0
  %275 = vmatpush1.bf16.msra.mxu0 %v209
  %276 = vmatprep.subr.bf16.mxu0 0
  %277 = vmatpush1.bf16.msra.mxu0 %v210
  %278 = vmatprep.subr.bf16.mxu0 0
  %279 = vmatpush1.bf16.msra.mxu0 %v211
  %280 = vmatprep.subr.bf16.mxu0 0
  %281 = vmatpush1.bf16.msra.mxu0 %v212
  %282 = vmatprep.subr.bf16.mxu0 0
  %283 = vmatpush1.bf16.msra.mxu0 %v254
  %284 = vmatprep.subr.bf16.mxu0 0
  %285 = vmatpush1.bf16.msra.mxu0 0
  %286 = vmatprep.subr.bf16.mxu0 0
  %287 = vmatpush1.bf16.msra.mxu0 0
  %288 = vmatprep.mubr.bf16.mxu0 %v229
  %289 = vmatmul.mubr.bf16.gmra.mrb[0].mxu0 %v122
  %v290 = vpop.f32.mrb[0].mxu0
  %v291 = vadd.f32 %v58, %v290
  %v292 = vpop.f32.mrb[0].mxu0
  %v293 = vpop.f32.mrb[0].mxu0
  %v294 = vadd.f32 %v59, %v293
  %v295 = vpop.f32.mrb[0].mxu0
  %296 = vmatprep.mubr.bf16.mxu0 %v232
  %297 = vmatmul.mubr.bf16.gmra.mrb[0].mxu0 %v124
  %v298 = vpop.f32.mrb[0].mxu0
  %v299 = vadd.f32 %v60, %v298
  %v300 = vpop.f32.mrb[0].mxu0
  %v301 = vpop.f32.mrb[0].mxu0
  %v302 = vadd.f32 %v61, %v301
  %v303 = vpop.f32.mrb[0].mxu0
  %304 = vmatprep.mubr.bf16.mxu0 %v235
  %305 = vmatmul.mubr.bf16.gmra.mrb[0].mxu0 %v126
  %v306 = vpop.f32.mrb[0].mxu0
  %v307 = vadd.f32 %v62, %v306
  %v308 = vpop.f32.mrb[0].mxu0
  %v309 = vpop.f32.mrb[0].mxu0
  %v310 = vadd.f32 %v63, %v309
  %v311 = vpop.f32.mrb[0].mxu0
  %312 = vmatprep.mubr.bf16.mxu0 %v238
  %313 = vmatmul.mubr.bf16.gmra.mrb[0].mxu0 %v128
  %v314 = vpop.f32.mrb[0].mxu0
  %v315 = vadd.f32 %v64, %v314
  %v316 = vpop.f32.mrb[0].mxu0
  %v317 = vpop.f32.mrb[0].mxu0
  %v318 = vadd.f32 %v65, %v317
  %v319 = vpop.f32.mrb[0].mxu0
  %320 = vmatprep.mubr.bf16.mxu0 %v241
  %321 = vmatmul.mubr.bf16.gmra.mrb[0].mxu0 %v130
  %v322 = vpop.f32.mrb[0].mxu0
  %v323 = vadd.f32 %v66, %v322
  %v324 = vpop.f32.mrb[0].mxu0
  %v325 = vpop.f32.mrb[0].mxu0
  %v326 = vadd.f32 %v67, %v325
  %v327 = vpop.f32.mrb[0].mxu0
  %328 = vmatprep.mubr.bf16.mxu0 %v244
  %329 = vmatmul.mubr.bf16.gmra.mrb[0].mxu0 %v132
  %v330 = vpop.f32.mrb[0].mxu0
  %v331 = vadd.f32 %v68, %v330
  %v332 = vpop.f32.mrb[0].mxu0
  %v333 = vpop.f32.mrb[0].mxu0
  %v334 = vadd.f32 %v69, %v333
  %v335 = vpop.f32.mrb[0].mxu0
  %336 = vmatprep.mubr.bf16.mxu0 %v247
  %337 = vmatmul.mubr.bf16.gmra.mrb[0].mxu0 %v134
  %v338 = vpop.f32.mrb[0].mxu0
  %v339 = vadd.f32 %v70, %v338
  %v340 = vpop.f32.mrb[0].mxu0
  %v341 = vpop.f32.mrb[0].mxu0
  %v342 = vadd.f32 %v71, %v341
  %v343 = vpop.f32.mrb[0].mxu0
  %344 = vmatprep.mubr.bf16.mxu0 %v250
  %345 = vmatmul.mubr.bf16.gmra.mrb[0].mxu0 %v136
  %v346 = vpop.f32.mrb[0].mxu0
  %v347 = vadd.f32 %v72, %v346
  %v348 = vpop.f32.mrb[0].mxu0
  %v349 = vpop.f32.mrb[0].mxu0
  %v350 = vadd.f32 %v73, %v349
  %v351 = vpop.f32.mrb[0].mxu0
  %352 = vdwg.mxu0
  %vm353 = vcmask 64512
  %354 = vst.msk [vmem:[%s3] sm:$0xff] %vm353, %v291
  %355 = vst.msk [vmem:[%s3 + $0x8] sm:$0xff] %vm353, %v294
  %356 = vst.msk [vmem:[%s3 + $0x10] sm:$0xff] %vm353, %v299
  %357 = vst.msk [vmem:[%s3 + $0x18] sm:$0xff] %vm353, %v302
  %358 = vst.msk [vmem:[%s3 + $0x20] sm:$0xff] %vm353, %v307
  %359 = vst.msk [vmem:[%s3 + $0x28] sm:$0xff] %vm353, %v310
  %360 = vst.msk [vmem:[%s3 + $0x30] sm:$0xff] %vm353, %v315
  %361 = vst.msk [vmem:[%s3 + $0x38] sm:$0xff] %vm353, %v318
  %362 = vst.msk [vmem:[%s3 + $0x40] sm:$0xff] %vm353, %v323
  %363 = vst.msk [vmem:[%s3 + $0x48] sm:$0xff] %vm353, %v326
  %364 = vst.msk [vmem:[%s3 + $0x50] sm:$0xff] %vm353, %v331
  %365 = vst.msk [vmem:[%s3 + $0x58] sm:$0xff] %vm353, %v334
  %366 = vst.msk [vmem:[%s3 + $0x60] sm:$0xff] %vm353, %v339
  %367 = vst.msk [vmem:[%s3 + $0x68] sm:$0xff] %vm353, %v342
  %368 = vst.msk [vmem:[%s3 + $0x70] sm:$0xff] %vm353, %v347
  %369 = vst.msk [vmem:[%s3 + $0x78] sm:$0xff] %vm353, %v350
  // Predicated region
  $region14: #{_lambda_.20} parent=0 // pred_check
    _
  $region15: #{_lambda_.20} parent=0 // pred_check_branch
    %371 = sbr.rel (0) target = $region17
  $region16: #{_lambda_.20} parent=0 // pred_region
    _
  $region17: #{_lambda_.20} parent=0 // pred_fallthru
    _
  // Predicated region
  $region18: #{_lambda_.20} parent=0 // pred_check
    _
  $region19: #{_lambda_.20} parent=0 // pred_check_branch
    %373 = sbr.rel (0) target = $region21
  $region20: #{_lambda_.20} parent=0 // pred_region
    _
  $region21: #{_lambda_.20} parent=0 // pred_fallthru
    _

// kernel: _lambda_.23
$region0: #{_lambda_.23}
  #allocation0 [shape = 'u32[]', space=smem, size = 0x4, offset = 0x4, fixed_abs, tag = 'smem constant byte address 0x4 - core index']
  #allocation1 [shape = 'u32[144,128]{1,0:T(1,128)}', space=vmem, size = 0x12000, scoped, tag = 'internal scratch']
  %s0 = inlined_call_operand.vmem [shape: bf16[128,8], index: 0, kind: input, shape index: {}]
  %s1 = inlined_call_operand.vmem [shape: f32[1,8], index: 1, kind: input, shape index: {}]
  %s2 = inlined_call_operand.vmem [shape: f32[1,8], index: 2, kind: input, shape index: {}]
  %s3 = inlined_call_operand.vmem [shape: bf16[8,32], index: 3, kind: input, shape index: {}]
  %s4 = inlined_call_operand.vmem [shape: f32[128,32], index: 4, kind: output, shape index: {}]
  %s5 = sld [smem:[#allocation0]]
  $region26: #{_lambda_.23} parent=0
    _
  %s7 = ssub.s32 1, %s5
  %s8 = scalar_select 0, %s7, %s5
  // Predicated region
  $region2: #{_lambda_.23} parent=0 // pred_check
    _
  $region3: #{_lambda_.23} parent=0 // pred_check_branch
    %10 = sbr.rel (0) target = $region5
  $region4: #{_lambda_.23} parent=0 // pred_region
    _
  $region5: #{_lambda_.23} parent=0 // pred_fallthru
    _
  // Predicated region
  $region6: #{_lambda_.23} parent=0 // pred_check
    _
  $region7: #{_lambda_.23} parent=0 // pred_check_branch
    %12 = sbr.rel (0) target = $region9
  $region8: #{_lambda_.23} parent=0 // pred_region
    _
  $region9: #{_lambda_.23} parent=0 // pred_fallthru
    _
  // Predicated region
  $region10: #{_lambda_.23} parent=0 // pred_check
    _
  $region11: #{_lambda_.23} parent=0 // pred_check_branch
    %14 = sbr.rel (0) target = $region13
  $region12: #{_lambda_.23} parent=0 // pred_region
    _
  $region13: #{_lambda_.23} parent=0 // pred_fallthru
    _
  // Predicated region
  $region14: #{_lambda_.23} parent=0 // pred_check
    _
  $region15: #{_lambda_.23} parent=0 // pred_check_branch
    %16 = sbr.rel (0) target = $region17
  $region16: #{_lambda_.23} parent=0 // pred_region
    _
  $region17: #{_lambda_.23} parent=0 // pred_fallthru
    _
  %v18 = vld [vmem:[%s0] sm:$0xf]
  %v19 = vld [vmem:[%s0 + $0x4] sm:$0xf]
  %v20 = vld [vmem:[%s0 + $0x8] sm:$0xf]
  %v21 = vld [vmem:[%s0 + $0xc] sm:$0xf]
  %v22 = vld [vmem:[%s0 + $0x10] sm:$0xf]
  %v23 = vld [vmem:[%s0 + $0x14] sm:$0xf]
  %v24 = vld [vmem:[%s0 + $0x18] sm:$0xf]
  %v25 = vld [vmem:[%s0 + $0x1c] sm:$0xf]
  %v26 = vld [vmem:[%s0 + $0x20] sm:$0xf]
  %v27 = vld [vmem:[%s0 + $0x24] sm:$0xf]
  %v28 = vld [vmem:[%s0 + $0x28] sm:$0xf]
  %v29 = vld [vmem:[%s0 + $0x2c] sm:$0xf]
  %v30 = vld [vmem:[%s0 + $0x30] sm:$0xf]
  %v31 = vld [vmem:[%s0 + $0x34] sm:$0xf]
  %v32 = vld [vmem:[%s0 + $0x38] sm:$0xf]
  %v33 = vld [vmem:[%s0 + $0x3c] sm:$0xf]
  %v34 = vunpack.c.l.bf16 %v18
  %v35 = vunpack.c.l.bf16 %v19
  %v36 = vunpack.c.l.bf16 %v20
  %v37 = vunpack.c.l.bf16 %v21
  %v38 = vunpack.c.l.bf16 %v22
  %v39 = vunpack.c.l.bf16 %v23
  %v40 = vunpack.c.l.bf16 %v24
  %v41 = vunpack.c.l.bf16 %v25
  %v42 = vunpack.c.l.bf16 %v26
  %v43 = vunpack.c.l.bf16 %v27
  %v44 = vunpack.c.l.bf16 %v28
  %v45 = vunpack.c.l.bf16 %v29
  %v46 = vunpack.c.l.bf16 %v30
  %v47 = vunpack.c.l.bf16 %v31
  %v48 = vunpack.c.l.bf16 %v32
  %v49 = vunpack.c.l.bf16 %v33
  %v50 = vld [vmem:[%s1] sm:$0x1]
  %v52 = vlaneseq
  %v53 = vshrl.u32 %v52, 7
  %v54 = vsub.s32 0, %v53
  %v55 = vrot.slane %v50, %v54
  %v57 = vmul.f32 %v34, %v55
  %v58 = vmul.f32 %v35, %v55
  %v59 = vmul.f32 %v36, %v55
  %v60 = vmul.f32 %v37, %v55
  %v61 = vmul.f32 %v38, %v55
  %v62 = vmul.f32 %v39, %v55
  %v63 = vmul.f32 %v40, %v55
  %v64 = vmul.f32 %v41, %v55
  %v65 = vmul.f32 %v42, %v55
  %v66 = vmul.f32 %v43, %v55
  %v67 = vmul.f32 %v44, %v55
  %v68 = vmul.f32 %v45, %v55
  %v69 = vmul.f32 %v46, %v55
  %v70 = vmul.f32 %v47, %v55
  %v71 = vmul.f32 %v48, %v55
  %v72 = vmul.f32 %v49, %v55
  %v73 = vld [vmem:[%s2] sm:$0x1]
  %v75 = vlaneseq
  %v76 = vshrl.u32 %v75, 7
  %v77 = vsub.s32 0, %v76
  %v78 = vrot.slane %v73, %v77
  %v80 = vadd.f32 %v57, %v78
  %v81 = vadd.f32 %v58, %v78
  %v82 = vadd.f32 %v59, %v78
  %v83 = vadd.f32 %v60, %v78
  %v84 = vadd.f32 %v61, %v78
  %v85 = vadd.f32 %v62, %v78
  %v86 = vadd.f32 %v63, %v78
  %v87 = vadd.f32 %v64, %v78
  %v88 = vadd.f32 %v65, %v78
  %v89 = vadd.f32 %v66, %v78
  %v90 = vadd.f32 %v67, %v78
  %v91 = vadd.f32 %v68, %v78
  %v92 = vadd.f32 %v69, %v78
  %v93 = vadd.f32 %v70, %v78
  %v94 = vadd.f32 %v71, %v78
  %v95 = vadd.f32 %v72, %v78
  %v96 = vmax.f32 %v80, 0.0
  %v97 = vmax.f32 %v81, 0.0
  %v98 = vmax.f32 %v82, 0.0
  %v99 = vmax.f32 %v83, 0.0
  %v100 = vmax.f32 %v84, 0.0
  %v101 = vmax.f32 %v85, 0.0
  %v102 = vmax.f32 %v86, 0.0
  %v103 = vmax.f32 %v87, 0.0
  %v104 = vmax.f32 %v88, 0.0
  %v105 = vmax.f32 %v89, 0.0
  %v106 = vmax.f32 %v90, 0.0
  %v107 = vmax.f32 %v91, 0.0
  %v108 = vmax.f32 %v92, 0.0
  %v109 = vmax.f32 %v93, 0.0
  %v110 = vmax.f32 %v94, 0.0
  %v111 = vmax.f32 %v95, 0.0
  %v112 = vpack.c.bf16 %v97, %v96
  %v113 = vpack.c.bf16 %v99, %v98
  %v114 = vpack.c.bf16 %v101, %v100
  %v115 = vpack.c.bf16 %v103, %v102
  %v116 = vpack.c.bf16 %v105, %v104
  %v117 = vpack.c.bf16 %v107, %v106
  %v118 = vpack.c.bf16 %v109, %v108
  %v119 = vpack.c.bf16 %v111, %v110
  %v120 = vld [vmem:[%s3] sm:$0xf]
  %vm121 = vcmask 64512
  %v123 = vsel %vm121, %v112, 0
  %v126 = vsel %vm121, %v113, 0
  %v129 = vsel %vm121, %v114, 0
  %v132 = vsel %vm121, %v115, 0
  %v135 = vsel %vm121, %v116, 0
  %v138 = vsel %vm121, %v117, 0
  %v141 = vsel %vm121, %v118, 0
  %v144 = vsel %vm121, %v119, 0
  %vm146 = vcmask 1043456
  %v148 = vsel %vm146, %v120, 0
  %150 = vmatprep.subr.bf16.mxu0 0
  %151 = vmatpush1.bf16.msra.mxu0 %v148
  %152 = vmatprep.subr.bf16.mxu0 0
  %153 = vmatpush1.bf16.msra.mxu0 0
  %154 = vmatprep.subr.bf16.mxu0 0
  %155 = vmatpush1.bf16.msra.mxu0 0
  %156 = vmatprep.subr.bf16.mxu0 0
  %157 = vmatpush1.bf16.msra.mxu0 0
  %158 = vmatprep.subr.bf16.mxu0 0
  %159 = vmatpush1.bf16.msra.mxu0 0
  %160 = vmatprep.subr.bf16.mxu0 0
  %161 = vmatpush1.bf16.msra.mxu0 0
  %162 = vmatprep.subr.bf16.mxu0 0
  %163 = vmatpush1.bf16.msra.mxu0 0
  %164 = vmatprep.subr.bf16.mxu0 0
  %165 = vmatpush1.bf16.msra.mxu0 0
  %166 = vmatprep.subr.bf16.mxu0 0
  %167 = vmatpush1.bf16.msra.mxu0 0
  %168 = vmatprep.subr.bf16.mxu0 0
  %169 = vmatpush1.bf16.msra.mxu0 0
  %170 = vmatprep.subr.bf16.mxu0 0
  %171 = vmatpush1.bf16.msra.mxu0 0
  %172 = vmatprep.subr.bf16.mxu0 0
  %173 = vmatpush1.bf16.msra.mxu0 0
  %174 = vmatprep.subr.bf16.mxu0 0
  %175 = vmatpush1.bf16.msra.mxu0 0
  %176 = vmatprep.subr.bf16.mxu0 0
  %177 = vmatpush1.bf16.msra.mxu0 0
  %178 = vmatprep.subr.bf16.mxu0 0
  %179 = vmatpush1.bf16.msra.mxu0 0
  %180 = vmatprep.subr.bf16.mxu0 0
  %181 = vmatpush1.bf16.msra.mxu0 0
  %182 = vmatprep.mubr.bf16.mxu0 0
  %183 = vmatmul.mubr.bf16.gmra.mrb[0].mxu0 %v123
  %v184 = vpop.f32.mrb[0].mxu0
  %v185 = vadd.f32 0.0, %v184
  %v186 = vpop.f32.mrb[0].mxu0
  %v187 = vpop.f32.mrb[0].mxu0
  %v188 = vadd.f32 0.0, %v187
  %v189 = vpop.f32.mrb[0].mxu0
  %190 = vmatprep.mubr.bf16.mxu0 0
  %191 = vmatmul.mubr.bf16.gmra.mrb[0].mxu0 %v126
  %v192 = vpop.f32.mrb[0].mxu0
  %v193 = vadd.f32 0.0, %v192
  %v194 = vpop.f32.mrb[0].mxu0
  %v195 = vpop.f32.mrb[0].mxu0
  %v196 = vadd.f32 0.0, %v195
  %v197 = vpop.f32.mrb[0].mxu0
  %198 = vmatprep.mubr.bf16.mxu0 0
  %199 = vmatmul.mubr.bf16.gmra.mrb[0].mxu0 %v129
  %v200 = vpop.f32.mrb[0].mxu0
  %v201 = vadd.f32 0.0, %v200
  %v202 = vpop.f32.mrb[0].mxu0
  %v203 = vpop.f32.mrb[0].mxu0
  %v204 = vadd.f32 0.0, %v203
  %v205 = vpop.f32.mrb[0].mxu0
  %206 = vmatprep.mubr.bf16.mxu0 0
  %207 = vmatmul.mubr.bf16.gmra.mrb[0].mxu0 %v132
  %v208 = vpop.f32.mrb[0].mxu0
  %v209 = vadd.f32 0.0, %v208
  %v210 = vpop.f32.mrb[0].mxu0
  %v211 = vpop.f32.mrb[0].mxu0
  %v212 = vadd.f32 0.0, %v211
  %v213 = vpop.f32.mrb[0].mxu0
  %214 = vmatprep.mubr.bf16.mxu0 0
  %215 = vmatmul.mubr.bf16.gmra.mrb[0].mxu0 %v135
  %v216 = vpop.f32.mrb[0].mxu0
  %v217 = vadd.f32 0.0, %v216
  %v218 = vpop.f32.mrb[0].mxu0
  %v219 = vpop.f32.mrb[0].mxu0
  %v220 = vadd.f32 0.0, %v219
  %v221 = vpop.f32.mrb[0].mxu0
  %222 = vmatprep.mubr.bf16.mxu0 0
  %223 = vmatmul.mubr.bf16.gmra.mrb[0].mxu0 %v138
  %v224 = vpop.f32.mrb[0].mxu0
  %v225 = vadd.f32 0.0, %v224
  %v226 = vpop.f32.mrb[0].mxu0
  %v227 = vpop.f32.mrb[0].mxu0
  %v228 = vadd.f32 0.0, %v227
  %v229 = vpop.f32.mrb[0].mxu0
  %230 = vmatprep.mubr.bf16.mxu0 0
  %231 = vmatmul.mubr.bf16.gmra.mrb[0].mxu0 %v141
  %v232 = vpop.f32.mrb[0].mxu0
  %v233 = vadd.f32 0.0, %v232
  %v234 = vpop.f32.mrb[0].mxu0
  %v235 = vpop.f32.mrb[0].mxu0
  %v236 = vadd.f32 0.0, %v235
  %v237 = vpop.f32.mrb[0].mxu0
  %238 = vmatprep.mubr.bf16.mxu0 0
  %239 = vmatmul.mubr.bf16.gmra.mrb[0].mxu0 %v144
  %v240 = vpop.f32.mrb[0].mxu0
  %v241 = vadd.f32 0.0, %v240
  %v242 = vpop.f32.mrb[0].mxu0
  %v243 = vpop.f32.mrb[0].mxu0
  %v244 = vadd.f32 0.0, %v243
  %v245 = vpop.f32.mrb[0].mxu0
  %246 = vdwg.mxu0
  %vm247 = vcmask 261120
  %248 = vst.msk [vmem:[%s4] sm:$0xff] %vm247, %v185
  %249 = vst.msk [vmem:[%s4 + $0x8] sm:$0xff] %vm247, %v188
  %250 = vst.msk [vmem:[%s4 + $0x10] sm:$0xff] %vm247, %v193
  %251 = vst.msk [vmem:[%s4 + $0x18] sm:$0xff] %vm247, %v196
  %252 = vst.msk [vmem:[%s4 + $0x20] sm:$0xff] %vm247, %v201
  %253 = vst.msk [vmem:[%s4 + $0x28] sm:$0xff] %vm247, %v204
  %254 = vst.msk [vmem:[%s4 + $0x30] sm:$0xff] %vm247, %v209
  %255 = vst.msk [vmem:[%s4 + $0x38] sm:$0xff] %vm247, %v212
  %256 = vst.msk [vmem:[%s4 + $0x40] sm:$0xff] %vm247, %v217
  %257 = vst.msk [vmem:[%s4 + $0x48] sm:$0xff] %vm247, %v220
  %258 = vst.msk [vmem:[%s4 + $0x50] sm:$0xff] %vm247, %v225
  %259 = vst.msk [vmem:[%s4 + $0x58] sm:$0xff] %vm247, %v228
  %260 = vst.msk [vmem:[%s4 + $0x60] sm:$0xff] %vm247, %v233
  %261 = vst.msk [vmem:[%s4 + $0x68] sm:$0xff] %vm247, %v236
  %262 = vst.msk [vmem:[%s4 + $0x70] sm:$0xff] %vm247, %v241
  %263 = vst.msk [vmem:[%s4 + $0x78] sm:$0xff] %vm247, %v244
  // Predicated region
  $region18: #{_lambda_.23} parent=0 // pred_check
    _
  $region19: #{_lambda_.23} parent=0 // pred_check_branch
    %265 = sbr.rel (0) target = $region21
  $region20: #{_lambda_.23} parent=0 // pred_region
    _
  $region21: #{_lambda_.23} parent=0 // pred_fallthru
    _
  // Predicated region
  $region22: #{_lambda_.23} parent=0 // pred_check
    _
  $region23: #{_lambda_.23} parent=0 // pred_check_branch
    %267 = sbr.rel (0) target = $region25
  $region24: #{_lambda_.23} parent=0 // pred_region
    _
  $region25: #{_lambda_.23} parent=0 // pred_fallthru
    _

// kernel: _lambda_.24
$region0: #{_lambda_.24}
  #allocation0 [shape = 'u32[]', space=smem, size = 0x4, offset = 0x4, fixed_abs, tag = 'smem constant byte address 0x4 - core index']
  #allocation1 [shape = 'u32[144,128]{1,0:T(1,128)}', space=vmem, size = 0x12000, scoped, tag = 'internal scratch']
  %s0 = inlined_call_operand.vmem [shape: bf16[1024,216], index: 0, kind: input, shape index: {}]
  %s1 = inlined_call_operand.vmem [shape: bf16[216,4], index: 1, kind: input, shape index: {}]
  %s2 = inlined_call_operand.vmem [shape: f32[1024,4], index: 2, kind: output, shape index: {}]
  %s3 = sld [smem:[#allocation0]]
  $region41: #{_lambda_.24} parent=0
    _
  %s5 = ssub.s32 1, %s3
  %s6 = scalar_select 0, %s5, %s3
  loop: start=0, step=1, limit=4
  $region2: #{_lambda_.24} parent=0 // loop_pre_header
    _
  $region3: #{_lambda_.24} parent=0 // loop_header
    %s8 = sphi 0, %s12
    %p9 = scmp.ge.s32.totalorder %s8, 4
    %s18 = sphi 0, %s20
    %s21 = sphi 0, %s18
    %s22 = sphi 0, %s21
    %s38 = sphi 0, %s22
    %s42 = sphi 0, %s42
    %s44 = sphi 0, %s42
    %s45 = sphi 0, %s44
    %s59 = sphi 0, %s45
    %s65 = sphi 0, %s67
    %s68 = sphi 0, %s65
    %s69 = sphi 0, %s68
    %s85 = sphi 0, %s69
  $region4: #{_lambda_.24} parent=0 // loop_header_branch
    %11 = sbr.rel (%p9) target = $region8
  $region5: #{_lambda_.24} parent=0 // loop_body
    %s13 = ssub.s32 %s8, 1
    %s14 = ssub.s32 %s8, 2
    %s15 = sadd.s32 %s8, 1
    %s16 = ssub.s32 %s8, %s15
    %p17 = scmp.eq.s32.totalorder %s16, 0
    %s19 = sadd.s32 %s18, 1
    %s20 = scalar_select %p17, %s18, %s19
    %p23 = pneg %p17
    %p24 = scmp.eq.s32.totalorder %s8, 1
    %p25 = por %p23, %p24
    %p26 = scmp.ne.s32.totalorder %s18, %s21
    %p27 = scmp.eq.s32.totalorder %s8, 0
    %p28 = por %p26, %p27
    %p29 = scmp.ne.s32.totalorder %s18, %s21
    %p30 = scmp.eq.s32.totalorder %s13, 1
    %p31 = por %p29, %p30
    %p32 = scmp.ne.s32.totalorder %s21, %s22
    %p33 = scmp.eq.s32.totalorder %s13, 0
    %p34 = por %p32, %p33
    %p35 = scmp.ne.s32.totalorder %s21, %s22
    %p36 = scmp.eq.s32.totalorder %s14, 1
    %p37 = por %p35, %p36
    %p39 = scmp.ne.s32.totalorder %s22, %s38
    %p40 = scmp.eq.s32.totalorder %s14, 0
    %p41 = por %p39, %p40
    %s43 = sadd.s32 %s42, 1
    %p46 = scmp.eq.s32.totalorder %s8, 1
    %p47 = scmp.ne.s32.totalorder %s42, %s44
    %p48 = scmp.eq.s32.totalorder %s8, 0
    %p49 = por %p47, %p48
    %p50 = scmp.ne.s32.totalorder %s42, %s44
    %p51 = scmp.eq.s32.totalorder %s13, 1
    %p52 = por %p50, %p51
    %p53 = scmp.ne.s32.totalorder %s44, %s45
    %p54 = scmp.eq.s32.totalorder %s13, 0
    %p55 = por %p53, %p54
    %p56 = scmp.ne.s32.totalorder %s44, %s45
    %p57 = scmp.eq.s32.totalorder %s14, 1
    %p58 = por %p56, %p57
    %p60 = scmp.ne.s32.totalorder %s45, %s59
    %p61 = scmp.eq.s32.totalorder %s14, 0
    %p62 = por %p60, %p61
    %s63 = ssub.s32 %s8, %s15
    %p64 = scmp.eq.s32.totalorder %s63, 0
    %s66 = sadd.s32 %s65, 1
    %s67 = scalar_select %p64, %s65, %s66
    %p70 = pneg %p64
    %p71 = scmp.eq.s32.totalorder %s8, 1
    %p72 = por %p70, %p71
    %p73 = scmp.ne.s32.totalorder %s65, %s68
    %p74 = scmp.eq.s32.totalorder %s8, 0
    %p75 = por %p73, %p74
    %p76 = scmp.ne.s32.totalorder %s65, %s68
    %p77 = scmp.eq.s32.totalorder %s13, 1
    %p78 = por %p76, %p77
    %p79 = scmp.ne.s32.totalorder %s68, %s69
    %p80 = scmp.eq.s32.totalorder %s13, 0
    %p81 = por %p79, %p80
    %p82 = scmp.ne.s32.totalorder %s68, %s69
    %p83 = scmp.eq.s32.totalorder %s14, 1
    %p84 = por %p82, %p83
    %p86 = scmp.ne.s32.totalorder %s69, %s85
    %p87 = scmp.eq.s32.totalorder %s14, 0
    %p88 = por %p86, %p87
    %p89 = scmp.le.s32.totalorder 1, %s8
    %p90 = scmp.lt.s32.totalorder %s8, 3
    %p91 = pnand %p89, %p90
    %p92 = pneg %p91
    // Predicated region
    $region9: #{_lambda_.24} parent=5 // pred_check
      _
    $region10: #{_lambda_.24} parent=5 // pred_check_branch
      %94 = sbr.rel (%p91) target = $region12
    $region11: #{_lambda_.24} parent=5 // pred_region
      %s95 = ssub.s32 %s8, 1
      // Predicated region
      $region13: #{_lambda_.24} parent=11 // pred_check
        %p96 = pneg %p55
      $region14: #{_lambda_.24} parent=11 // pred_check_branch
        %98 = sbr.rel (%p96) target = $region16
      $region15: #{_lambda_.24} parent=11 // pred_region
        _
      $region16: #{_lambda_.24} parent=11 // pred_fallthru
        _
    $region12: #{_lambda_.24} parent=5 // pred_fallthru
      _
    %p99 = scmp.lt.s32.totalorder %s8, 2
    // Predicated region
    $region17: #{_lambda_.24} parent=5 // pred_check
      %p100 = pneg %p99
    $region18: #{_lambda_.24} parent=5 // pred_check_branch
      %102 = sbr.rel (%p100) target = $region20
    $region19: #{_lambda_.24} parent=5 // pred_region
      // Predicated region
      $region21: #{_lambda_.24} parent=19 // pred_check
        %p103 = pneg %p28
      $region22: #{_lambda_.24} parent=19 // pred_check_branch
        %105 = sbr.rel (%p103) target = $region24
      $region23: #{_lambda_.24} parent=19 // pred_region
        %s106 = smul.u32 64, %s8
        %p107 = scmp.lt.s32.totalorder %s106, 127
        %s108 = scalar_select %p107, %s106, 127
        %s109 = smul.addr %s108, 2
        %s110 = smul.addr %s109, 4
        %s111 = scalar_lea.vmem %s0, %s110
        %s112 = smul.u32 64, %s8
      $region24: #{_lambda_.24} parent=19 // pred_fallthru
        _
    $region20: #{_lambda_.24} parent=5 // pred_fallthru
      _
    %p113 = scmp.le.s32.totalorder 1, %s8
    %p114 = scmp.lt.s32.totalorder %s8, 3
    %p115 = pnand %p113, %p114
    %p116 = pneg %p115
    // Predicated region
    $region25: #{_lambda_.24} parent=5 // pred_check
      _
    $region26: #{_lambda_.24} parent=5 // pred_check_branch
      %118 = sbr.rel (%p115) target = $region28
    $region27: #{_lambda_.24} parent=5 // pred_region
      %s119 = ssub.s32 %s8, 1
      %s120 = smul.u32 64, %s13
      %p121 = scmp.lt.s32.totalorder %s120, 127
      %s122 = scalar_select %p121, %s120, 127
      %s123 = smul.addr %s122, 2
      %s124 = smul.addr %s123, 4
      %s125 = scalar_lea.vmem %s0, %s124
      %p126 = pneg %p34
      %p127 = pneg %p31
      %p128 = pneg %p55
      %p129 = pneg %p52
      %p130 = pneg %p81
      %p131 = pneg %p78
      %s132 = smul.u32 64, %s13
      %p133 = scmp.lt.s32.totalorder %s132, 127
      %s134 = scalar_select %p133, %s132, 127
      %s135 = smul.addr %s134, 8
      %s136 = scalar_lea.vmem %s2, %s135
      %s137 = smul.u32 64, %s13
      %p138 = scmp.lt.s32.totalorder %s137, 127
      %s139 = scalar_select %p138, %s137, 127
      %s140 = smul.addr %s139, 2
      %s141 = smul.addr %s140, 4
      %s142 = scalar_lea.vmem %s0, %s141
      %s143 = smul.u32 64, %s13
      %s144 = smul.u32 64, %s13
      %p145 = scmp.lt.s32.totalorder %s144, 127
      %s146 = scalar_select %p145, %s144, 127
      %s147 = smul.addr %s146, 8
      %s148 = scalar_lea.vmem %s2, %s147
      %s149 = smul.u32 64, %s13
      %v151 = vld [vmem:[%s142] sm:$0xff]
      %v152 = vld [vmem:[%s142 + $0x8] sm:$0xff]
      %v153 = vld [vmem:[%s142 + $0x10] sm:$0xff]
      %v154 = vld [vmem:[%s142 + $0x18] sm:$0xff]
      %v155 = vld [vmem:[%s142 + $0x20] sm:$0xff]
      %v156 = vld [vmem:[%s142 + $0x28] sm:$0xff]
      %v157 = vld [vmem:[%s142 + $0x30] sm:$0xff]
      %v158 = vld [vmem:[%s142 + $0x38] sm:$0xff]
      %v159 = vld [vmem:[%s142 + $0x40] sm:$0xff]
      %v160 = vld [vmem:[%s142 + $0x48] sm:$0xff]
      %v161 = vld [vmem:[%s142 + $0x50] sm:$0xff]
      %v162 = vld [vmem:[%s142 + $0x58] sm:$0xff]
      %v163 = vld [vmem:[%s142 + $0x60] sm:$0xff]
      %v164 = vld [vmem:[%s142 + $0x68] sm:$0xff]
      %v165 = vld [vmem:[%s142 + $0x70] sm:$0xff]
      %v166 = vld [vmem:[%s142 + $0x78] sm:$0xff]
      %v167 = vld [vmem:[%s142 + $0x80] sm:$0xff]
      %v168 = vld [vmem:[%s142 + $0x88] sm:$0xff]
      %v169 = vld [vmem:[%s142 + $0x90] sm:$0xff]
      %v170 = vld [vmem:[%s142 + $0x98] sm:$0xff]
      %v171 = vld [vmem:[%s142 + $0xa0] sm:$0xff]
      %v172 = vld [vmem:[%s142 + $0xa8] sm:$0xff]
      %v173 = vld [vmem:[%s142 + $0xb0] sm:$0xff]
      %v174 = vld [vmem:[%s142 + $0xb8] sm:$0xff]
      %v175 = vld [vmem:[%s142 + $0xc0] sm:$0xff]
      %v176 = vld [vmem:[%s142 + $0xc8] sm:$0xff]
      %v177 = vld [vmem:[%s142 + $0xd0] sm:$0xff]
      %v178 = vld [vmem:[%s142 + $0xd8] sm:$0xff]
      %v179 = vld [vmem:[%s142 + $0xe0] sm:$0xff]
      %v180 = vld [vmem:[%s142 + $0xe8] sm:$0xff]
      %v181 = vld [vmem:[%s142 + $0xf0] sm:$0xff]
      %v182 = vld [vmem:[%s142 + $0xf8] sm:$0xff]
      %v183 = vld [vmem:[%s142 + $0x100] sm:$0xff]
      %v184 = vld [vmem:[%s142 + $0x108] sm:$0xff]
      %v185 = vld [vmem:[%s142 + $0x110] sm:$0xff]
      %v186 = vld [vmem:[%s142 + $0x118] sm:$0xff]
      %v187 = vld [vmem:[%s142 + $0x120] sm:$0xff]
      %v188 = vld [vmem:[%s142 + $0x128] sm:$0xff]
      %v189 = vld [vmem:[%s142 + $0x130] sm:$0xff]
      %v190 = vld [vmem:[%s142 + $0x138] sm:$0xff]
      %v191 = vld [vmem:[%s142 + $0x140] sm:$0xff]
      %v192 = vld [vmem:[%s142 + $0x148] sm:$0xff]
      %v193 = vld [vmem:[%s142 + $0x150] sm:$0xff]
      %v194 = vld [vmem:[%s142 + $0x158] sm:$0xff]
      %v195 = vld [vmem:[%s142 + $0x160] sm:$0xff]
      %v196 = vld [vmem:[%s142 + $0x168] sm:$0xff]
      %v197 = vld [vmem:[%s142 + $0x170] sm:$0xff]
      %v198 = vld [vmem:[%s142 + $0x178] sm:$0xff]
      %v199 = vld [vmem:[%s142 + $0x180] sm:$0xff]
      %v200 = vld [vmem:[%s142 + $0x188] sm:$0xff]
      %v201 = vld [vmem:[%s142 + $0x190] sm:$0xff]
      %v202 = vld [vmem:[%s142 + $0x198] sm:$0xff]
      %v203 = vld [vmem:[%s142 + $0x1a0] sm:$0xff]
      %v204 = vld [vmem:[%s142 + $0x1a8] sm:$0xff]
      %v205 = vld [vmem:[%s142 + $0x1b0] sm:$0xff]
      %v206 = vld [vmem:[%s142 + $0x1b8] sm:$0xff]
      %v207 = vld [vmem:[%s142 + $0x1c0] sm:$0xff]
      %v208 = vld [vmem:[%s142 + $0x1c8] sm:$0xff]
      %v209 = vld [vmem:[%s142 + $0x1d0] sm:$0xff]
      %v210 = vld [vmem:[%s142 + $0x1d8] sm:$0xff]
      %v211 = vld [vmem:[%s142 + $0x1e0] sm:$0xff]
      %v212 = vld [vmem:[%s142 + $0x1e8] sm:$0xff]
      %v213 = vld [vmem:[%s142 + $0x1f0] sm:$0xff]
      %v214 = vld [vmem:[%s142 + $0x1f8] sm:$0xff]
      %v215 = vld [vmem:[%s1] sm:$0xf]
      %v216 = vld [vmem:[%s1 + $0x4] sm:$0xf]
      %v217 = vld [vmem:[%s1 + $0x8] sm:$0xf]
      %v218 = vld [vmem:[%s1 + $0xc] sm:$0xf]
      %v219 = vld [vmem:[%s1 + $0x10] sm:$0xf]
      %v220 = vld [vmem:[%s1 + $0x14] sm:$0xf]
      %v221 = vld [vmem:[%s1 + $0x18] sm:$0xf]
      %v222 = vld [vmem:[%s1 + $0x1c] sm:$0xf]
      %v223 = vld [vmem:[%s1 + $0x20] sm:$0xf]
      %v224 = vld [vmem:[%s1 + $0x24] sm:$0xf]
      %v225 = vld [vmem:[%s1 + $0x28] sm:$0xf]
      %v226 = vld [vmem:[%s1 + $0x2c] sm:$0xf]
      %v227 = vld [vmem:[%s1 + $0x30] sm:$0xf]
      %v228 = vld [vmem:[%s1 + $0x34] sm:$0xf]
      %v229 = vld [vmem:[%s1 + $0x38] sm:$0xf]
      %v230 = vld [vmem:[%s1 + $0x3c] sm:$0xf]
      %v231 = vld [vmem:[%s1 + $0x40] sm:$0xf]
      %v232 = vld [vmem:[%s1 + $0x44] sm:$0xf]
      %v233 = vld [vmem:[%s1 + $0x48] sm:$0xf]
      %v234 = vld [vmem:[%s1 + $0x4c] sm:$0xf]
      %v235 = vld [vmem:[%s1 + $0x50] sm:$0xf]
      %v236 = vld [vmem:[%s1 + $0x54] sm:$0xf]
      %v237 = vld [vmem:[%s1 + $0x58] sm:$0xf]
      %v238 = vld [vmem:[%s1 + $0x5c] sm:$0xf]
      %v239 = vld [vmem:[%s1 + $0x60] sm:$0xf]
      %v240 = vld [vmem:[%s1 + $0x64] sm:$0xf]
      %v241 = vld [vmem:[%s1 + $0x68] sm:$0xf]
      %v306 = vunpack.c.l.b16 %v151
      %v307 = vunpack.c.h.b16 %v151
      %v308 = vunpack.c.l.b16 %v152
      %v309 = vunpack.c.h.b16 %v152
      %v310 = vunpack.c.l.b16 %v153
      %v311 = vunpack.c.h.b16 %v153
      %v312 = vunpack.c.l.b16 %v154
      %v313 = vunpack.c.h.b16 %v154
      %v314 = vunpack.c.l.b16 %v155
      %v315 = vunpack.c.h.b16 %v155
      %v316 = vunpack.c.l.b16 %v156
      %v317 = vunpack.c.h.b16 %v156
      %v318 = vunpack.c.l.b16 %v157
      %v319 = vunpack.c.h.b16 %v157
      %v320 = vunpack.c.l.b16 %v158
      %v321 = vunpack.c.h.b16 %v158
      %v322 = vunpack.c.l.b16 %v159
      %v323 = vunpack.c.h.b16 %v159
      %v324 = vunpack.c.l.b16 %v160
      %v325 = vunpack.c.h.b16 %v160
      %v326 = vunpack.c.l.b16 %v161
      %v327 = vunpack.c.h.b16 %v161
      %v328 = vunpack.c.l.b16 %v162
      %v329 = vunpack.c.h.b16 %v162
      %v330 = vunpack.c.l.b16 %v163
      %v331 = vunpack.c.h.b16 %v163
      %v332 = vunpack.c.l.b16 %v164
      %v333 = vunpack.c.h.b16 %v164
      %v334 = vunpack.c.l.b16 %v165
      %v335 = vunpack.c.h.b16 %v165
      %v336 = vunpack.c.l.b16 %v166
      %v337 = vunpack.c.h.b16 %v166
      %v338 = vunpack.c.l.b16 %v167
      %v339 = vunpack.c.h.b16 %v167
      %v340 = vunpack.c.l.b16 %v168
      %v341 = vunpack.c.h.b16 %v168
      %v342 = vunpack.c.l.b16 %v169
      %v343 = vunpack.c.h.b16 %v169
      %v344 = vunpack.c.l.b16 %v170
      %v345 = vunpack.c.h.b16 %v170
      %v346 = vunpack.c.l.b16 %v171
      %v347 = vunpack.c.h.b16 %v171
      %v348 = vunpack.c.l.b16 %v172
      %v349 = vunpack.c.h.b16 %v172
      %v350 = vunpack.c.l.b16 %v173
      %v351 = vunpack.c.h.b16 %v173
      %v352 = vunpack.c.l.b16 %v174
      %v353 = vunpack.c.h.b16 %v174
      %v354 = vunpack.c.l.b16 %v175
      %v355 = vunpack.c.h.b16 %v175
      %v356 = vunpack.c.l.b16 %v176
      %v357 = vunpack.c.h.b16 %v176
      %v358 = vunpack.c.l.b16 %v177
      %v359 = vunpack.c.h.b16 %v177
      %v360 = vunpack.c.l.b16 %v178
      %v361 = vunpack.c.h.b16 %v178
      %v362 = vunpack.c.l.b16 %v179
      %v363 = vunpack.c.h.b16 %v179
      %v364 = vunpack.c.l.b16 %v180
      %v365 = vunpack.c.h.b16 %v180
      %v366 = vunpack.c.l.b16 %v181
      %v367 = vunpack.c.h.b16 %v181
      %v368 = vunpack.c.l.b16 %v182
      %v369 = vunpack.c.h.b16 %v182
      %v370 = vunpack.c.l.b16 %v183
      %v371 = vunpack.c.h.b16 %v183
      %v372 = vunpack.c.l.b16 %v184
      %v373 = vunpack.c.h.b16 %v184
      %v374 = vunpack.c.l.b16 %v185
      %v375 = vunpack.c.h.b16 %v185
      %v376 = vunpack.c.l.b16 %v186
      %v377 = vunpack.c.h.b16 %v186
      %v378 = vunpack.c.l.b16 %v187
      %v379 = vunpack.c.h.b16 %v187
      %v380 = vunpack.c.l.b16 %v188
      %v381 = vunpack.c.h.b16 %v188
      %v382 = vunpack.c.l.b16 %v189
      %v383 = vunpack.c.h.b16 %v189
      %v384 = vunpack.c.l.b16 %v190
      %v385 = vunpack.c.h.b16 %v190
      %v386 = vunpack.c.l.b16 %v191
      %v387 = vunpack.c.h.b16 %v191
      %v388 = vunpack.c.l.b16 %v192
      %v389 = vunpack.c.h.b16 %v192
      %v390 = vunpack.c.l.b16 %v193
      %v391 = vunpack.c.h.b16 %v193
      %v392 = vunpack.c.l.b16 %v194
      %v393 = vunpack.c.h.b16 %v194
      %v394 = vunpack.c.l.b16 %v195
      %v395 = vunpack.c.h.b16 %v195
      %v396 = vunpack.c.l.b16 %v196
      %v397 = vunpack.c.h.b16 %v196
      %v398 = vunpack.c.l.b16 %v197
      %v399 = vunpack.c.h.b16 %v197
      %v400 = vunpack.c.l.b16 %v198
      %v401 = vunpack.c.h.b16 %v198
      %v402 = vunpack.c.l.b16 %v199
      %v403 = vunpack.c.h.b16 %v199
      %v404 = vunpack.c.l.b16 %v200
      %v405 = vunpack.c.h.b16 %v200
      %v406 = vunpack.c.l.b16 %v201
      %v407 = vunpack.c.h.b16 %v201
      %v408 = vunpack.c.l.b16 %v202
      %v409 = vunpack.c.h.b16 %v202
      %v410 = vunpack.c.l.b16 %v203
      %v411 = vunpack.c.h.b16 %v203
      %v412 = vunpack.c.l.b16 %v204
      %v413 = vunpack.c.h.b16 %v204
      %v414 = vunpack.c.l.b16 %v205
      %v415 = vunpack.c.h.b16 %v205
      %v416 = vunpack.c.l.b16 %v206
      %v417 = vunpack.c.h.b16 %v206
      %v418 = vunpack.c.l.b16 %v207
      %v419 = vunpack.c.h.b16 %v207
      %v420 = vunpack.c.l.b16 %v208
      %v421 = vunpack.c.h.b16 %v208
      %v422 = vunpack.c.l.b16 %v209
      %v423 = vunpack.c.h.b16 %v209
      %v424 = vunpack.c.l.b16 %v210
      %v425 = vunpack.c.h.b16 %v210
      %v426 = vunpack.c.l.b16 %v211
      %v427 = vunpack.c.h.b16 %v211
      %v428 = vunpack.c.l.b16 %v212
      %v429 = vunpack.c.h.b16 %v212
      %v430 = vunpack.c.l.b16 %v213
      %v431 = vunpack.c.h.b16 %v213
      %v432 = vunpack.c.l.b16 %v214
      %v433 = vunpack.c.h.b16 %v214
      %v434 = vpack.c.b16 %v308, %v306
      %v435 = vpack.c.b16 %v309, %v307
      %v436 = vpack.c.b16 %v312, %v310
      %v437 = vpack.c.b16 %v313, %v311
      %v438 = vpack.c.b16 %v316, %v314
      %v439 = vpack.c.b16 %v317, %v315
      %v440 = vpack.c.b16 %v320, %v318
      %v441 = vpack.c.b16 %v321, %v319
      %v442 = vpack.c.b16 %v324, %v322
      %v443 = vpack.c.b16 %v325, %v323
      %v444 = vpack.c.b16 %v328, %v326
      %v445 = vpack.c.b16 %v329, %v327
      %v446 = vpack.c.b16 %v332, %v330
      %v447 = vpack.c.b16 %v333, %v331
      %v448 = vpack.c.b16 %v336, %v334
      %v449 = vpack.c.b16 %v337, %v335
      %v450 = vpack.c.b16 %v340, %v338
      %v451 = vpack.c.b16 %v341, %v339
      %v452 = vpack.c.b16 %v344, %v342
      %v453 = vpack.c.b16 %v345, %v343
      %v454 = vpack.c.b16 %v348, %v346
      %v455 = vpack.c.b16 %v349, %v347
      %v456 = vpack.c.b16 %v352, %v350
      %v457 = vpack.c.b16 %v353, %v351
      %v458 = vpack.c.b16 %v356, %v354
      %v459 = vpack.c.b16 %v357, %v355
      %v460 = vpack.c.b16 %v360, %v358
      %v461 = vpack.c.b16 %v361, %v359
      %v462 = vpack.c.b16 %v364, %v362
      %v463 = vpack.c.b16 %v365, %v363
      %v464 = vpack.c.b16 %v368, %v366
      %v465 = vpack.c.b16 %v369, %v367
      %v466 = vpack.c.b16 %v372, %v370
      %v467 = vpack.c.b16 %v373, %v371
      %v468 = vpack.c.b16 %v376, %v374
      %v469 = vpack.c.b16 %v377, %v375
      %v470 = vpack.c.b16 %v380, %v378
      %v471 = vpack.c.b16 %v381, %v379
      %v472 = vpack.c.b16 %v384, %v382
      %v473 = vpack.c.b16 %v385, %v383
      %v474 = vpack.c.b16 %v388, %v386
      %v475 = vpack.c.b16 %v389, %v387
      %v476 = vpack.c.b16 %v392, %v390
      %v477 = vpack.c.b16 %v393, %v391
      %v478 = vpack.c.b16 %v396, %v394
      %v479 = vpack.c.b16 %v397, %v395
      %v480 = vpack.c.b16 %v400, %v398
      %v481 = vpack.c.b16 %v401, %v399
      %v482 = vpack.c.b16 %v404, %v402
      %v483 = vpack.c.b16 %v405, %v403
      %v484 = vpack.c.b16 %v408, %v406
      %v485 = vpack.c.b16 %v409, %v407
      %v486 = vpack.c.b16 %v412, %v410
      %v487 = vpack.c.b16 %v413, %v411
      %v488 = vpack.c.b16 %v416, %v414
      %v489 = vpack.c.b16 %v417, %v415
      %v490 = vpack.c.b16 %v420, %v418
      %v491 = vpack.c.b16 %v421, %v419
      %v492 = vpack.c.b16 %v424, %v422
      %v493 = vpack.c.b16 %v425, %v423
      %v494 = vpack.c.b16 %v428, %v426
      %v495 = vpack.c.b16 %v429, %v427
      %v496 = vpack.c.b16 %v432, %v430
      %v497 = vpack.c.b16 %v433, %v431
      %v557 = vunpack.c.l.b16 %v215
      %v558 = vunpack.c.l.b16 %v216
      %v559 = vunpack.c.l.b16 %v217
      %v560 = vunpack.c.l.b16 %v218
      %v561 = vunpack.c.l.b16 %v219
      %v562 = vunpack.c.l.b16 %v220
      %v563 = vunpack.c.l.b16 %v221
      %v564 = vunpack.c.l.b16 %v222
      %v565 = vunpack.c.l.b16 %v223
      %v566 = vunpack.c.l.b16 %v224
      %v567 = vunpack.c.l.b16 %v225
      %v568 = vunpack.c.l.b16 %v226
      %v569 = vunpack.c.l.b16 %v227
      %v570 = vunpack.c.l.b16 %v228
      %v571 = vunpack.c.l.b16 %v229
      %v572 = vunpack.c.l.b16 %v230
      %v573 = vunpack.c.l.b16 %v231
      %v574 = vunpack.c.l.b16 %v232
      %v575 = vunpack.c.l.b16 %v233
      %v576 = vunpack.c.l.b16 %v234
      %v577 = vunpack.c.l.b16 %v235
      %v578 = vunpack.c.l.b16 %v236
      %v579 = vunpack.c.l.b16 %v237
      %v580 = vunpack.c.l.b16 %v238
      %v581 = vunpack.c.l.b16 %v239
      %v582 = vunpack.c.l.b16 %v240
      %v583 = vunpack.c.l.b16 %v241
      %v584 = vpack.c.b16 %v558, %v557
      %v585 = vpack.c.b16 %v560, %v559
      %v586 = vpack.c.b16 %v562, %v561
      %v587 = vpack.c.b16 %v564, %v563
      %v588 = vpack.c.b16 %v566, %v565
      %v589 = vpack.c.b16 %v568, %v567
      %v590 = vpack.c.b16 %v570, %v569
      %v591 = vpack.c.b16 %v572, %v571
      %v592 = vpack.c.b16 %v574, %v573
      %v593 = vpack.c.b16 %v576, %v575
      %v594 = vpack.c.b16 %v578, %v577
      %v595 = vpack.c.b16 %v580, %v579
      %v596 = vpack.c.b16 %v582, %v581
      %v597 = vpack.c.b16 %v583, %v583
      %vm611 = vcmask 719872
      %v613 = vsel %vm611, %v435, 0
      %v616 = vsel %vm611, %v437, 0
      %v619 = vsel %vm611, %v439, 0
      %v622 = vsel %vm611, %v441, 0
      %v625 = vsel %vm611, %v443, 0
      %v628 = vsel %vm611, %v445, 0
      %v631 = vsel %vm611, %v447, 0
      %v634 = vsel %vm611, %v449, 0
      %v637 = vsel %vm611, %v451, 0
      %v640 = vsel %vm611, %v453, 0
      %v643 = vsel %vm611, %v455, 0
      %v646 = vsel %vm611, %v457, 0
      %v649 = vsel %vm611, %v459, 0
      %v652 = vsel %vm611, %v461, 0
      %v655 = vsel %vm611, %v463, 0
      %v658 = vsel %vm611, %v465, 0
      %v661 = vsel %vm611, %v467, 0
      %v664 = vsel %vm611, %v469, 0
      %v667 = vsel %vm611, %v471, 0
      %v670 = vsel %vm611, %v473, 0
      %v673 = vsel %vm611, %v475, 0
      %v676 = vsel %vm611, %v477, 0
      %v679 = vsel %vm611, %v479, 0
      %v682 = vsel %vm611, %v481, 0
      %v685 = vsel %vm611, %v483, 0
      %v688 = vsel %vm611, %v485, 0
      %v691 = vsel %vm611, %v487, 0
      %v694 = vsel %vm611, %v489, 0
      %v697 = vsel %vm611, %v491, 0
      %v700 = vsel %vm611, %v493, 0
      %v703 = vsel %vm611, %v495, 0
      %v706 = vsel %vm611, %v497, 0
      %vm708 = vcmask 1043456
      %v710 = vsel %vm708, %v597, 0
      %712 = vmatprep.subr.bf16.mxu0 0
      %713 = vmatpush1.bf16.msra.mxu0 %v584
      %714 = vmatprep.subr.bf16.mxu0 0
      %715 = vmatpush1.bf16.msra.mxu0 %v585
      %716 = vmatprep.subr.bf16.mxu0 0
      %717 = vmatpush1.bf16.msra.mxu0 %v586
      %718 = vmatprep.subr.bf16.mxu0 0
      %719 = vmatpush1.bf16.msra.mxu0 %v587
      %720 = vmatprep.subr.bf16.mxu0 0
      %721 = vmatpush1.bf16.msra.mxu0 %v588
      %722 = vmatprep.subr.bf16.mxu0 0
      %723 = vmatpush1.bf16.msra.mxu0 %v589
      %724 = vmatprep.subr.bf16.mxu0 0
      %725 = vmatpush1.bf16.msra.mxu0 %v590
      %726 = vmatprep.subr.bf16.mxu0 0
      %727 = vmatpush1.bf16.msra.mxu0 %v591
      %728 = vmatprep.subr.bf16.mxu0 0
      %729 = vmatpush1.bf16.msra.mxu0 %v592
      %730 = vmatprep.subr.bf16.mxu0 0
      %731 = vmatpush1.bf16.msra.mxu0 %v593
      %732 = vmatprep.subr.bf16.mxu0 0
      %733 = vmatpush1.bf16.msra.mxu0 %v594
      %734 = vmatprep.subr.bf16.mxu0 0
      %735 = vmatpush1.bf16.msra.mxu0 %v595
      %736 = vmatprep.subr.bf16.mxu0 0
      %737 = vmatpush1.bf16.msra.mxu0 %v596
      %738 = vmatprep.subr.bf16.mxu0 0
      %739 = vmatpush1.bf16.msra.mxu0 %v710
      %740 = vmatprep.subr.bf16.mxu0 0
      %741 = vmatpush1.bf16.msra.mxu0 0
      %742 = vmatprep.subr.bf16.mxu0 0
      %743 = vmatpush1.bf16.msra.mxu0 0
      %744 = vmatprep.mubr.bf16.mxu0 %v613
      %745 = vmatmul.mubr.bf16.gmra.mrb[0].mxu0 %v434
      %v746 = vpop.f32.mrb[0].mxu0
      %v747 = vadd.f32 0.0, %v746
      %v748 = vpop.f32.mrb[0].mxu0
      %v749 = vpop.f32.mrb[0].mxu0
      %v750 = vadd.f32 0.0, %v749
      %v751 = vpop.f32.mrb[0].mxu0
      %752 = vmatprep.mubr.bf16.mxu0 %v616
      %753 = vmatmul.mubr.bf16.gmra.mrb[0].mxu0 %v436
      %v754 = vpop.f32.mrb[0].mxu0
      %v755 = vadd.f32 0.0, %v754
      %v756 = vpop.f32.mrb[0].mxu0
      %v757 = vpop.f32.mrb[0].mxu0
      %v758 = vadd.f32 0.0, %v757
      %v759 = vpop.f32.mrb[0].mxu0
      %760 = vmatprep.mubr.bf16.mxu0 %v619
      %761 = vmatmul.mubr.bf16.gmra.mrb[0].mxu0 %v438
      %v762 = vpop.f32.mrb[0].mxu0
      %v763 = vadd.f32 0.0, %v762
      %v764 = vpop.f32.mrb[0].mxu0
      %v765 = vpop.f32.mrb[0].mxu0
      %v766 = vadd.f32 0.0, %v765
      %v767 = vpop.f32.mrb[0].mxu0
      %768 = vmatprep.mubr.bf16.mxu0 %v622
      %769 = vmatmul.mubr.bf16.gmra.mrb[0].mxu0 %v440
      %v770 = vpop.f32.mrb[0].mxu0
      %v771 = vadd.f32 0.0, %v770
      %v772 = vpop.f32.mrb[0].mxu0
      %v773 = vpop.f32.mrb[0].mxu0
      %v774 = vadd.f32 0.0, %v773
      %v775 = vpop.f32.mrb[0].mxu0
      %776 = vmatprep.mubr.bf16.mxu0 %v625
      %777 = vmatmul.mubr.bf16.gmra.mrb[0].mxu0 %v442
      %v778 = vpop.f32.mrb[0].mxu0
      %v779 = vadd.f32 0.0, %v778
      %v780 = vpop.f32.mrb[0].mxu0
      %v781 = vpop.f32.mrb[0].mxu0
      %v782 = vadd.f32 0.0, %v781
      %v783 = vpop.f32.mrb[0].mxu0
      %784 = vmatprep.mubr.bf16.mxu0 %v628
      %785 = vmatmul.mubr.bf16.gmra.mrb[0].mxu0 %v444
      %v786 = vpop.f32.mrb[0].mxu0
      %v787 = vadd.f32 0.0, %v786
      %v788 = vpop.f32.mrb[0].mxu0
      %v789 = vpop.f32.mrb[0].mxu0
      %v790 = vadd.f32 0.0, %v789
      %v791 = vpop.f32.mrb[0].mxu0
      %792 = vmatprep.mubr.bf16.mxu0 %v631
      %793 = vmatmul.mubr.bf16.gmra.mrb[0].mxu0 %v446
      %v794 = vpop.f32.mrb[0].mxu0
      %v795 = vadd.f32 0.0, %v794
      %v796 = vpop.f32.mrb[0].mxu0
      %v797 = vpop.f32.mrb[0].mxu0
      %v798 = vadd.f32 0.0, %v797
      %v799 = vpop.f32.mrb[0].mxu0
      %800 = vmatprep.mubr.bf16.mxu0 %v634
      %801 = vmatmul.mubr.bf16.gmra.mrb[0].mxu0 %v448
      %v802 = vpop.f32.mrb[0].mxu0
      %v803 = vadd.f32 0.0, %v802
      %v804 = vpop.f32.mrb[0].mxu0
      %v805 = vpop.f32.mrb[0].mxu0
      %v806 = vadd.f32 0.0, %v805
      %v807 = vpop.f32.mrb[0].mxu0
      %808 = vmatprep.mubr.bf16.mxu0 %v637
      %809 = vmatmul.mubr.bf16.gmra.mrb[0].mxu0 %v450
      %v810 = vpop.f32.mrb[0].mxu0
      %v811 = vadd.f32 0.0, %v810
      %v812 = vpop.f32.mrb[0].mxu0
      %v813 = vpop.f32.mrb[0].mxu0
      %v814 = vadd.f32 0.0, %v813
      %v815 = vpop.f32.mrb[0].mxu0
      %816 = vmatprep.mubr.bf16.mxu0 %v640
      %817 = vmatmul.mubr.bf16.gmra.mrb[0].mxu0 %v452
      %v818 = vpop.f32.mrb[0].mxu0
      %v819 = vadd.f32 0.0, %v818
      %v820 = vpop.f32.mrb[0].mxu0
      %v821 = vpop.f32.mrb[0].mxu0
      %v822 = vadd.f32 0.0, %v821
      %v823 = vpop.f32.mrb[0].mxu0
      %824 = vmatprep.mubr.bf16.mxu0 %v643
      %825 = vmatmul.mubr.bf16.gmra.mrb[0].mxu0 %v454
      %v826 = vpop.f32.mrb[0].mxu0
      %v827 = vadd.f32 0.0, %v826
      %v828 = vpop.f32.mrb[0].mxu0
      %v829 = vpop.f32.mrb[0].mxu0
      %v830 = vadd.f32 0.0, %v829
      %v831 = vpop.f32.mrb[0].mxu0
      %832 = vmatprep.mubr.bf16.mxu0 %v646
      %833 = vmatmul.mubr.bf16.gmra.mrb[0].mxu0 %v456
      %v834 = vpop.f32.mrb[0].mxu0
      %v835 = vadd.f32 0.0, %v834
      %v836 = vpop.f32.mrb[0].mxu0
      %v837 = vpop.f32.mrb[0].mxu0
      %v838 = vadd.f32 0.0, %v837
      %v839 = vpop.f32.mrb[0].mxu0
      %840 = vmatprep.mubr.bf16.mxu0 %v649
      %841 = vmatmul.mubr.bf16.gmra.mrb[0].mxu0 %v458
      %v842 = vpop.f32.mrb[0].mxu0
      %v843 = vadd.f32 0.0, %v842
      %v844 = vpop.f32.mrb[0].mxu0
      %v845 = vpop.f32.mrb[0].mxu0
      %v846 = vadd.f32 0.0, %v845
      %v847 = vpop.f32.mrb[0].mxu0
      %848 = vmatprep.mubr.bf16.mxu0 %v652
      %849 = vmatmul.mubr.bf16.gmra.mrb[0].mxu0 %v460
      %v850 = vpop.f32.mrb[0].mxu0
      %v851 = vadd.f32 0.0, %v850
      %v852 = vpop.f32.mrb[0].mxu0
      %v853 = vpop.f32.mrb[0].mxu0
      %v854 = vadd.f32 0.0, %v853
      %v855 = vpop.f32.mrb[0].mxu0
      %856 = vmatprep.mubr.bf16.mxu0 %v655
      %857 = vmatmul.mubr.bf16.gmra.mrb[0].mxu0 %v462
      %v858 = vpop.f32.mrb[0].mxu0
      %v859 = vadd.f32 0.0, %v858
      %v860 = vpop.f32.mrb[0].mxu0
      %v861 = vpop.f32.mrb[0].mxu0
      %v862 = vadd.f32 0.0, %v861
      %v863 = vpop.f32.mrb[0].mxu0
      %864 = vmatprep.mubr.bf16.mxu0 %v658
      %865 = vmatmul.mubr.bf16.gmra.mrb[0].mxu0 %v464
      %v866 = vpop.f32.mrb[0].mxu0
      %v867 = vadd.f32 0.0, %v866
      %v868 = vpop.f32.mrb[0].mxu0
      %v869 = vpop.f32.mrb[0].mxu0
      %v870 = vadd.f32 0.0, %v869
      %v871 = vpop.f32.mrb[0].mxu0
      %872 = vmatprep.mubr.bf16.mxu0 %v661
      %873 = vmatmul.mubr.bf16.gmra.mrb[0].mxu0 %v466
      %v874 = vpop.f32.mrb[0].mxu0
      %v875 = vadd.f32 0.0, %v874
      %v876 = vpop.f32.mrb[0].mxu0
      %v877 = vpop.f32.mrb[0].mxu0
      %v878 = vadd.f32 0.0, %v877
      %v879 = vpop.f32.mrb[0].mxu0
      %880 = vmatprep.mubr.bf16.mxu0 %v664
      %881 = vmatmul.mubr.bf16.gmra.mrb[0].mxu0 %v468
      %v882 = vpop.f32.mrb[0].mxu0
      %v883 = vadd.f32 0.0, %v882
      %v884 = vpop.f32.mrb[0].mxu0
      %v885 = vpop.f32.mrb[0].mxu0
      %v886 = vadd.f32 0.0, %v885
      %v887 = vpop.f32.mrb[0].mxu0
      %888 = vmatprep.mubr.bf16.mxu0 %v667
      %889 = vmatmul.mubr.bf16.gmra.mrb[0].mxu0 %v470
      %v890 = vpop.f32.mrb[0].mxu0
      %v891 = vadd.f32 0.0, %v890
      %v892 = vpop.f32.mrb[0].mxu0
      %v893 = vpop.f32.mrb[0].mxu0
      %v894 = vadd.f32 0.0, %v893
      %v895 = vpop.f32.mrb[0].mxu0
      %896 = vmatprep.mubr.bf16.mxu0 %v670
      %897 = vmatmul.mubr.bf16.gmra.mrb[0].mxu0 %v472
      %v898 = vpop.f32.mrb[0].mxu0
      %v899 = vadd.f32 0.0, %v898
      %v900 = vpop.f32.mrb[0].mxu0
      %v901 = vpop.f32.mrb[0].mxu0
      %v902 = vadd.f32 0.0, %v901
      %v903 = vpop.f32.mrb[0].mxu0
      %904 = vmatprep.mubr.bf16.mxu0 %v673
      %905 = vmatmul.mubr.bf16.gmra.mrb[0].mxu0 %v474
      %v906 = vpop.f32.mrb[0].mxu0
      %v907 = vadd.f32 0.0, %v906
      %v908 = vpop.f32.mrb[0].mxu0
      %v909 = vpop.f32.mrb[0].mxu0
      %v910 = vadd.f32 0.0, %v909
      %v911 = vpop.f32.mrb[0].mxu0
      %912 = vmatprep.mubr.bf16.mxu0 %v676
      %913 = vmatmul.mubr.bf16.gmra.mrb[0].mxu0 %v476
      %v914 = vpop.f32.mrb[0].mxu0
      %v915 = vadd.f32 0.0, %v914
      %v916 = vpop.f32.mrb[0].mxu0
      %v917 = vpop.f32.mrb[0].mxu0
      %v918 = vadd.f32 0.0, %v917
      %v919 = vpop.f32.mrb[0].mxu0
      %920 = vmatprep.mubr.bf16.mxu0 %v679
      %921 = vmatmul.mubr.bf16.gmra.mrb[0].mxu0 %v478
      %v922 = vpop.f32.mrb[0].mxu0
      %v923 = vadd.f32 0.0, %v922
      %v924 = vpop.f32.mrb[0].mxu0
      %v925 = vpop.f32.mrb[0].mxu0
      %v926 = vadd.f32 0.0, %v925
      %v927 = vpop.f32.mrb[0].mxu0
      %928 = vmatprep.mubr.bf16.mxu0 %v682
      %929 = vmatmul.mubr.bf16.gmra.mrb[0].mxu0 %v480
      %v930 = vpop.f32.mrb[0].mxu0
      %v931 = vadd.f32 0.0, %v930
      %v932 = vpop.f32.mrb[0].mxu0
      %v933 = vpop.f32.mrb[0].mxu0
      %v934 = vadd.f32 0.0, %v933
      %v935 = vpop.f32.mrb[0].mxu0
      %936 = vmatprep.mubr.bf16.mxu0 %v685
      %937 = vmatmul.mubr.bf16.gmra.mrb[0].mxu0 %v482
      %v938 = vpop.f32.mrb[0].mxu0
      %v939 = vadd.f32 0.0, %v938
      %v940 = vpop.f32.mrb[0].mxu0
      %v941 = vpop.f32.mrb[0].mxu0
      %v942 = vadd.f32 0.0, %v941
      %v943 = vpop.f32.mrb[0].mxu0
      %944 = vmatprep.mubr.bf16.mxu0 %v688
      %945 = vmatmul.mubr.bf16.gmra.mrb[0].mxu0 %v484
      %v946 = vpop.f32.mrb[0].mxu0
      %v947 = vadd.f32 0.0, %v946
      %v948 = vpop.f32.mrb[0].mxu0
      %v949 = vpop.f32.mrb[0].mxu0
      %v950 = vadd.f32 0.0, %v949
      %v951 = vpop.f32.mrb[0].mxu0
      %952 = vmatprep.mubr.bf16.mxu0 %v691
      %953 = vmatmul.mubr.bf16.gmra.mrb[0].mxu0 %v486
      %v954 = vpop.f32.mrb[0].mxu0
      %v955 = vadd.f32 0.0, %v954
      %v956 = vpop.f32.mrb[0].mxu0
      %v957 = vpop.f32.mrb[0].mxu0
      %v958 = vadd.f32 0.0, %v957
      %v959 = vpop.f32.mrb[0].mxu0
      %960 = vmatprep.mubr.bf16.mxu0 %v694
      %961 = vmatmul.mubr.bf16.gmra.mrb[0].mxu0 %v488
      %v962 = vpop.f32.mrb[0].mxu0
      %v963 = vadd.f32 0.0, %v962
      %v964 = vpop.f32.mrb[0].mxu0
      %v965 = vpop.f32.mrb[0].mxu0
      %v966 = vadd.f32 0.0, %v965
      %v967 = vpop.f32.mrb[0].mxu0
      %968 = vmatprep.mubr.bf16.mxu0 %v697
      %969 = vmatmul.mubr.bf16.gmra.mrb[0].mxu0 %v490
      %v970 = vpop.f32.mrb[0].mxu0
      %v971 = vadd.f32 0.0, %v970
      %v972 = vpop.f32.mrb[0].mxu0
      %v973 = vpop.f32.mrb[0].mxu0
      %v974 = vadd.f32 0.0, %v973
      %v975 = vpop.f32.mrb[0].mxu0
      %976 = vmatprep.mubr.bf16.mxu0 %v700
      %977 = vmatmul.mubr.bf16.gmra.mrb[0].mxu0 %v492
      %v978 = vpop.f32.mrb[0].mxu0
      %v979 = vadd.f32 0.0, %v978
      %v980 = vpop.f32.mrb[0].mxu0
      %v981 = vpop.f32.mrb[0].mxu0
      %v982 = vadd.f32 0.0, %v981
      %v983 = vpop.f32.mrb[0].mxu0
      %984 = vmatprep.mubr.bf16.mxu0 %v703
      %985 = vmatmul.mubr.bf16.gmra.mrb[0].mxu0 %v494
      %v986 = vpop.f32.mrb[0].mxu0
      %v987 = vadd.f32 0.0, %v986
      %v988 = vpop.f32.mrb[0].mxu0
      %v989 = vpop.f32.mrb[0].mxu0
      %v990 = vadd.f32 0.0, %v989
      %v991 = vpop.f32.mrb[0].mxu0
      %992 = vmatprep.mubr.bf16.mxu0 %v706
      %993 = vmatmul.mubr.bf16.gmra.mrb[0].mxu0 %v496
      %v994 = vpop.f32.mrb[0].mxu0
      %v995 = vadd.f32 0.0, %v994
      %v996 = vpop.f32.mrb[0].mxu0
      %v997 = vpop.f32.mrb[0].mxu0
      %v998 = vadd.f32 0.0, %v997
      %v999 = vpop.f32.mrb[0].mxu0
      %1000 = vdwg.mxu0
      %vm1001 = vcmask 31744
      %1002 = vst.msk [vmem:[%s148] sm:$0xff] %vm1001, %v747
      %1003 = vst.msk [vmem:[%s148 + $0x8] sm:$0xff] %vm1001, %v750
      %1004 = vst.msk [vmem:[%s148 + $0x10] sm:$0xff] %vm1001, %v755
      %1005 = vst.msk [vmem:[%s148 + $0x18] sm:$0xff] %vm1001, %v758
      %1006 = vst.msk [vmem:[%s148 + $0x20] sm:$0xff] %vm1001, %v763
      %1007 = vst.msk [vmem:[%s148 + $0x28] sm:$0xff] %vm1001, %v766
      %1008 = vst.msk [vmem:[%s148 + $0x30] sm:$0xff] %vm1001, %v771
      %1009 = vst.msk [vmem:[%s148 + $0x38] sm:$0xff] %vm1001, %v774
      %1010 = vst.msk [vmem:[%s148 + $0x40] sm:$0xff] %vm1001, %v779
      %1011 = vst.msk [vmem:[%s148 + $0x48] sm:$0xff] %vm1001, %v782
      %1012 = vst.msk [vmem:[%s148 + $0x50] sm:$0xff] %vm1001, %v787
      %1013 = vst.msk [vmem:[%s148 + $0x58] sm:$0xff] %vm1001, %v790
      %1014 = vst.msk [vmem:[%s148 + $0x60] sm:$0xff] %vm1001, %v795
      %1015 = vst.msk [vmem:[%s148 + $0x68] sm:$0xff] %vm1001, %v798
      %1016 = vst.msk [vmem:[%s148 + $0x70] sm:$0xff] %vm1001, %v803
      %1017 = vst.msk [vmem:[%s148 + $0x78] sm:$0xff] %vm1001, %v806
      %1018 = vst.msk [vmem:[%s148 + $0x80] sm:$0xff] %vm1001, %v811
      %1019 = vst.msk [vmem:[%s148 + $0x88] sm:$0xff] %vm1001, %v814
      %1020 = vst.msk [vmem:[%s148 + $0x90] sm:$0xff] %vm1001, %v819
      %1021 = vst.msk [vmem:[%s148 + $0x98] sm:$0xff] %vm1001, %v822
      %1022 = vst.msk [vmem:[%s148 + $0xa0] sm:$0xff] %vm1001, %v827
      %1023 = vst.msk [vmem:[%s148 + $0xa8] sm:$0xff] %vm1001, %v830
      %1024 = vst.msk [vmem:[%s148 + $0xb0] sm:$0xff] %vm1001, %v835
      %1025 = vst.msk [vmem:[%s148 + $0xb8] sm:$0xff] %vm1001, %v838
      %1026 = vst.msk [vmem:[%s148 + $0xc0] sm:$0xff] %vm1001, %v843
      %1027 = vst.msk [vmem:[%s148 + $0xc8] sm:$0xff] %vm1001, %v846
      %1028 = vst.msk [vmem:[%s148 + $0xd0] sm:$0xff] %vm1001, %v851
      %1029 = vst.msk [vmem:[%s148 + $0xd8] sm:$0xff] %vm1001, %v854
      %1030 = vst.msk [vmem:[%s148 + $0xe0] sm:$0xff] %vm1001, %v859
      %1031 = vst.msk [vmem:[%s148 + $0xe8] sm:$0xff] %vm1001, %v862
      %1032 = vst.msk [vmem:[%s148 + $0xf0] sm:$0xff] %vm1001, %v867
      %1033 = vst.msk [vmem:[%s148 + $0xf8] sm:$0xff] %vm1001, %v870
      %1034 = vst.msk [vmem:[%s148 + $0x100] sm:$0xff] %vm1001, %v875
      %1035 = vst.msk [vmem:[%s148 + $0x108] sm:$0xff] %vm1001, %v878
      %1036 = vst.msk [vmem:[%s148 + $0x110] sm:$0xff] %vm1001, %v883
      %1037 = vst.msk [vmem:[%s148 + $0x118] sm:$0xff] %vm1001, %v886
      %1038 = vst.msk [vmem:[%s148 + $0x120] sm:$0xff] %vm1001, %v891
      %1039 = vst.msk [vmem:[%s148 + $0x128] sm:$0xff] %vm1001, %v894
      %1040 = vst.msk [vmem:[%s148 + $0x130] sm:$0xff] %vm1001, %v899
      %1041 = vst.msk [vmem:[%s148 + $0x138] sm:$0xff] %vm1001, %v902
      %1042 = vst.msk [vmem:[%s148 + $0x140] sm:$0xff] %vm1001, %v907
      %1043 = vst.msk [vmem:[%s148 + $0x148] sm:$0xff] %vm1001, %v910
      %1044 = vst.msk [vmem:[%s148 + $0x150] sm:$0xff] %vm1001, %v915
      %1045 = vst.msk [vmem:[%s148 + $0x158] sm:$0xff] %vm1001, %v918
      %1046 = vst.msk [vmem:[%s148 + $0x160] sm:$0xff] %vm1001, %v923
      %1047 = vst.msk [vmem:[%s148 + $0x168] sm:$0xff] %vm1001, %v926
      %1048 = vst.msk [vmem:[%s148 + $0x170] sm:$0xff] %vm1001, %v931
      %1049 = vst.msk [vmem:[%s148 + $0x178] sm:$0xff] %vm1001, %v934
      %1050 = vst.msk [vmem:[%s148 + $0x180] sm:$0xff] %vm1001, %v939
      %1051 = vst.msk [vmem:[%s148 + $0x188] sm:$0xff] %vm1001, %v942
      %1052 = vst.msk [vmem:[%s148 + $0x190] sm:$0xff] %vm1001, %v947
      %1053 = vst.msk [vmem:[%s148 + $0x198] sm:$0xff] %vm1001, %v950
      %1054 = vst.msk [vmem:[%s148 + $0x1a0] sm:$0xff] %vm1001, %v955
      %1055 = vst.msk [vmem:[%s148 + $0x1a8] sm:$0xff] %vm1001, %v958
      %1056 = vst.msk [vmem:[%s148 + $0x1b0] sm:$0xff] %vm1001, %v963
      %1057 = vst.msk [vmem:[%s148 + $0x1b8] sm:$0xff] %vm1001, %v966
      %1058 = vst.msk [vmem:[%s148 + $0x1c0] sm:$0xff] %vm1001, %v971
      %1059 = vst.msk [vmem:[%s148 + $0x1c8] sm:$0xff] %vm1001, %v974
      %1060 = vst.msk [vmem:[%s148 + $0x1d0] sm:$0xff] %vm1001, %v979
      %1061 = vst.msk [vmem:[%s148 + $0x1d8] sm:$0xff] %vm1001, %v982
      %1062 = vst.msk [vmem:[%s148 + $0x1e0] sm:$0xff] %vm1001, %v987
      %1063 = vst.msk [vmem:[%s148 + $0x1e8] sm:$0xff] %vm1001, %v990
      %1064 = vst.msk [vmem:[%s148 + $0x1f0] sm:$0xff] %vm1001, %v995
      %1065 = vst.msk [vmem:[%s148 + $0x1f8] sm:$0xff] %vm1001, %v998
      %s1066 = smul.u32 64, %s13
      %p1067 = scmp.lt.s32.totalorder %s1066, 127
      %s1068 = scalar_select %p1067, %s1066, 127
      %s1069 = smul.addr %s1068, 8
      %s1070 = scalar_lea.vmem %s2, %s1069
      // Predicated region
      $region29: #{_lambda_.24} parent=27 // pred_check
        %p1071 = pneg %p78
      $region30: #{_lambda_.24} parent=27 // pred_check_branch
        %1073 = sbr.rel (%p1071) target = $region32
      $region31: #{_lambda_.24} parent=27 // pred_region
        %s1074 = smul.u32 64, %s13
      $region32: #{_lambda_.24} parent=27 // pred_fallthru
        _
    $region28: #{_lambda_.24} parent=5 // pred_fallthru
      _
    %p1075 = scmp.le.s32.totalorder 2, %s8
    // Predicated region
    $region33: #{_lambda_.24} parent=5 // pred_check
      %p1076 = pneg %p1075
    $region34: #{_lambda_.24} parent=5 // pred_check_branch
      %1078 = sbr.rel (%p1076) target = $region36
    $region35: #{_lambda_.24} parent=5 // pred_region
      %s1079 = ssub.s32 %s8, 2
      // Predicated region
      $region37: #{_lambda_.24} parent=35 // pred_check
        %p1080 = pneg %p84
      $region38: #{_lambda_.24} parent=35 // pred_check_branch
        %1082 = sbr.rel (%p1080) target = $region40
      $region39: #{_lambda_.24} parent=35 // pred_region
        %s1083 = smul.u32 64, %s14
        %p1084 = scmp.lt.s32.totalorder %s1083, 127
        %s1085 = scalar_select %p1084, %s1083, 127
        %s1086 = smul.addr %s1085, 8
        %s1087 = scalar_lea.vmem %s2, %s1086
      $region40: #{_lambda_.24} parent=35 // pred_fallthru
        _
    $region36: #{_lambda_.24} parent=5 // pred_fallthru
      _
  $region6: #{_lambda_.24} parent=0 // loop_footer
    %s12 = sadd.s32 1, %s8
  $region7: #{_lambda_.24} parent=0 // loop_footer_branch
    %7 = sbr.rel target = $region3
  $region8: #{_lambda_.24} parent=0 // loop_exit
    _

// kernel: _lambda_.25
$region0: #{_lambda_.25}
  #allocation0 [shape = 'u32[]', space=smem, size = 0x4, offset = 0x4, fixed_abs, tag = 'smem constant byte address 0x4 - core index']
  #allocation1 [shape = 'u32[144,128]{1,0:T(1,128)}', space=vmem, size = 0x12000, scoped, tag = 'internal scratch']
  %s0 = inlined_call_operand.vmem [shape: bf16[1024,108], index: 0, kind: input, shape index: {}]
  %s1 = inlined_call_operand.vmem [shape: bf16[108,4], index: 1, kind: input, shape index: {}]
  %s2 = inlined_call_operand.vmem [shape: bf16[1024,8], index: 2, kind: input, shape index: {}]
  %s3 = inlined_call_operand.vmem [shape: bf16[8,4], index: 3, kind: input, shape index: {}]
  %s4 = inlined_call_operand.vmem [shape: f32[1024,4], index: 4, kind: output, shape index: {}]
  %s5 = sld [smem:[#allocation0]]
  $region49: #{_lambda_.25} parent=0
    _
  %s7 = ssub.s32 1, %s5
  %s8 = scalar_select 0, %s7, %s5
  loop: start=0, step=1, limit=4
  $region2: #{_lambda_.25} parent=0 // loop_pre_header
    _
  $region3: #{_lambda_.25} parent=0 // loop_header
    %s10 = sphi 0, %s14
    %p11 = scmp.ge.s32.totalorder %s10, 4
    %s20 = sphi 0, %s22
    %s23 = sphi 0, %s20
    %s24 = sphi 0, %s23
    %s40 = sphi 0, %s24
    %s44 = sphi 0, %s44
    %s46 = sphi 0, %s44
    %s47 = sphi 0, %s46
    %s61 = sphi 0, %s47
    %s67 = sphi 0, %s69
    %s70 = sphi 0, %s67
    %s71 = sphi 0, %s70
    %s87 = sphi 0, %s71
    %s91 = sphi 0, %s91
    %s93 = sphi 0, %s91
    %s94 = sphi 0, %s93
    %s108 = sphi 0, %s94
    %s114 = sphi 0, %s116
    %s117 = sphi 0, %s114
    %s118 = sphi 0, %s117
    %s134 = sphi 0, %s118
  $region4: #{_lambda_.25} parent=0 // loop_header_branch
    %13 = sbr.rel (%p11) target = $region8
  $region5: #{_lambda_.25} parent=0 // loop_body
    %s15 = ssub.s32 %s10, 1
    %s16 = ssub.s32 %s10, 2
    %s17 = sadd.s32 %s10, 1
    %s18 = ssub.s32 %s10, %s17
    %p19 = scmp.eq.s32.totalorder %s18, 0
    %s21 = sadd.s32 %s20, 1
    %s22 = scalar_select %p19, %s20, %s21
    %p25 = pneg %p19
    %p26 = scmp.eq.s32.totalorder %s10, 1
    %p27 = por %p25, %p26
    %p28 = scmp.ne.s32.totalorder %s20, %s23
    %p29 = scmp.eq.s32.totalorder %s10, 0
    %p30 = por %p28, %p29
    %p31 = scmp.ne.s32.totalorder %s20, %s23
    %p32 = scmp.eq.s32.totalorder %s15, 1
    %p33 = por %p31, %p32
    %p34 = scmp.ne.s32.totalorder %s23, %s24
    %p35 = scmp.eq.s32.totalorder %s15, 0
    %p36 = por %p34, %p35
    %p37 = scmp.ne.s32.totalorder %s23, %s24
    %p38 = scmp.eq.s32.totalorder %s16, 1
    %p39 = por %p37, %p38
    %p41 = scmp.ne.s32.totalorder %s24, %s40
    %p42 = scmp.eq.s32.totalorder %s16, 0
    %p43 = por %p41, %p42
    %s45 = sadd.s32 %s44, 1
    %p48 = scmp.eq.s32.totalorder %s10, 1
    %p49 = scmp.ne.s32.totalorder %s44, %s46
    %p50 = scmp.eq.s32.totalorder %s10, 0
    %p51 = por %p49, %p50
    %p52 = scmp.ne.s32.totalorder %s44, %s46
    %p53 = scmp.eq.s32.totalorder %s15, 1
    %p54 = por %p52, %p53
    %p55 = scmp.ne.s32.totalorder %s46, %s47
    %p56 = scmp.eq.s32.totalorder %s15, 0
    %p57 = por %p55, %p56
    %p58 = scmp.ne.s32.totalorder %s46, %s47
    %p59 = scmp.eq.s32.totalorder %s16, 1
    %p60 = por %p58, %p59
    %p62 = scmp.ne.s32.totalorder %s47, %s61
    %p63 = scmp.eq.s32.totalorder %s16, 0
    %p64 = por %p62, %p63
    %s65 = ssub.s32 %s10, %s17
    %p66 = scmp.eq.s32.totalorder %s65, 0
    %s68 = sadd.s32 %s67, 1
    %s69 = scalar_select %p66, %s67, %s68
    %p72 = pneg %p66
    %p73 = scmp.eq.s32.totalorder %s10, 1
    %p74 = por %p72, %p73
    %p75 = scmp.ne.s32.totalorder %s67, %s70
    %p76 = scmp.eq.s32.totalorder %s10, 0
    %p77 = por %p75, %p76
    %p78 = scmp.ne.s32.totalorder %s67, %s70
    %p79 = scmp.eq.s32.totalorder %s15, 1
    %p80 = por %p78, %p79
    %p81 = scmp.ne.s32.totalorder %s70, %s71
    %p82 = scmp.eq.s32.totalorder %s15, 0
    %p83 = por %p81, %p82
    %p84 = scmp.ne.s32.totalorder %s70, %s71
    %p85 = scmp.eq.s32.totalorder %s16, 1
    %p86 = por %p84, %p85
    %p88 = scmp.ne.s32.totalorder %s71, %s87
    %p89 = scmp.eq.s32.totalorder %s16, 0
    %p90 = por %p88, %p89
    %s92 = sadd.s32 %s91, 1
    %p95 = scmp.eq.s32.totalorder %s10, 1
    %p96 = scmp.ne.s32.totalorder %s91, %s93
    %p97 = scmp.eq.s32.totalorder %s10, 0
    %p98 = por %p96, %p97
    %p99 = scmp.ne.s32.totalorder %s91, %s93
    %p100 = scmp.eq.s32.totalorder %s15, 1
    %p101 = por %p99, %p100
    %p102 = scmp.ne.s32.totalorder %s93, %s94
    %p103 = scmp.eq.s32.totalorder %s15, 0
    %p104 = por %p102, %p103
    %p105 = scmp.ne.s32.totalorder %s93, %s94
    %p106 = scmp.eq.s32.totalorder %s16, 1
    %p107 = por %p105, %p106
    %p109 = scmp.ne.s32.totalorder %s94, %s108
    %p110 = scmp.eq.s32.totalorder %s16, 0
    %p111 = por %p109, %p110
    %s112 = ssub.s32 %s10, %s17
    %p113 = scmp.eq.s32.totalorder %s112, 0
    %s115 = sadd.s32 %s114, 1
    %s116 = scalar_select %p113, %s114, %s115
    %p119 = pneg %p113
    %p120 = scmp.eq.s32.totalorder %s10, 1
    %p121 = por %p119, %p120
    %p122 = scmp.ne.s32.totalorder %s114, %s117
    %p123 = scmp.eq.s32.totalorder %s10, 0
    %p124 = por %p122, %p123
    %p125 = scmp.ne.s32.totalorder %s114, %s117
    %p126 = scmp.eq.s32.totalorder %s15, 1
    %p127 = por %p125, %p126
    %p128 = scmp.ne.s32.totalorder %s117, %s118
    %p129 = scmp.eq.s32.totalorder %s15, 0
    %p130 = por %p128, %p129
    %p131 = scmp.ne.s32.totalorder %s117, %s118
    %p132 = scmp.eq.s32.totalorder %s16, 1
    %p133 = por %p131, %p132
    %p135 = scmp.ne.s32.totalorder %s118, %s134
    %p136 = scmp.eq.s32.totalorder %s16, 0
    %p137 = por %p135, %p136
    %p138 = scmp.le.s32.totalorder 1, %s10
    %p139 = scmp.lt.s32.totalorder %s10, 3
    %p140 = pnand %p138, %p139
    %p141 = pneg %p140
    // Predicated region
    $region9: #{_lambda_.25} parent=5 // pred_check
      _
    $region10: #{_lambda_.25} parent=5 // pred_check_branch
      %143 = sbr.rel (%p140) target = $region12
    $region11: #{_lambda_.25} parent=5 // pred_region
      %s144 = ssub.s32 %s10, 1
      // Predicated region
      $region13: #{_lambda_.25} parent=11 // pred_check
        %p145 = pneg %p57
      $region14: #{_lambda_.25} parent=11 // pred_check_branch
        %147 = sbr.rel (%p145) target = $region16
      $region15: #{_lambda_.25} parent=11 // pred_region
        _
      $region16: #{_lambda_.25} parent=11 // pred_fallthru
        _
      // Predicated region
      $region17: #{_lambda_.25} parent=11 // pred_check
        %p148 = pneg %p104
      $region18: #{_lambda_.25} parent=11 // pred_check_branch
        %150 = sbr.rel (%p148) target = $region20
      $region19: #{_lambda_.25} parent=11 // pred_region
        _
      $region20: #{_lambda_.25} parent=11 // pred_fallthru
        _
    $region12: #{_lambda_.25} parent=5 // pred_fallthru
      _
    %p151 = scmp.lt.s32.totalorder %s10, 2
    // Predicated region
    $region21: #{_lambda_.25} parent=5 // pred_check
      %p152 = pneg %p151
    $region22: #{_lambda_.25} parent=5 // pred_check_branch
      %154 = sbr.rel (%p152) target = $region24
    $region23: #{_lambda_.25} parent=5 // pred_region
      // Predicated region
      $region25: #{_lambda_.25} parent=23 // pred_check
        %p155 = pneg %p30
      $region26: #{_lambda_.25} parent=23 // pred_check_branch
        %157 = sbr.rel (%p155) target = $region28
      $region27: #{_lambda_.25} parent=23 // pred_region
        %s158 = smul.u32 64, %s10
        %p159 = scmp.lt.s32.totalorder %s158, 127
        %s160 = scalar_select %p159, %s158, 127
        %s161 = smul.addr %s160, 4
        %s162 = scalar_lea.vmem %s0, %s161
        %s163 = smul.u32 64, %s10
      $region28: #{_lambda_.25} parent=23 // pred_fallthru
        _
      // Predicated region
      $region29: #{_lambda_.25} parent=23 // pred_check
        %p164 = pneg %p77
      $region30: #{_lambda_.25} parent=23 // pred_check_branch
        %166 = sbr.rel (%p164) target = $region32
      $region31: #{_lambda_.25} parent=23 // pred_region
        %s167 = smul.u32 64, %s10
        %p168 = scmp.lt.s32.totalorder %s167, 127
        %s169 = scalar_select %p168, %s167, 127
        %s170 = smul.addr %s169, 4
        %s171 = scalar_lea.vmem %s2, %s170
        %s172 = smul.u32 64, %s10
      $region32: #{_lambda_.25} parent=23 // pred_fallthru
        _
    $region24: #{_lambda_.25} parent=5 // pred_fallthru
      _
    %p173 = scmp.le.s32.totalorder 1, %s10
    %p174 = scmp.lt.s32.totalorder %s10, 3
    %p175 = pnand %p173, %p174
    %p176 = pneg %p175
    // Predicated region
    $region33: #{_lambda_.25} parent=5 // pred_check
      _
    $region34: #{_lambda_.25} parent=5 // pred_check_branch
      %178 = sbr.rel (%p175) target = $region36
    $region35: #{_lambda_.25} parent=5 // pred_region
      %s179 = ssub.s32 %s10, 1
      %s180 = smul.u32 64, %s15
      %p181 = scmp.lt.s32.totalorder %s180, 127
      %s182 = scalar_select %p181, %s180, 127
      %s183 = smul.addr %s182, 4
      %s184 = scalar_lea.vmem %s0, %s183
      %p185 = pneg %p36
      %p186 = pneg %p33
      %p187 = pneg %p57
      %p188 = pneg %p54
      %s189 = smul.u32 64, %s15
      %p190 = scmp.lt.s32.totalorder %s189, 127
      %s191 = scalar_select %p190, %s189, 127
      %s192 = smul.addr %s191, 4
      %s193 = scalar_lea.vmem %s2, %s192
      %p194 = pneg %p83
      %p195 = pneg %p80
      %p196 = pneg %p104
      %p197 = pneg %p101
      %p198 = pneg %p130
      %p199 = pneg %p127
      %s200 = smul.u32 64, %s15
      %p201 = scmp.lt.s32.totalorder %s200, 127
      %s202 = scalar_select %p201, %s200, 127
      %s203 = smul.addr %s202, 8
      %s204 = scalar_lea.vmem %s4, %s203
      %s205 = smul.u32 64, %s15
      %p206 = scmp.lt.s32.totalorder %s205, 127
      %s207 = scalar_select %p206, %s205, 127
      %s208 = smul.addr %s207, 4
      %s209 = scalar_lea.vmem %s0, %s208
      %s210 = smul.u32 64, %s15
      %s211 = smul.u32 64, %s15
      %p212 = scmp.lt.s32.totalorder %s211, 127
      %s213 = scalar_select %p212, %s211, 127
      %s214 = smul.addr %s213, 4
      %s215 = scalar_lea.vmem %s2, %s214
      %s216 = smul.u32 64, %s15
      %s217 = smul.u32 64, %s15
      %p218 = scmp.lt.s32.totalorder %s217, 127
      %s219 = scalar_select %p218, %s217, 127
      %s220 = smul.addr %s219, 8
      %s221 = scalar_lea.vmem %s4, %s220
      %s222 = smul.u32 64, %s15
      %v224 = vld [vmem:[%s209] sm:$0xf]
      %v225 = vld [vmem:[%s209 + $0x4] sm:$0xf]
      %v226 = vld [vmem:[%s209 + $0x8] sm:$0xf]
      %v227 = vld [vmem:[%s209 + $0xc] sm:$0xf]
      %v228 = vld [vmem:[%s209 + $0x10] sm:$0xf]
      %v229 = vld [vmem:[%s209 + $0x14] sm:$0xf]
      %v230 = vld [vmem:[%s209 + $0x18] sm:$0xf]
      %v231 = vld [vmem:[%s209 + $0x1c] sm:$0xf]
      %v232 = vld [vmem:[%s209 + $0x20] sm:$0xf]
      %v233 = vld [vmem:[%s209 + $0x24] sm:$0xf]
      %v234 = vld [vmem:[%s209 + $0x28] sm:$0xf]
      %v235 = vld [vmem:[%s209 + $0x2c] sm:$0xf]
      %v236 = vld [vmem:[%s209 + $0x30] sm:$0xf]
      %v237 = vld [vmem:[%s209 + $0x34] sm:$0xf]
      %v238 = vld [vmem:[%s209 + $0x38] sm:$0xf]
      %v239 = vld [vmem:[%s209 + $0x3c] sm:$0xf]
      %v240 = vld [vmem:[%s209 + $0x40] sm:$0xf]
      %v241 = vld [vmem:[%s209 + $0x44] sm:$0xf]
      %v242 = vld [vmem:[%s209 + $0x48] sm:$0xf]
      %v243 = vld [vmem:[%s209 + $0x4c] sm:$0xf]
      %v244 = vld [vmem:[%s209 + $0x50] sm:$0xf]
      %v245 = vld [vmem:[%s209 + $0x54] sm:$0xf]
      %v246 = vld [vmem:[%s209 + $0x58] sm:$0xf]
      %v247 = vld [vmem:[%s209 + $0x5c] sm:$0xf]
      %v248 = vld [vmem:[%s209 + $0x60] sm:$0xf]
      %v249 = vld [vmem:[%s209 + $0x64] sm:$0xf]
      %v250 = vld [vmem:[%s209 + $0x68] sm:$0xf]
      %v251 = vld [vmem:[%s209 + $0x6c] sm:$0xf]
      %v252 = vld [vmem:[%s209 + $0x70] sm:$0xf]
      %v253 = vld [vmem:[%s209 + $0x74] sm:$0xf]
      %v254 = vld [vmem:[%s209 + $0x78] sm:$0xf]
      %v255 = vld [vmem:[%s209 + $0x7c] sm:$0xf]
      %v256 = vld [vmem:[%s209 + $0x80] sm:$0xf]
      %v257 = vld [vmem:[%s209 + $0x84] sm:$0xf]
      %v258 = vld [vmem:[%s209 + $0x88] sm:$0xf]
      %v259 = vld [vmem:[%s209 + $0x8c] sm:$0xf]
      %v260 = vld [vmem:[%s209 + $0x90] sm:$0xf]
      %v261 = vld [vmem:[%s209 + $0x94] sm:$0xf]
      %v262 = vld [vmem:[%s209 + $0x98] sm:$0xf]
      %v263 = vld [vmem:[%s209 + $0x9c] sm:$0xf]
      %v264 = vld [vmem:[%s209 + $0xa0] sm:$0xf]
      %v265 = vld [vmem:[%s209 + $0xa4] sm:$0xf]
      %v266 = vld [vmem:[%s209 + $0xa8] sm:$0xf]
      %v267 = vld [vmem:[%s209 + $0xac] sm:$0xf]
      %v268 = vld [vmem:[%s209 + $0xb0] sm:$0xf]
      %v269 = vld [vmem:[%s209 + $0xb4] sm:$0xf]
      %v270 = vld [vmem:[%s209 + $0xb8] sm:$0xf]
      %v271 = vld [vmem:[%s209 + $0xbc] sm:$0xf]
      %v272 = vld [vmem:[%s209 + $0xc0] sm:$0xf]
      %v273 = vld [vmem:[%s209 + $0xc4] sm:$0xf]
      %v274 = vld [vmem:[%s209 + $0xc8] sm:$0xf]
      %v275 = vld [vmem:[%s209 + $0xcc] sm:$0xf]
      %v276 = vld [vmem:[%s209 + $0xd0] sm:$0xf]
      %v277 = vld [vmem:[%s209 + $0xd4] sm:$0xf]
      %v278 = vld [vmem:[%s209 + $0xd8] sm:$0xf]
      %v279 = vld [vmem:[%s209 + $0xdc] sm:$0xf]
      %v280 = vld [vmem:[%s209 + $0xe0] sm:$0xf]
      %v281 = vld [vmem:[%s209 + $0xe4] sm:$0xf]
      %v282 = vld [vmem:[%s209 + $0xe8] sm:$0xf]
      %v283 = vld [vmem:[%s209 + $0xec] sm:$0xf]
      %v284 = vld [vmem:[%s209 + $0xf0] sm:$0xf]
      %v285 = vld [vmem:[%s209 + $0xf4] sm:$0xf]
      %v286 = vld [vmem:[%s209 + $0xf8] sm:$0xf]
      %v287 = vld [vmem:[%s209 + $0xfc] sm:$0xf]
      %v288 = vld [vmem:[%s1] sm:$0xf]
      %v289 = vld [vmem:[%s1 + $0x4] sm:$0xf]
      %v290 = vld [vmem:[%s1 + $0x8] sm:$0xf]
      %v291 = vld [vmem:[%s1 + $0xc] sm:$0xf]
      %v292 = vld [vmem:[%s1 + $0x10] sm:$0xf]
      %v293 = vld [vmem:[%s1 + $0x14] sm:$0xf]
      %v294 = vld [vmem:[%s1 + $0x18] sm:$0xf]
      %v295 = vld [vmem:[%s1 + $0x1c] sm:$0xf]
      %v296 = vld [vmem:[%s1 + $0x20] sm:$0xf]
      %v297 = vld [vmem:[%s1 + $0x24] sm:$0xf]
      %v298 = vld [vmem:[%s1 + $0x28] sm:$0xf]
      %v299 = vld [vmem:[%s1 + $0x2c] sm:$0xf]
      %v300 = vld [vmem:[%s1 + $0x30] sm:$0xf]
      %v301 = vld [vmem:[%s1 + $0x34] sm:$0x3]
      %v302 = vld [vmem:[%s215] sm:$0xf]
      %v303 = vld [vmem:[%s215 + $0x4] sm:$0xf]
      %v304 = vld [vmem:[%s215 + $0x8] sm:$0xf]
      %v305 = vld [vmem:[%s215 + $0xc] sm:$0xf]
      %v306 = vld [vmem:[%s215 + $0x10] sm:$0xf]
      %v307 = vld [vmem:[%s215 + $0x14] sm:$0xf]
      %v308 = vld [vmem:[%s215 + $0x18] sm:$0xf]
      %v309 = vld [vmem:[%s215 + $0x1c] sm:$0xf]
      %v310 = vld [vmem:[%s215 + $0x20] sm:$0xf]
      %v311 = vld [vmem:[%s215 + $0x24] sm:$0xf]
      %v312 = vld [vmem:[%s215 + $0x28] sm:$0xf]
      %v313 = vld [vmem:[%s215 + $0x2c] sm:$0xf]
      %v314 = vld [vmem:[%s215 + $0x30] sm:$0xf]
      %v315 = vld [vmem:[%s215 + $0x34] sm:$0xf]
      %v316 = vld [vmem:[%s215 + $0x38] sm:$0xf]
      %v317 = vld [vmem:[%s215 + $0x3c] sm:$0xf]
      %v318 = vld [vmem:[%s215 + $0x40] sm:$0xf]
      %v319 = vld [vmem:[%s215 + $0x44] sm:$0xf]
      %v320 = vld [vmem:[%s215 + $0x48] sm:$0xf]
      %v321 = vld [vmem:[%s215 + $0x4c] sm:$0xf]
      %v322 = vld [vmem:[%s215 + $0x50] sm:$0xf]
      %v323 = vld [vmem:[%s215 + $0x54] sm:$0xf]
      %v324 = vld [vmem:[%s215 + $0x58] sm:$0xf]
      %v325 = vld [vmem:[%s215 + $0x5c] sm:$0xf]
      %v326 = vld [vmem:[%s215 + $0x60] sm:$0xf]
      %v327 = vld [vmem:[%s215 + $0x64] sm:$0xf]
      %v328 = vld [vmem:[%s215 + $0x68] sm:$0xf]
      %v329 = vld [vmem:[%s215 + $0x6c] sm:$0xf]
      %v330 = vld [vmem:[%s215 + $0x70] sm:$0xf]
      %v331 = vld [vmem:[%s215 + $0x74] sm:$0xf]
      %v332 = vld [vmem:[%s215 + $0x78] sm:$0xf]
      %v333 = vld [vmem:[%s215 + $0x7c] sm:$0xf]
      %v334 = vld [vmem:[%s215 + $0x80] sm:$0xf]
      %v335 = vld [vmem:[%s215 + $0x84] sm:$0xf]
      %v336 = vld [vmem:[%s215 + $0x88] sm:$0xf]
      %v337 = vld [vmem:[%s215 + $0x8c] sm:$0xf]
      %v338 = vld [vmem:[%s215 + $0x90] sm:$0xf]
      %v339 = vld [vmem:[%s215 + $0x94] sm:$0xf]
      %v340 = vld [vmem:[%s215 + $0x98] sm:$0xf]
      %v341 = vld [vmem:[%s215 + $0x9c] sm:$0xf]
      %v342 = vld [vmem:[%s215 + $0xa0] sm:$0xf]
      %v343 = vld [vmem:[%s215 + $0xa4] sm:$0xf]
      %v344 = vld [vmem:[%s215 + $0xa8] sm:$0xf]
      %v345 = vld [vmem:[%s215 + $0xac] sm:$0xf]
      %v346 = vld [vmem:[%s215 + $0xb0] sm:$0xf]
      %v347 = vld [vmem:[%s215 + $0xb4] sm:$0xf]
      %v348 = vld [vmem:[%s215 + $0xb8] sm:$0xf]
      %v349 = vld [vmem:[%s215 + $0xbc] sm:$0xf]
      %v350 = vld [vmem:[%s215 + $0xc0] sm:$0xf]
      %v351 = vld [vmem:[%s215 + $0xc4] sm:$0xf]
      %v352 = vld [vmem:[%s215 + $0xc8] sm:$0xf]
      %v353 = vld [vmem:[%s215 + $0xcc] sm:$0xf]
      %v354 = vld [vmem:[%s215 + $0xd0] sm:$0xf]
      %v355 = vld [vmem:[%s215 + $0xd4] sm:$0xf]
      %v356 = vld [vmem:[%s215 + $0xd8] sm:$0xf]
      %v357 = vld [vmem:[%s215 + $0xdc] sm:$0xf]
      %v358 = vld [vmem:[%s215 + $0xe0] sm:$0xf]
      %v359 = vld [vmem:[%s215 + $0xe4] sm:$0xf]
      %v360 = vld [vmem:[%s215 + $0xe8] sm:$0xf]
      %v361 = vld [vmem:[%s215 + $0xec] sm:$0xf]
      %v362 = vld [vmem:[%s215 + $0xf0] sm:$0xf]
      %v363 = vld [vmem:[%s215 + $0xf4] sm:$0xf]
      %v364 = vld [vmem:[%s215 + $0xf8] sm:$0xf]
      %v365 = vld [vmem:[%s215 + $0xfc] sm:$0xf]
      %v366 = vld [vmem:[%s3] sm:$0xf]
      %v431 = vunpack.c.l.b16 %v302
      %v432 = vunpack.c.l.b16 %v303
      %v433 = vunpack.c.l.b16 %v304
      %v434 = vunpack.c.l.b16 %v305
      %v435 = vunpack.c.l.b16 %v306
      %v436 = vunpack.c.l.b16 %v307
      %v437 = vunpack.c.l.b16 %v308
      %v438 = vunpack.c.l.b16 %v309
      %v439 = vunpack.c.l.b16 %v310
      %v440 = vunpack.c.l.b16 %v311
      %v441 = vunpack.c.l.b16 %v312
      %v442 = vunpack.c.l.b16 %v313
      %v443 = vunpack.c.l.b16 %v314
      %v444 = vunpack.c.l.b16 %v315
      %v445 = vunpack.c.l.b16 %v316
      %v446 = vunpack.c.l.b16 %v317
      %v447 = vunpack.c.l.b16 %v318
      %v448 = vunpack.c.l.b16 %v319
      %v449 = vunpack.c.l.b16 %v320
      %v450 = vunpack.c.l.b16 %v321
      %v451 = vunpack.c.l.b16 %v322
      %v452 = vunpack.c.l.b16 %v323
      %v453 = vunpack.c.l.b16 %v324
      %v454 = vunpack.c.l.b16 %v325
      %v455 = vunpack.c.l.b16 %v326
      %v456 = vunpack.c.l.b16 %v327
      %v457 = vunpack.c.l.b16 %v328
      %v458 = vunpack.c.l.b16 %v329
      %v459 = vunpack.c.l.b16 %v330
      %v460 = vunpack.c.l.b16 %v331
      %v461 = vunpack.c.l.b16 %v332
      %v462 = vunpack.c.l.b16 %v333
      %v463 = vunpack.c.l.b16 %v334
      %v464 = vunpack.c.l.b16 %v335
      %v465 = vunpack.c.l.b16 %v336
      %v466 = vunpack.c.l.b16 %v337
      %v467 = vunpack.c.l.b16 %v338
      %v468 = vunpack.c.l.b16 %v339
      %v469 = vunpack.c.l.b16 %v340
      %v470 = vunpack.c.l.b16 %v341
      %v471 = vunpack.c.l.b16 %v342
      %v472 = vunpack.c.l.b16 %v343
      %v473 = vunpack.c.l.b16 %v344
      %v474 = vunpack.c.l.b16 %v345
      %v475 = vunpack.c.l.b16 %v346
      %v476 = vunpack.c.l.b16 %v347
      %v477 = vunpack.c.l.b16 %v348
      %v478 = vunpack.c.l.b16 %v349
      %v479 = vunpack.c.l.b16 %v350
      %v480 = vunpack.c.l.b16 %v351
      %v481 = vunpack.c.l.b16 %v352
      %v482 = vunpack.c.l.b16 %v353
      %v483 = vunpack.c.l.b16 %v354
      %v484 = vunpack.c.l.b16 %v355
      %v485 = vunpack.c.l.b16 %v356
      %v486 = vunpack.c.l.b16 %v357
      %v487 = vunpack.c.l.b16 %v358
      %v488 = vunpack.c.l.b16 %v359
      %v489 = vunpack.c.l.b16 %v360
      %v490 = vunpack.c.l.b16 %v361
      %v491 = vunpack.c.l.b16 %v362
      %v492 = vunpack.c.l.b16 %v363
      %v493 = vunpack.c.l.b16 %v364
      %v494 = vunpack.c.l.b16 %v365
      %v495 = vpack.c.b16 %v432, %v431
      %v496 = vpack.c.b16 %v434, %v433
      %v497 = vpack.c.b16 %v436, %v435
      %v498 = vpack.c.b16 %v438, %v437
      %v499 = vpack.c.b16 %v440, %v439
      %v500 = vpack.c.b16 %v442, %v441
      %v501 = vpack.c.b16 %v444, %v443
      %v502 = vpack.c.b16 %v446, %v445
      %v503 = vpack.c.b16 %v448, %v447
      %v504 = vpack.c.b16 %v450, %v449
      %v505 = vpack.c.b16 %v452, %v451
      %v506 = vpack.c.b16 %v454, %v453
      %v507 = vpack.c.b16 %v456, %v455
      %v508 = vpack.c.b16 %v458, %v457
      %v509 = vpack.c.b16 %v460, %v459
      %v510 = vpack.c.b16 %v462, %v461
      %v511 = vpack.c.b16 %v464, %v463
      %v512 = vpack.c.b16 %v466, %v465
      %v513 = vpack.c.b16 %v468, %v467
      %v514 = vpack.c.b16 %v470, %v469
      %v515 = vpack.c.b16 %v472, %v471
      %v516 = vpack.c.b16 %v474, %v473
      %v517 = vpack.c.b16 %v476, %v475
      %v518 = vpack.c.b16 %v478, %v477
      %v519 = vpack.c.b16 %v480, %v479
      %v520 = vpack.c.b16 %v482, %v481
      %v521 = vpack.c.b16 %v484, %v483
      %v522 = vpack.c.b16 %v486, %v485
      %v523 = vpack.c.b16 %v488, %v487
      %v524 = vpack.c.b16 %v490, %v489
      %v525 = vpack.c.b16 %v492, %v491
      %v526 = vpack.c.b16 %v494, %v493
      %vm527 = vcmask 64512
      %v529 = vsel %vm527, %v495, 0
      %v532 = vsel %vm527, %v496, 0
      %v535 = vsel %vm527, %v497, 0
      %v538 = vsel %vm527, %v498, 0
      %v541 = vsel %vm527, %v499, 0
      %v544 = vsel %vm527, %v500, 0
      %v547 = vsel %vm527, %v501, 0
      %v550 = vsel %vm527, %v502, 0
      %v553 = vsel %vm527, %v503, 0
      %v556 = vsel %vm527, %v504, 0
      %v559 = vsel %vm527, %v505, 0
      %v562 = vsel %vm527, %v506, 0
      %v565 = vsel %vm527, %v507, 0
      %v568 = vsel %vm527, %v508, 0
      %v571 = vsel %vm527, %v509, 0
      %v574 = vsel %vm527, %v510, 0
      %v577 = vsel %vm527, %v511, 0
      %v580 = vsel %vm527, %v512, 0
      %v583 = vsel %vm527, %v513, 0
      %v586 = vsel %vm527, %v514, 0
      %v589 = vsel %vm527, %v515, 0
      %v592 = vsel %vm527, %v516, 0
      %v595 = vsel %vm527, %v517, 0
      %v598 = vsel %vm527, %v518, 0
      %v601 = vsel %vm527, %v519, 0
      %v604 = vsel %vm527, %v520, 0
      %v607 = vsel %vm527, %v521, 0
      %v610 = vsel %vm527, %v522, 0
      %v613 = vsel %vm527, %v523, 0
      %v616 = vsel %vm527, %v524, 0
      %v619 = vsel %vm527, %v525, 0
      %v622 = vsel %vm527, %v526, 0
      %vm624 = vcmask 1043456
      %v626 = vsel %vm624, %v366, 0
      %628 = vmatprep.subr.bf16.mxu0 0
      %629 = vmatpush1.bf16.msra.mxu0 %v626
      %630 = vmatprep.subr.bf16.mxu0 0
      %631 = vmatpush1.bf16.msra.mxu0 0
      %632 = vmatprep.subr.bf16.mxu0 0
      %633 = vmatpush1.bf16.msra.mxu0 0
      %634 = vmatprep.subr.bf16.mxu0 0
      %635 = vmatpush1.bf16.msra.mxu0 0
      %636 = vmatprep.subr.bf16.mxu0 0
      %637 = vmatpush1.bf16.msra.mxu0 0
      %638 = vmatprep.subr.bf16.mxu0 0
      %639 = vmatpush1.bf16.msra.mxu0 0
      %640 = vmatprep.subr.bf16.mxu0 0
      %641 = vmatpush1.bf16.msra.mxu0 0
      %642 = vmatprep.subr.bf16.mxu0 0
      %643 = vmatpush1.bf16.msra.mxu0 0
      %644 = vmatprep.subr.bf16.mxu0 0
      %645 = vmatpush1.bf16.msra.mxu0 0
      %646 = vmatprep.subr.bf16.mxu0 0
      %647 = vmatpush1.bf16.msra.mxu0 0
      %648 = vmatprep.subr.bf16.mxu0 0
      %649 = vmatpush1.bf16.msra.mxu0 0
      %650 = vmatprep.subr.bf16.mxu0 0
      %651 = vmatpush1.bf16.msra.mxu0 0
      %652 = vmatprep.subr.bf16.mxu0 0
      %653 = vmatpush1.bf16.msra.mxu0 0
      %654 = vmatprep.subr.bf16.mxu0 0
      %655 = vmatpush1.bf16.msra.mxu0 0
      %656 = vmatprep.subr.bf16.mxu0 0
      %657 = vmatpush1.bf16.msra.mxu0 0
      %658 = vmatprep.subr.bf16.mxu0 0
      %659 = vmatpush1.bf16.msra.mxu0 0
      %660 = vmatprep.mubr.bf16.mxu0 0
      %661 = vmatmul.mubr.bf16.gmra.mrb[0].mxu0 %v529
      %v662 = vpop.f32.mrb[0].mxu0
      %v663 = vadd.f32 0.0, %v662
      %v664 = vpop.f32.mrb[0].mxu0
      %v665 = vpop.f32.mrb[0].mxu0
      %v666 = vadd.f32 0.0, %v665
      %v667 = vpop.f32.mrb[0].mxu0
      %668 = vmatprep.mubr.bf16.mxu0 0
      %669 = vmatmul.mubr.bf16.gmra.mrb[0].mxu0 %v532
      %v670 = vpop.f32.mrb[0].mxu0
      %v671 = vadd.f32 0.0, %v670
      %v672 = vpop.f32.mrb[0].mxu0
      %v673 = vpop.f32.mrb[0].mxu0
      %v674 = vadd.f32 0.0, %v673
      %v675 = vpop.f32.mrb[0].mxu0
      %676 = vmatprep.mubr.bf16.mxu0 0
      %677 = vmatmul.mubr.bf16.gmra.mrb[0].mxu0 %v535
      %v678 = vpop.f32.mrb[0].mxu0
      %v679 = vadd.f32 0.0, %v678
      %v680 = vpop.f32.mrb[0].mxu0
      %v681 = vpop.f32.mrb[0].mxu0
      %v682 = vadd.f32 0.0, %v681
      %v683 = vpop.f32.mrb[0].mxu0
      %684 = vmatprep.mubr.bf16.mxu0 0
      %685 = vmatmul.mubr.bf16.gmra.mrb[0].mxu0 %v538
      %v686 = vpop.f32.mrb[0].mxu0
      %v687 = vadd.f32 0.0, %v686
      %v688 = vpop.f32.mrb[0].mxu0
      %v689 = vpop.f32.mrb[0].mxu0
      %v690 = vadd.f32 0.0, %v689
      %v691 = vpop.f32.mrb[0].mxu0
      %692 = vmatprep.mubr.bf16.mxu0 0
      %693 = vmatmul.mubr.bf16.gmra.mrb[0].mxu0 %v541
      %v694 = vpop.f32.mrb[0].mxu0
      %v695 = vadd.f32 0.0, %v694
      %v696 = vpop.f32.mrb[0].mxu0
      %v697 = vpop.f32.mrb[0].mxu0
      %v698 = vadd.f32 0.0, %v697
      %v699 = vpop.f32.mrb[0].mxu0
      %700 = vmatprep.mubr.bf16.mxu0 0
      %701 = vmatmul.mubr.bf16.gmra.mrb[0].mxu0 %v544
      %v702 = vpop.f32.mrb[0].mxu0
      %v703 = vadd.f32 0.0, %v702
      %v704 = vpop.f32.mrb[0].mxu0
      %v705 = vpop.f32.mrb[0].mxu0
      %v706 = vadd.f32 0.0, %v705
      %v707 = vpop.f32.mrb[0].mxu0
      %708 = vmatprep.mubr.bf16.mxu0 0
      %709 = vmatmul.mubr.bf16.gmra.mrb[0].mxu0 %v547
      %v710 = vpop.f32.mrb[0].mxu0
      %v711 = vadd.f32 0.0, %v710
      %v712 = vpop.f32.mrb[0].mxu0
      %v713 = vpop.f32.mrb[0].mxu0
      %v714 = vadd.f32 0.0, %v713
      %v715 = vpop.f32.mrb[0].mxu0
      %716 = vmatprep.mubr.bf16.mxu0 0
      %717 = vmatmul.mubr.bf16.gmra.mrb[0].mxu0 %v550
      %v718 = vpop.f32.mrb[0].mxu0
      %v719 = vadd.f32 0.0, %v718
      %v720 = vpop.f32.mrb[0].mxu0
      %v721 = vpop.f32.mrb[0].mxu0
      %v722 = vadd.f32 0.0, %v721
      %v723 = vpop.f32.mrb[0].mxu0
      %724 = vmatprep.mubr.bf16.mxu0 0
      %725 = vmatmul.mubr.bf16.gmra.mrb[0].mxu0 %v553
      %v726 = vpop.f32.mrb[0].mxu0
      %v727 = vadd.f32 0.0, %v726
      %v728 = vpop.f32.mrb[0].mxu0
      %v729 = vpop.f32.mrb[0].mxu0
      %v730 = vadd.f32 0.0, %v729
      %v731 = vpop.f32.mrb[0].mxu0
      %732 = vmatprep.mubr.bf16.mxu0 0
      %733 = vmatmul.mubr.bf16.gmra.mrb[0].mxu0 %v556
      %v734 = vpop.f32.mrb[0].mxu0
      %v735 = vadd.f32 0.0, %v734
      %v736 = vpop.f32.mrb[0].mxu0
      %v737 = vpop.f32.mrb[0].mxu0
      %v738 = vadd.f32 0.0, %v737
      %v739 = vpop.f32.mrb[0].mxu0
      %740 = vmatprep.mubr.bf16.mxu0 0
      %741 = vmatmul.mubr.bf16.gmra.mrb[0].mxu0 %v559
      %v742 = vpop.f32.mrb[0].mxu0
      %v743 = vadd.f32 0.0, %v742
      %v744 = vpop.f32.mrb[0].mxu0
      %v745 = vpop.f32.mrb[0].mxu0
      %v746 = vadd.f32 0.0, %v745
      %v747 = vpop.f32.mrb[0].mxu0
      %748 = vmatprep.mubr.bf16.mxu0 0
      %749 = vmatmul.mubr.bf16.gmra.mrb[0].mxu0 %v562
      %v750 = vpop.f32.mrb[0].mxu0
      %v751 = vadd.f32 0.0, %v750
      %v752 = vpop.f32.mrb[0].mxu0
      %v753 = vpop.f32.mrb[0].mxu0
      %v754 = vadd.f32 0.0, %v753
      %v755 = vpop.f32.mrb[0].mxu0
      %756 = vmatprep.mubr.bf16.mxu0 0
      %757 = vmatmul.mubr.bf16.gmra.mrb[0].mxu0 %v565
      %v758 = vpop.f32.mrb[0].mxu0
      %v759 = vadd.f32 0.0, %v758
      %v760 = vpop.f32.mrb[0].mxu0
      %v761 = vpop.f32.mrb[0].mxu0
      %v762 = vadd.f32 0.0, %v761
      %v763 = vpop.f32.mrb[0].mxu0
      %764 = vmatprep.mubr.bf16.mxu0 0
      %765 = vmatmul.mubr.bf16.gmra.mrb[0].mxu0 %v568
      %v766 = vpop.f32.mrb[0].mxu0
      %v767 = vadd.f32 0.0, %v766
      %v768 = vpop.f32.mrb[0].mxu0
      %v769 = vpop.f32.mrb[0].mxu0
      %v770 = vadd.f32 0.0, %v769
      %v771 = vpop.f32.mrb[0].mxu0
      %772 = vmatprep.mubr.bf16.mxu0 0
      %773 = vmatmul.mubr.bf16.gmra.mrb[0].mxu0 %v571
      %v774 = vpop.f32.mrb[0].mxu0
      %v775 = vadd.f32 0.0, %v774
      %v776 = vpop.f32.mrb[0].mxu0
      %v777 = vpop.f32.mrb[0].mxu0
      %v778 = vadd.f32 0.0, %v777
      %v779 = vpop.f32.mrb[0].mxu0
      %780 = vmatprep.mubr.bf16.mxu0 0
      %781 = vmatmul.mubr.bf16.gmra.mrb[0].mxu0 %v574
      %v782 = vpop.f32.mrb[0].mxu0
      %v783 = vadd.f32 0.0, %v782
      %v784 = vpop.f32.mrb[0].mxu0
      %v785 = vpop.f32.mrb[0].mxu0
      %v786 = vadd.f32 0.0, %v785
      %v787 = vpop.f32.mrb[0].mxu0
      %788 = vmatprep.mubr.bf16.mxu0 0
      %789 = vmatmul.mubr.bf16.gmra.mrb[0].mxu0 %v577
      %v790 = vpop.f32.mrb[0].mxu0
      %v791 = vadd.f32 0.0, %v790
      %v792 = vpop.f32.mrb[0].mxu0
      %v793 = vpop.f32.mrb[0].mxu0
      %v794 = vadd.f32 0.0, %v793
      %v795 = vpop.f32.mrb[0].mxu0
      %796 = vmatprep.mubr.bf16.mxu0 0
      %797 = vmatmul.mubr.bf16.gmra.mrb[0].mxu0 %v580
      %v798 = vpop.f32.mrb[0].mxu0
      %v799 = vadd.f32 0.0, %v798
      %v800 = vpop.f32.mrb[0].mxu0
      %v801 = vpop.f32.mrb[0].mxu0
      %v802 = vadd.f32 0.0, %v801
      %v803 = vpop.f32.mrb[0].mxu0
      %804 = vmatprep.mubr.bf16.mxu0 0
      %805 = vmatmul.mubr.bf16.gmra.mrb[0].mxu0 %v583
      %v806 = vpop.f32.mrb[0].mxu0
      %v807 = vadd.f32 0.0, %v806
      %v808 = vpop.f32.mrb[0].mxu0
      %v809 = vpop.f32.mrb[0].mxu0
      %v810 = vadd.f32 0.0, %v809
      %v811 = vpop.f32.mrb[0].mxu0
      %812 = vmatprep.mubr.bf16.mxu0 0
      %813 = vmatmul.mubr.bf16.gmra.mrb[0].mxu0 %v586
      %v814 = vpop.f32.mrb[0].mxu0
      %v815 = vadd.f32 0.0, %v814
      %v816 = vpop.f32.mrb[0].mxu0
      %v817 = vpop.f32.mrb[0].mxu0
      %v818 = vadd.f32 0.0, %v817
      %v819 = vpop.f32.mrb[0].mxu0
      %820 = vmatprep.mubr.bf16.mxu0 0
      %821 = vmatmul.mubr.bf16.gmra.mrb[0].mxu0 %v589
      %v822 = vpop.f32.mrb[0].mxu0
      %v823 = vadd.f32 0.0, %v822
      %v824 = vpop.f32.mrb[0].mxu0
      %v825 = vpop.f32.mrb[0].mxu0
      %v826 = vadd.f32 0.0, %v825
      %v827 = vpop.f32.mrb[0].mxu0
      %828 = vmatprep.mubr.bf16.mxu0 0
      %829 = vmatmul.mubr.bf16.gmra.mrb[0].mxu0 %v592
      %v830 = vpop.f32.mrb[0].mxu0
      %v831 = vadd.f32 0.0, %v830
      %v832 = vpop.f32.mrb[0].mxu0
      %v833 = vpop.f32.mrb[0].mxu0
      %v834 = vadd.f32 0.0, %v833
      %v835 = vpop.f32.mrb[0].mxu0
      %836 = vmatprep.mubr.bf16.mxu0 0
      %837 = vmatmul.mubr.bf16.gmra.mrb[0].mxu0 %v595
      %v838 = vpop.f32.mrb[0].mxu0
      %v839 = vadd.f32 0.0, %v838
      %v840 = vpop.f32.mrb[0].mxu0
      %v841 = vpop.f32.mrb[0].mxu0
      %v842 = vadd.f32 0.0, %v841
      %v843 = vpop.f32.mrb[0].mxu0
      %844 = vmatprep.mubr.bf16.mxu0 0
      %845 = vmatmul.mubr.bf16.gmra.mrb[0].mxu0 %v598
      %v846 = vpop.f32.mrb[0].mxu0
      %v847 = vadd.f32 0.0, %v846
      %v848 = vpop.f32.mrb[0].mxu0
      %v849 = vpop.f32.mrb[0].mxu0
      %v850 = vadd.f32 0.0, %v849
      %v851 = vpop.f32.mrb[0].mxu0
      %852 = vmatprep.mubr.bf16.mxu0 0
      %853 = vmatmul.mubr.bf16.gmra.mrb[0].mxu0 %v601
      %v854 = vpop.f32.mrb[0].mxu0
      %v855 = vadd.f32 0.0, %v854
      %v856 = vpop.f32.mrb[0].mxu0
      %v857 = vpop.f32.mrb[0].mxu0
      %v858 = vadd.f32 0.0, %v857
      %v859 = vpop.f32.mrb[0].mxu0
      %860 = vmatprep.mubr.bf16.mxu0 0
      %861 = vmatmul.mubr.bf16.gmra.mrb[0].mxu0 %v604
      %v862 = vpop.f32.mrb[0].mxu0
      %v863 = vadd.f32 0.0, %v862
      %v864 = vpop.f32.mrb[0].mxu0
      %v865 = vpop.f32.mrb[0].mxu0
      %v866 = vadd.f32 0.0, %v865
      %v867 = vpop.f32.mrb[0].mxu0
      %868 = vmatprep.mubr.bf16.mxu0 0
      %869 = vmatmul.mubr.bf16.gmra.mrb[0].mxu0 %v607
      %v870 = vpop.f32.mrb[0].mxu0
      %v871 = vadd.f32 0.0, %v870
      %v872 = vpop.f32.mrb[0].mxu0
      %v873 = vpop.f32.mrb[0].mxu0
      %v874 = vadd.f32 0.0, %v873
      %v875 = vpop.f32.mrb[0].mxu0
      %876 = vmatprep.mubr.bf16.mxu0 0
      %877 = vmatmul.mubr.bf16.gmra.mrb[0].mxu0 %v610
      %v878 = vpop.f32.mrb[0].mxu0
      %v879 = vadd.f32 0.0, %v878
      %v880 = vpop.f32.mrb[0].mxu0
      %v881 = vpop.f32.mrb[0].mxu0
      %v882 = vadd.f32 0.0, %v881
      %v883 = vpop.f32.mrb[0].mxu0
      %884 = vmatprep.mubr.bf16.mxu0 0
      %885 = vmatmul.mubr.bf16.gmra.mrb[0].mxu0 %v613
      %v886 = vpop.f32.mrb[0].mxu0
      %v887 = vadd.f32 0.0, %v886
      %v888 = vpop.f32.mrb[0].mxu0
      %v889 = vpop.f32.mrb[0].mxu0
      %v890 = vadd.f32 0.0, %v889
      %v891 = vpop.f32.mrb[0].mxu0
      %892 = vmatprep.mubr.bf16.mxu0 0
      %893 = vmatmul.mubr.bf16.gmra.mrb[0].mxu0 %v616
      %v894 = vpop.f32.mrb[0].mxu0
      %v895 = vadd.f32 0.0, %v894
      %v896 = vpop.f32.mrb[0].mxu0
      %v897 = vpop.f32.mrb[0].mxu0
      %v898 = vadd.f32 0.0, %v897
      %v899 = vpop.f32.mrb[0].mxu0
      %900 = vmatprep.mubr.bf16.mxu0 0
      %901 = vmatmul.mubr.bf16.gmra.mrb[0].mxu0 %v619
      %v902 = vpop.f32.mrb[0].mxu0
      %v903 = vadd.f32 0.0, %v902
      %v904 = vpop.f32.mrb[0].mxu0
      %v905 = vpop.f32.mrb[0].mxu0
      %v906 = vadd.f32 0.0, %v905
      %v907 = vpop.f32.mrb[0].mxu0
      %908 = vmatprep.mubr.bf16.mxu0 0
      %909 = vmatmul.mubr.bf16.gmra.mrb[0].mxu0 %v622
      %v910 = vpop.f32.mrb[0].mxu0
      %v911 = vadd.f32 0.0, %v910
      %v912 = vpop.f32.mrb[0].mxu0
      %v913 = vpop.f32.mrb[0].mxu0
      %v914 = vadd.f32 0.0, %v913
      %v915 = vpop.f32.mrb[0].mxu0
      %916 = vdwg.mxu0
      %v981 = vunpack.c.l.b16 %v224
      %v982 = vunpack.c.l.b16 %v225
      %v983 = vunpack.c.l.b16 %v226
      %v984 = vunpack.c.l.b16 %v227
      %v985 = vunpack.c.l.b16 %v228
      %v986 = vunpack.c.l.b16 %v229
      %v987 = vunpack.c.l.b16 %v230
      %v988 = vunpack.c.l.b16 %v231
      %v989 = vunpack.c.l.b16 %v232
      %v990 = vunpack.c.l.b16 %v233
      %v991 = vunpack.c.l.b16 %v234
      %v992 = vunpack.c.l.b16 %v235
      %v993 = vunpack.c.l.b16 %v236
      %v994 = vunpack.c.l.b16 %v237
      %v995 = vunpack.c.l.b16 %v238
      %v996 = vunpack.c.l.b16 %v239
      %v997 = vunpack.c.l.b16 %v240
      %v998 = vunpack.c.l.b16 %v241
      %v999 = vunpack.c.l.b16 %v242
      %v1000 = vunpack.c.l.b16 %v243
      %v1001 = vunpack.c.l.b16 %v244
      %v1002 = vunpack.c.l.b16 %v245
      %v1003 = vunpack.c.l.b16 %v246
      %v1004 = vunpack.c.l.b16 %v247
      %v1005 = vunpack.c.l.b16 %v248
      %v1006 = vunpack.c.l.b16 %v249
      %v1007 = vunpack.c.l.b16 %v250
      %v1008 = vunpack.c.l.b16 %v251
      %v1009 = vunpack.c.l.b16 %v252
      %v1010 = vunpack.c.l.b16 %v253
      %v1011 = vunpack.c.l.b16 %v254
      %v1012 = vunpack.c.l.b16 %v255
      %v1013 = vunpack.c.l.b16 %v256
      %v1014 = vunpack.c.l.b16 %v257
      %v1015 = vunpack.c.l.b16 %v258
      %v1016 = vunpack.c.l.b16 %v259
      %v1017 = vunpack.c.l.b16 %v260
      %v1018 = vunpack.c.l.b16 %v261
      %v1019 = vunpack.c.l.b16 %v262
      %v1020 = vunpack.c.l.b16 %v263
      %v1021 = vunpack.c.l.b16 %v264
      %v1022 = vunpack.c.l.b16 %v265
      %v1023 = vunpack.c.l.b16 %v266
      %v1024 = vunpack.c.l.b16 %v267
      %v1025 = vunpack.c.l.b16 %v268
      %v1026 = vunpack.c.l.b16 %v269
      %v1027 = vunpack.c.l.b16 %v270
      %v1028 = vunpack.c.l.b16 %v271
      %v1029 = vunpack.c.l.b16 %v272
      %v1030 = vunpack.c.l.b16 %v273
      %v1031 = vunpack.c.l.b16 %v274
      %v1032 = vunpack.c.l.b16 %v275
      %v1033 = vunpack.c.l.b16 %v276
      %v1034 = vunpack.c.l.b16 %v277
      %v1035 = vunpack.c.l.b16 %v278
      %v1036 = vunpack.c.l.b16 %v279
      %v1037 = vunpack.c.l.b16 %v280
      %v1038 = vunpack.c.l.b16 %v281
      %v1039 = vunpack.c.l.b16 %v282
      %v1040 = vunpack.c.l.b16 %v283
      %v1041 = vunpack.c.l.b16 %v284
      %v1042 = vunpack.c.l.b16 %v285
      %v1043 = vunpack.c.l.b16 %v286
      %v1044 = vunpack.c.l.b16 %v287
      %v1045 = vpack.c.b16 %v982, %v981
      %v1046 = vpack.c.b16 %v984, %v983
      %v1047 = vpack.c.b16 %v986, %v985
      %v1048 = vpack.c.b16 %v988, %v987
      %v1049 = vpack.c.b16 %v990, %v989
      %v1050 = vpack.c.b16 %v992, %v991
      %v1051 = vpack.c.b16 %v994, %v993
      %v1052 = vpack.c.b16 %v996, %v995
      %v1053 = vpack.c.b16 %v998, %v997
      %v1054 = vpack.c.b16 %v1000, %v999
      %v1055 = vpack.c.b16 %v1002, %v1001
      %v1056 = vpack.c.b16 %v1004, %v1003
      %v1057 = vpack.c.b16 %v1006, %v1005
      %v1058 = vpack.c.b16 %v1008, %v1007
      %v1059 = vpack.c.b16 %v1010, %v1009
      %v1060 = vpack.c.b16 %v1012, %v1011
      %v1061 = vpack.c.b16 %v1014, %v1013
      %v1062 = vpack.c.b16 %v1016, %v1015
      %v1063 = vpack.c.b16 %v1018, %v1017
      %v1064 = vpack.c.b16 %v1020, %v1019
      %v1065 = vpack.c.b16 %v1022, %v1021
      %v1066 = vpack.c.b16 %v1024, %v1023
      %v1067 = vpack.c.b16 %v1026, %v1025
      %v1068 = vpack.c.b16 %v1028, %v1027
      %v1069 = vpack.c.b16 %v1030, %v1029
      %v1070 = vpack.c.b16 %v1032, %v1031
      %v1071 = vpack.c.b16 %v1034, %v1033
      %v1072 = vpack.c.b16 %v1036, %v1035
      %v1073 = vpack.c.b16 %v1038, %v1037
      %v1074 = vpack.c.b16 %v1040, %v1039
      %v1075 = vpack.c.b16 %v1042, %v1041
      %v1076 = vpack.c.b16 %v1044, %v1043
      %v1091 = vunpack.c.l.b16 %v288
      %v1092 = vunpack.c.l.b16 %v289
      %v1093 = vunpack.c.l.b16 %v290
      %v1094 = vunpack.c.l.b16 %v291
      %v1095 = vunpack.c.l.b16 %v292
      %v1096 = vunpack.c.l.b16 %v293
      %v1097 = vunpack.c.l.b16 %v294
      %v1098 = vunpack.c.l.b16 %v295
      %v1099 = vunpack.c.l.b16 %v296
      %v1100 = vunpack.c.l.b16 %v297
      %v1101 = vunpack.c.l.b16 %v298
      %v1102 = vunpack.c.l.b16 %v299
      %v1103 = vunpack.c.l.b16 %v300
      %v1104 = vunpack.c.l.b16 %v301
      %v1105 = vpack.c.b16 %v1092, %v1091
      %v1106 = vpack.c.b16 %v1094, %v1093
      %v1107 = vpack.c.b16 %v1096, %v1095
      %v1108 = vpack.c.b16 %v1098, %v1097
      %v1109 = vpack.c.b16 %v1100, %v1099
      %v1110 = vpack.c.b16 %v1102, %v1101
      %v1111 = vpack.c.b16 %v1104, %v1103
      %vm1118 = vcmask 883712
      %v1120 = vsel %vm1118, %v1045, 0
      %v1123 = vsel %vm1118, %v1046, 0
      %v1126 = vsel %vm1118, %v1047, 0
      %v1129 = vsel %vm1118, %v1048, 0
      %v1132 = vsel %vm1118, %v1049, 0
      %v1135 = vsel %vm1118, %v1050, 0
      %v1138 = vsel %vm1118, %v1051, 0
      %v1141 = vsel %vm1118, %v1052, 0
      %v1144 = vsel %vm1118, %v1053, 0
      %v1147 = vsel %vm1118, %v1054, 0
      %v1150 = vsel %vm1118, %v1055, 0
      %v1153 = vsel %vm1118, %v1056, 0
      %v1156 = vsel %vm1118, %v1057, 0
      %v1159 = vsel %vm1118, %v1058, 0
      %v1162 = vsel %vm1118, %v1059, 0
      %v1165 = vsel %vm1118, %v1060, 0
      %v1168 = vsel %vm1118, %v1061, 0
      %v1171 = vsel %vm1118, %v1062, 0
      %v1174 = vsel %vm1118, %v1063, 0
      %v1177 = vsel %vm1118, %v1064, 0
      %v1180 = vsel %vm1118, %v1065, 0
      %v1183 = vsel %vm1118, %v1066, 0
      %v1186 = vsel %vm1118, %v1067, 0
      %v1189 = vsel %vm1118, %v1068, 0
      %v1192 = vsel %vm1118, %v1069, 0
      %v1195 = vsel %vm1118, %v1070, 0
      %v1198 = vsel %vm1118, %v1071, 0
      %v1201 = vsel %vm1118, %v1072, 0
      %v1204 = vsel %vm1118, %v1073, 0
      %v1207 = vsel %vm1118, %v1074, 0
      %v1210 = vsel %vm1118, %v1075, 0
      %v1213 = vsel %vm1118, %v1076, 0
      %vm1215 = vcmask 1045504
      %v1217 = vsel %vm1215, %v1111, 0
      %1219 = vmatprep.subr.bf16.mxu0 0
      %1220 = vmatpush1.bf16.msra.mxu0 %v1105
      %1221 = vmatprep.subr.bf16.mxu0 0
      %1222 = vmatpush1.bf16.msra.mxu0 %v1106
      %1223 = vmatprep.subr.bf16.mxu0 0
      %1224 = vmatpush1.bf16.msra.mxu0 %v1107
      %1225 = vmatprep.subr.bf16.mxu0 0
      %1226 = vmatpush1.bf16.msra.mxu0 %v1108
      %1227 = vmatprep.subr.bf16.mxu0 0
      %1228 = vmatpush1.bf16.msra.mxu0 %v1109
      %1229 = vmatprep.subr.bf16.mxu0 0
      %1230 = vmatpush1.bf16.msra.mxu0 %v1110
      %1231 = vmatprep.subr.bf16.mxu0 0
      %1232 = vmatpush1.bf16.msra.mxu0 %v1217
      %1233 = vmatprep.subr.bf16.mxu0 0
      %1234 = vmatpush1.bf16.msra.mxu0 0
      %1235 = vmatprep.subr.bf16.mxu0 0
      %1236 = vmatpush1.bf16.msra.mxu0 0
      %1237 = vmatprep.subr.bf16.mxu0 0
      %1238 = vmatpush1.bf16.msra.mxu0 0
      %1239 = vmatprep.subr.bf16.mxu0 0
      %1240 = vmatpush1.bf16.msra.mxu0 0
      %1241 = vmatprep.subr.bf16.mxu0 0
      %1242 = vmatpush1.bf16.msra.mxu0 0
      %1243 = vmatprep.subr.bf16.mxu0 0
      %1244 = vmatpush1.bf16.msra.mxu0 0
      %1245 = vmatprep.subr.bf16.mxu0 0
      %1246 = vmatpush1.bf16.msra.mxu0 0
      %1247 = vmatprep.subr.bf16.mxu0 0
      %1248 = vmatpush1.bf16.msra.mxu0 0
      %1249 = vmatprep.subr.bf16.mxu0 0
      %1250 = vmatpush1.bf16.msra.mxu0 0
      %1251 = vmatprep.mubr.bf16.mxu0 0
      %1252 = vmatmul.mubr.bf16.gmra.mrb[0].mxu0 %v1120
      %v1253 = vpop.f32.mrb[0].mxu0
      %v1254 = vadd.f32 %v663, %v1253
      %v1255 = vpop.f32.mrb[0].mxu0
      %v1256 = vpop.f32.mrb[0].mxu0
      %v1257 = vadd.f32 %v666, %v1256
      %v1258 = vpop.f32.mrb[0].mxu0
      %1259 = vmatprep.mubr.bf16.mxu0 0
      %1260 = vmatmul.mubr.bf16.gmra.mrb[0].mxu0 %v1123
      %v1261 = vpop.f32.mrb[0].mxu0
      %v1262 = vadd.f32 %v671, %v1261
      %v1263 = vpop.f32.mrb[0].mxu0
      %v1264 = vpop.f32.mrb[0].mxu0
      %v1265 = vadd.f32 %v674, %v1264
      %v1266 = vpop.f32.mrb[0].mxu0
      %1267 = vmatprep.mubr.bf16.mxu0 0
      %1268 = vmatmul.mubr.bf16.gmra.mrb[0].mxu0 %v1126
      %v1269 = vpop.f32.mrb[0].mxu0
      %v1270 = vadd.f32 %v679, %v1269
      %v1271 = vpop.f32.mrb[0].mxu0
      %v1272 = vpop.f32.mrb[0].mxu0
      %v1273 = vadd.f32 %v682, %v1272
      %v1274 = vpop.f32.mrb[0].mxu0
      %1275 = vmatprep.mubr.bf16.mxu0 0
      %1276 = vmatmul.mubr.bf16.gmra.mrb[0].mxu0 %v1129
      %v1277 = vpop.f32.mrb[0].mxu0
      %v1278 = vadd.f32 %v687, %v1277
      %v1279 = vpop.f32.mrb[0].mxu0
      %v1280 = vpop.f32.mrb[0].mxu0
      %v1281 = vadd.f32 %v690, %v1280
      %v1282 = vpop.f32.mrb[0].mxu0
      %1283 = vmatprep.mubr.bf16.mxu0 0
      %1284 = vmatmul.mubr.bf16.gmra.mrb[0].mxu0 %v1132
      %v1285 = vpop.f32.mrb[0].mxu0
      %v1286 = vadd.f32 %v695, %v1285
      %v1287 = vpop.f32.mrb[0].mxu0
      %v1288 = vpop.f32.mrb[0].mxu0
      %v1289 = vadd.f32 %v698, %v1288
      %v1290 = vpop.f32.mrb[0].mxu0
      %1291 = vmatprep.mubr.bf16.mxu0 0
      %1292 = vmatmul.mubr.bf16.gmra.mrb[0].mxu0 %v1135
      %v1293 = vpop.f32.mrb[0].mxu0
      %v1294 = vadd.f32 %v703, %v1293
      %v1295 = vpop.f32.mrb[0].mxu0
      %v1296 = vpop.f32.mrb[0].mxu0
      %v1297 = vadd.f32 %v706, %v1296
      %v1298 = vpop.f32.mrb[0].mxu0
      %1299 = vmatprep.mubr.bf16.mxu0 0
      %1300 = vmatmul.mubr.bf16.gmra.mrb[0].mxu0 %v1138
      %v1301 = vpop.f32.mrb[0].mxu0
      %v1302 = vadd.f32 %v711, %v1301
      %v1303 = vpop.f32.mrb[0].mxu0
      %v1304 = vpop.f32.mrb[0].mxu0
      %v1305 = vadd.f32 %v714, %v1304
      %v1306 = vpop.f32.mrb[0].mxu0
      %1307 = vmatprep.mubr.bf16.mxu0 0
      %1308 = vmatmul.mubr.bf16.gmra.mrb[0].mxu0 %v1141
      %v1309 = vpop.f32.mrb[0].mxu0
      %v1310 = vadd.f32 %v719, %v1309
      %v1311 = vpop.f32.mrb[0].mxu0
      %v1312 = vpop.f32.mrb[0].mxu0
      %v1313 = vadd.f32 %v722, %v1312
      %v1314 = vpop.f32.mrb[0].mxu0
      %1315 = vmatprep.mubr.bf16.mxu0 0
      %1316 = vmatmul.mubr.bf16.gmra.mrb[0].mxu0 %v1144
      %v1317 = vpop.f32.mrb[0].mxu0
      %v1318 = vadd.f32 %v727, %v1317
      %v1319 = vpop.f32.mrb[0].mxu0
      %v1320 = vpop.f32.mrb[0].mxu0
      %v1321 = vadd.f32 %v730, %v1320
      %v1322 = vpop.f32.mrb[0].mxu0
      %1323 = vmatprep.mubr.bf16.mxu0 0
      %1324 = vmatmul.mubr.bf16.gmra.mrb[0].mxu0 %v1147
      %v1325 = vpop.f32.mrb[0].mxu0
      %v1326 = vadd.f32 %v735, %v1325
      %v1327 = vpop.f32.mrb[0].mxu0
      %v1328 = vpop.f32.mrb[0].mxu0
      %v1329 = vadd.f32 %v738, %v1328
      %v1330 = vpop.f32.mrb[0].mxu0
      %1331 = vmatprep.mubr.bf16.mxu0 0
      %1332 = vmatmul.mubr.bf16.gmra.mrb[0].mxu0 %v1150
      %v1333 = vpop.f32.mrb[0].mxu0
      %v1334 = vadd.f32 %v743, %v1333
      %v1335 = vpop.f32.mrb[0].mxu0
      %v1336 = vpop.f32.mrb[0].mxu0
      %v1337 = vadd.f32 %v746, %v1336
      %v1338 = vpop.f32.mrb[0].mxu0
      %1339 = vmatprep.mubr.bf16.mxu0 0
      %1340 = vmatmul.mubr.bf16.gmra.mrb[0].mxu0 %v1153
      %v1341 = vpop.f32.mrb[0].mxu0
      %v1342 = vadd.f32 %v751, %v1341
      %v1343 = vpop.f32.mrb[0].mxu0
      %v1344 = vpop.f32.mrb[0].mxu0
      %v1345 = vadd.f32 %v754, %v1344
      %v1346 = vpop.f32.mrb[0].mxu0
      %1347 = vmatprep.mubr.bf16.mxu0 0
      %1348 = vmatmul.mubr.bf16.gmra.mrb[0].mxu0 %v1156
      %v1349 = vpop.f32.mrb[0].mxu0
      %v1350 = vadd.f32 %v759, %v1349
      %v1351 = vpop.f32.mrb[0].mxu0
      %v1352 = vpop.f32.mrb[0].mxu0
      %v1353 = vadd.f32 %v762, %v1352
      %v1354 = vpop.f32.mrb[0].mxu0
      %1355 = vmatprep.mubr.bf16.mxu0 0
      %1356 = vmatmul.mubr.bf16.gmra.mrb[0].mxu0 %v1159
      %v1357 = vpop.f32.mrb[0].mxu0
      %v1358 = vadd.f32 %v767, %v1357
      %v1359 = vpop.f32.mrb[0].mxu0
      %v1360 = vpop.f32.mrb[0].mxu0
      %v1361 = vadd.f32 %v770, %v1360
      %v1362 = vpop.f32.mrb[0].mxu0
      %1363 = vmatprep.mubr.bf16.mxu0 0
      %1364 = vmatmul.mubr.bf16.gmra.mrb[0].mxu0 %v1162
      %v1365 = vpop.f32.mrb[0].mxu0
      %v1366 = vadd.f32 %v775, %v1365
      %v1367 = vpop.f32.mrb[0].mxu0
      %v1368 = vpop.f32.mrb[0].mxu0
      %v1369 = vadd.f32 %v778, %v1368
      %v1370 = vpop.f32.mrb[0].mxu0
      %1371 = vmatprep.mubr.bf16.mxu0 0
      %1372 = vmatmul.mubr.bf16.gmra.mrb[0].mxu0 %v1165
      %v1373 = vpop.f32.mrb[0].mxu0
      %v1374 = vadd.f32 %v783, %v1373
      %v1375 = vpop.f32.mrb[0].mxu0
      %v1376 = vpop.f32.mrb[0].mxu0
      %v1377 = vadd.f32 %v786, %v1376
      %v1378 = vpop.f32.mrb[0].mxu0
      %1379 = vmatprep.mubr.bf16.mxu0 0
      %1380 = vmatmul.mubr.bf16.gmra.mrb[0].mxu0 %v1168
      %v1381 = vpop.f32.mrb[0].mxu0
      %v1382 = vadd.f32 %v791, %v1381
      %v1383 = vpop.f32.mrb[0].mxu0
      %v1384 = vpop.f32.mrb[0].mxu0
      %v1385 = vadd.f32 %v794, %v1384
      %v1386 = vpop.f32.mrb[0].mxu0
      %1387 = vmatprep.mubr.bf16.mxu0 0
      %1388 = vmatmul.mubr.bf16.gmra.mrb[0].mxu0 %v1171
      %v1389 = vpop.f32.mrb[0].mxu0
      %v1390 = vadd.f32 %v799, %v1389
      %v1391 = vpop.f32.mrb[0].mxu0
      %v1392 = vpop.f32.mrb[0].mxu0
      %v1393 = vadd.f32 %v802, %v1392
      %v1394 = vpop.f32.mrb[0].mxu0
      %1395 = vmatprep.mubr.bf16.mxu0 0
      %1396 = vmatmul.mubr.bf16.gmra.mrb[0].mxu0 %v1174
      %v1397 = vpop.f32.mrb[0].mxu0
      %v1398 = vadd.f32 %v807, %v1397
      %v1399 = vpop.f32.mrb[0].mxu0
      %v1400 = vpop.f32.mrb[0].mxu0
      %v1401 = vadd.f32 %v810, %v1400
      %v1402 = vpop.f32.mrb[0].mxu0
      %1403 = vmatprep.mubr.bf16.mxu0 0
      %1404 = vmatmul.mubr.bf16.gmra.mrb[0].mxu0 %v1177
      %v1405 = vpop.f32.mrb[0].mxu0
      %v1406 = vadd.f32 %v815, %v1405
      %v1407 = vpop.f32.mrb[0].mxu0
      %v1408 = vpop.f32.mrb[0].mxu0
      %v1409 = vadd.f32 %v818, %v1408
      %v1410 = vpop.f32.mrb[0].mxu0
      %1411 = vmatprep.mubr.bf16.mxu0 0
      %1412 = vmatmul.mubr.bf16.gmra.mrb[0].mxu0 %v1180
      %v1413 = vpop.f32.mrb[0].mxu0
      %v1414 = vadd.f32 %v823, %v1413
      %v1415 = vpop.f32.mrb[0].mxu0
      %v1416 = vpop.f32.mrb[0].mxu0
      %v1417 = vadd.f32 %v826, %v1416
      %v1418 = vpop.f32.mrb[0].mxu0
      %1419 = vmatprep.mubr.bf16.mxu0 0
      %1420 = vmatmul.mubr.bf16.gmra.mrb[0].mxu0 %v1183
      %v1421 = vpop.f32.mrb[0].mxu0
      %v1422 = vadd.f32 %v831, %v1421
      %v1423 = vpop.f32.mrb[0].mxu0
      %v1424 = vpop.f32.mrb[0].mxu0
      %v1425 = vadd.f32 %v834, %v1424
      %v1426 = vpop.f32.mrb[0].mxu0
      %1427 = vmatprep.mubr.bf16.mxu0 0
      %1428 = vmatmul.mubr.bf16.gmra.mrb[0].mxu0 %v1186
      %v1429 = vpop.f32.mrb[0].mxu0
      %v1430 = vadd.f32 %v839, %v1429
      %v1431 = vpop.f32.mrb[0].mxu0
      %v1432 = vpop.f32.mrb[0].mxu0
      %v1433 = vadd.f32 %v842, %v1432
      %v1434 = vpop.f32.mrb[0].mxu0
      %1435 = vmatprep.mubr.bf16.mxu0 0
      %1436 = vmatmul.mubr.bf16.gmra.mrb[0].mxu0 %v1189
      %v1437 = vpop.f32.mrb[0].mxu0
      %v1438 = vadd.f32 %v847, %v1437
      %v1439 = vpop.f32.mrb[0].mxu0
      %v1440 = vpop.f32.mrb[0].mxu0
      %v1441 = vadd.f32 %v850, %v1440
      %v1442 = vpop.f32.mrb[0].mxu0
      %1443 = vmatprep.mubr.bf16.mxu0 0
      %1444 = vmatmul.mubr.bf16.gmra.mrb[0].mxu0 %v1192
      %v1445 = vpop.f32.mrb[0].mxu0
      %v1446 = vadd.f32 %v855, %v1445
      %v1447 = vpop.f32.mrb[0].mxu0
      %v1448 = vpop.f32.mrb[0].mxu0
      %v1449 = vadd.f32 %v858, %v1448
      %v1450 = vpop.f32.mrb[0].mxu0
      %1451 = vmatprep.mubr.bf16.mxu0 0
      %1452 = vmatmul.mubr.bf16.gmra.mrb[0].mxu0 %v1195
      %v1453 = vpop.f32.mrb[0].mxu0
      %v1454 = vadd.f32 %v863, %v1453
      %v1455 = vpop.f32.mrb[0].mxu0
      %v1456 = vpop.f32.mrb[0].mxu0
      %v1457 = vadd.f32 %v866, %v1456
      %v1458 = vpop.f32.mrb[0].mxu0
      %1459 = vmatprep.mubr.bf16.mxu0 0
      %1460 = vmatmul.mubr.bf16.gmra.mrb[0].mxu0 %v1198
      %v1461 = vpop.f32.mrb[0].mxu0
      %v1462 = vadd.f32 %v871, %v1461
      %v1463 = vpop.f32.mrb[0].mxu0
      %v1464 = vpop.f32.mrb[0].mxu0
      %v1465 = vadd.f32 %v874, %v1464
      %v1466 = vpop.f32.mrb[0].mxu0
      %1467 = vmatprep.mubr.bf16.mxu0 0
      %1468 = vmatmul.mubr.bf16.gmra.mrb[0].mxu0 %v1201
      %v1469 = vpop.f32.mrb[0].mxu0
      %v1470 = vadd.f32 %v879, %v1469
      %v1471 = vpop.f32.mrb[0].mxu0
      %v1472 = vpop.f32.mrb[0].mxu0
      %v1473 = vadd.f32 %v882, %v1472
      %v1474 = vpop.f32.mrb[0].mxu0
      %1475 = vmatprep.mubr.bf16.mxu0 0
      %1476 = vmatmul.mubr.bf16.gmra.mrb[0].mxu0 %v1204
      %v1477 = vpop.f32.mrb[0].mxu0
      %v1478 = vadd.f32 %v887, %v1477
      %v1479 = vpop.f32.mrb[0].mxu0
      %v1480 = vpop.f32.mrb[0].mxu0
      %v1481 = vadd.f32 %v890, %v1480
      %v1482 = vpop.f32.mrb[0].mxu0
      %1483 = vmatprep.mubr.bf16.mxu0 0
      %1484 = vmatmul.mubr.bf16.gmra.mrb[0].mxu0 %v1207
      %v1485 = vpop.f32.mrb[0].mxu0
      %v1486 = vadd.f32 %v895, %v1485
      %v1487 = vpop.f32.mrb[0].mxu0
      %v1488 = vpop.f32.mrb[0].mxu0
      %v1489 = vadd.f32 %v898, %v1488
      %v1490 = vpop.f32.mrb[0].mxu0
      %1491 = vmatprep.mubr.bf16.mxu0 0
      %1492 = vmatmul.mubr.bf16.gmra.mrb[0].mxu0 %v1210
      %v1493 = vpop.f32.mrb[0].mxu0
      %v1494 = vadd.f32 %v903, %v1493
      %v1495 = vpop.f32.mrb[0].mxu0
      %v1496 = vpop.f32.mrb[0].mxu0
      %v1497 = vadd.f32 %v906, %v1496
      %v1498 = vpop.f32.mrb[0].mxu0
      %1499 = vmatprep.mubr.bf16.mxu0 0
      %1500 = vmatmul.mubr.bf16.gmra.mrb[0].mxu0 %v1213
      %v1501 = vpop.f32.mrb[0].mxu0
      %v1502 = vadd.f32 %v911, %v1501
      %v1503 = vpop.f32.mrb[0].mxu0
      %v1504 = vpop.f32.mrb[0].mxu0
      %v1505 = vadd.f32 %v914, %v1504
      %v1506 = vpop.f32.mrb[0].mxu0
      %1507 = vdwg.mxu0
      %vm1508 = vcmask 31744
      %1509 = vst.msk [vmem:[%s221] sm:$0xff] %vm1508, %v1254
      %1510 = vst.msk [vmem:[%s221 + $0x8] sm:$0xff] %vm1508, %v1257
      %1511 = vst.msk [vmem:[%s221 + $0x10] sm:$0xff] %vm1508, %v1262
      %1512 = vst.msk [vmem:[%s221 + $0x18] sm:$0xff] %vm1508, %v1265
      %1513 = vst.msk [vmem:[%s221 + $0x20] sm:$0xff] %vm1508, %v1270
      %1514 = vst.msk [vmem:[%s221 + $0x28] sm:$0xff] %vm1508, %v1273
      %1515 = vst.msk [vmem:[%s221 + $0x30] sm:$0xff] %vm1508, %v1278
      %1516 = vst.msk [vmem:[%s221 + $0x38] sm:$0xff] %vm1508, %v1281
      %1517 = vst.msk [vmem:[%s221 + $0x40] sm:$0xff] %vm1508, %v1286
      %1518 = vst.msk [vmem:[%s221 + $0x48] sm:$0xff] %vm1508, %v1289
      %1519 = vst.msk [vmem:[%s221 + $0x50] sm:$0xff] %vm1508, %v1294
      %1520 = vst.msk [vmem:[%s221 + $0x58] sm:$0xff] %vm1508, %v1297
      %1521 = vst.msk [vmem:[%s221 + $0x60] sm:$0xff] %vm1508, %v1302
      %1522 = vst.msk [vmem:[%s221 + $0x68] sm:$0xff] %vm1508, %v1305
      %1523 = vst.msk [vmem:[%s221 + $0x70] sm:$0xff] %vm1508, %v1310
      %1524 = vst.msk [vmem:[%s221 + $0x78] sm:$0xff] %vm1508, %v1313
      %1525 = vst.msk [vmem:[%s221 + $0x80] sm:$0xff] %vm1508, %v1318
      %1526 = vst.msk [vmem:[%s221 + $0x88] sm:$0xff] %vm1508, %v1321
      %1527 = vst.msk [vmem:[%s221 + $0x90] sm:$0xff] %vm1508, %v1326
      %1528 = vst.msk [vmem:[%s221 + $0x98] sm:$0xff] %vm1508, %v1329
      %1529 = vst.msk [vmem:[%s221 + $0xa0] sm:$0xff] %vm1508, %v1334
      %1530 = vst.msk [vmem:[%s221 + $0xa8] sm:$0xff] %vm1508, %v1337
      %1531 = vst.msk [vmem:[%s221 + $0xb0] sm:$0xff] %vm1508, %v1342
      %1532 = vst.msk [vmem:[%s221 + $0xb8] sm:$0xff] %vm1508, %v1345
      %1533 = vst.msk [vmem:[%s221 + $0xc0] sm:$0xff] %vm1508, %v1350
      %1534 = vst.msk [vmem:[%s221 + $0xc8] sm:$0xff] %vm1508, %v1353
      %1535 = vst.msk [vmem:[%s221 + $0xd0] sm:$0xff] %vm1508, %v1358
      %1536 = vst.msk [vmem:[%s221 + $0xd8] sm:$0xff] %vm1508, %v1361
      %1537 = vst.msk [vmem:[%s221 + $0xe0] sm:$0xff] %vm1508, %v1366
      %1538 = vst.msk [vmem:[%s221 + $0xe8] sm:$0xff] %vm1508, %v1369
      %1539 = vst.msk [vmem:[%s221 + $0xf0] sm:$0xff] %vm1508, %v1374
      %1540 = vst.msk [vmem:[%s221 + $0xf8] sm:$0xff] %vm1508, %v1377
      %1541 = vst.msk [vmem:[%s221 + $0x100] sm:$0xff] %vm1508, %v1382
      %1542 = vst.msk [vmem:[%s221 + $0x108] sm:$0xff] %vm1508, %v1385
      %1543 = vst.msk [vmem:[%s221 + $0x110] sm:$0xff] %vm1508, %v1390
      %1544 = vst.msk [vmem:[%s221 + $0x118] sm:$0xff] %vm1508, %v1393
      %1545 = vst.msk [vmem:[%s221 + $0x120] sm:$0xff] %vm1508, %v1398
      %1546 = vst.msk [vmem:[%s221 + $0x128] sm:$0xff] %vm1508, %v1401
      %1547 = vst.msk [vmem:[%s221 + $0x130] sm:$0xff] %vm1508, %v1406
      %1548 = vst.msk [vmem:[%s221 + $0x138] sm:$0xff] %vm1508, %v1409
      %1549 = vst.msk [vmem:[%s221 + $0x140] sm:$0xff] %vm1508, %v1414
      %1550 = vst.msk [vmem:[%s221 + $0x148] sm:$0xff] %vm1508, %v1417
      %1551 = vst.msk [vmem:[%s221 + $0x150] sm:$0xff] %vm1508, %v1422
      %1552 = vst.msk [vmem:[%s221 + $0x158] sm:$0xff] %vm1508, %v1425
      %1553 = vst.msk [vmem:[%s221 + $0x160] sm:$0xff] %vm1508, %v1430
      %1554 = vst.msk [vmem:[%s221 + $0x168] sm:$0xff] %vm1508, %v1433
      %1555 = vst.msk [vmem:[%s221 + $0x170] sm:$0xff] %vm1508, %v1438
      %1556 = vst.msk [vmem:[%s221 + $0x178] sm:$0xff] %vm1508, %v1441
      %1557 = vst.msk [vmem:[%s221 + $0x180] sm:$0xff] %vm1508, %v1446
      %1558 = vst.msk [vmem:[%s221 + $0x188] sm:$0xff] %vm1508, %v1449
      %1559 = vst.msk [vmem:[%s221 + $0x190] sm:$0xff] %vm1508, %v1454
      %1560 = vst.msk [vmem:[%s221 + $0x198] sm:$0xff] %vm1508, %v1457
      %1561 = vst.msk [vmem:[%s221 + $0x1a0] sm:$0xff] %vm1508, %v1462
      %1562 = vst.msk [vmem:[%s221 + $0x1a8] sm:$0xff] %vm1508, %v1465
      %1563 = vst.msk [vmem:[%s221 + $0x1b0] sm:$0xff] %vm1508, %v1470
      %1564 = vst.msk [vmem:[%s221 + $0x1b8] sm:$0xff] %vm1508, %v1473
      %1565 = vst.msk [vmem:[%s221 + $0x1c0] sm:$0xff] %vm1508, %v1478
      %1566 = vst.msk [vmem:[%s221 + $0x1c8] sm:$0xff] %vm1508, %v1481
      %1567 = vst.msk [vmem:[%s221 + $0x1d0] sm:$0xff] %vm1508, %v1486
      %1568 = vst.msk [vmem:[%s221 + $0x1d8] sm:$0xff] %vm1508, %v1489
      %1569 = vst.msk [vmem:[%s221 + $0x1e0] sm:$0xff] %vm1508, %v1494
      %1570 = vst.msk [vmem:[%s221 + $0x1e8] sm:$0xff] %vm1508, %v1497
      %1571 = vst.msk [vmem:[%s221 + $0x1f0] sm:$0xff] %vm1508, %v1502
      %1572 = vst.msk [vmem:[%s221 + $0x1f8] sm:$0xff] %vm1508, %v1505
      %s1573 = smul.u32 64, %s15
      %p1574 = scmp.lt.s32.totalorder %s1573, 127
      %s1575 = scalar_select %p1574, %s1573, 127
      %s1576 = smul.addr %s1575, 8
      %s1577 = scalar_lea.vmem %s4, %s1576
      // Predicated region
      $region37: #{_lambda_.25} parent=35 // pred_check
        %p1578 = pneg %p127
      $region38: #{_lambda_.25} parent=35 // pred_check_branch
        %1580 = sbr.rel (%p1578) target = $region40
      $region39: #{_lambda_.25} parent=35 // pred_region
        %s1581 = smul.u32 64, %s15
      $region40: #{_lambda_.25} parent=35 // pred_fallthru
        _
    $region36: #{_lambda_.25} parent=5 // pred_fallthru
      _
    %p1582 = scmp.le.s32.totalorder 2, %s10
    // Predicated region
    $region41: #{_lambda_.25} parent=5 // pred_check
      %p1583 = pneg %p1582
    $region42: #{_lambda_.25} parent=5 // pred_check_branch
      %1585 = sbr.rel (%p1583) target = $region44
    $region43: #{_lambda_.25} parent=5 // pred_region
      %s1586 = ssub.s32 %s10, 2
      // Predicated region
      $region45: #{_lambda_.25} parent=43 // pred_check
        %p1587 = pneg %p133
      $region46: #{_lambda_.25} parent=43 // pred_check_branch
        %1589 = sbr.rel (%p1587) target = $region48
      $region47: #{_lambda_.25} parent=43 // pred_region
        %s1590 = smul.u32 64, %s16
        %p1591 = scmp.lt.s32.totalorder %s1590, 127
        %s1592 = scalar_select %p1591, %s1590, 127
        %s1593 = smul.addr %s1592, 8
        %s1594 = scalar_lea.vmem %s4, %s1593
      $region48: #{_lambda_.25} parent=43 // pred_fallthru
        _
    $region44: #{_lambda_.25} parent=5 // pred_fallthru
      _
  $region6: #{_lambda_.25} parent=0 // loop_footer
    %s14 = sadd.s32 1, %s10
  $region7: #{_lambda_.25} parent=0 // loop_footer_branch
    %9 = sbr.rel target = $region3
  $region8: #{_lambda_.25} parent=0 // loop_exit
    _

</llo_original>
